<compile_context>
chip_gen: v7x
topology: tpu7x:2x2x1
jax: 0.10.0
libtpu: 0.0.40
codegen_flags: <defaults>
</compile_context>

<pallas_src>
import functools

import jax
import jax.numpy as jnp
import numpy as np
from jax.experimental import pallas as pl
from jax.experimental.pallas import tpu as pltpu


def _resblock_kernel(x_ref, gmat_ref, g1_ref, be1_ref, b1_ref, bc1_ref,
                     g2_ref, be2_ref, b2_ref, bc2_ref, o_ref, pad_ref,
                     *, D, H, WC, eps):
    DH = D * H
    gmat = gmat_ref[...]                     # (WC, WC), pre-scaled by 1/count

    def gn_silu(h2, gamma, beta):
        # GroupNorm (biased variance) + SiLU on the lane-dense (DH, WC) view.
        s1 = jnp.sum(h2, axis=0, keepdims=True)               # (1, WC)
        s2 = jnp.sum(h2 * h2, axis=0, keepdims=True)          # (1, WC)
        stats = jnp.concatenate([s1, s2], axis=0)             # (2, WC)
        gm = jnp.dot(stats, gmat, preferred_element_type=jnp.float32)
        gmean = gm[0:1, :]                                    # group mean
        var = gm[1:2, :] - gmean * gmean                      # biased variance
        scale = jax.lax.rsqrt(var + eps) * gamma              # hoisted bcast
        hn = (h2 - gmean) * scale + beta
        return hn * jax.nn.sigmoid(hn)                        # SiLU

    def conv3(h2, b_ref, bias):
        # 3x3x3 replicate-pad conv.  kw taps + W replicate padding live inside
        # the banded (WC, WC) matrices; D/H replicate padding lives in pad_ref.
        h3 = h2.reshape(D, H, WC)
        pad_ref[1:D + 1, 1:H + 1, :] = h3                       # interior
        pad_ref[1:D + 1, 0:1, :] = h3[:, 0:1, :]                # H edges
        pad_ref[1:D + 1, H + 1:H + 2, :] = h3[:, H - 1:H, :]
        pad_ref[0:1, :, :] = pad_ref[1:2, :, :]                 # D edges
        pad_ref[D + 1:D + 2, :, :] = pad_ref[D:D + 1, :, :]

        acc = jnp.zeros((DH, WC), jnp.float32)
        for kd in range(3):                  # 9 matmuls, each K = N = WC
            for kh in range(3):
                lhs = pad_ref[kd:kd + D, kh:kh + H, :].reshape(DH, WC)
                acc = acc + jnp.dot(lhs, b_ref[kd * 3 + kh],
                                    preferred_element_type=jnp.float32)
        return acc + bias

    x2 = x_ref[0]                                # (DH, WC), lane-dense
    h = gn_silu(x2, g1_ref[...], be1_ref[...])
    h = conv3(h, b1_ref, bc1_ref[...])
    h = gn_silu(h, g2_ref[...], be2_ref[...])
    h = conv3(h, b2_ref, bc2_ref[...])
    o_ref[0] = (x2 + h).astype(o_ref.dtype)      # residual, unmasked store


def _band_weights(w, W):
    """Fold the kw taps and replicate W-padding of a DHWIO 3x3x3 kernel into
    9 block-banded (W*Cin, W*Cout) matrices, one per (kd, kh)."""
    w = np.asarray(w, np.float32)                # (3, 3, 3, Cin, Cout)
    _, _, _, cin, cout = w.shape
    B = np.zeros((9, W * cin, W * cout), np.float32)
    for kd in range(3):
        for kh in range(3):
            for w_out in range(W):
                for kw in range(3):
                    w_in = min(max(w_out + kw - 1, 0), W - 1)   # replicate pad
                    B[kd * 3 + kh,
                      w_in * cin:(w_in + 1) * cin,
                      w_out * cout:(w_out + 1) * cout] += w[kd, kh, kw]
    return jnp.asarray(B)


def resblock_pallas(x, p, *, num_groups, eps=1e-6):
    N, D, H, W, C = x.shape
    assert C % num_groups == 0
    WC, DH = W * C, D * H

    # ---- wrapper-side layout plumbing (lane-dense W*C views) ----
    x2 = x.reshape(N, DH, WC)

    grp = (np.arange(WC) % C) // (C // num_groups)
    cnt = float(D * H * W * (C // num_groups))
    gmat = jnp.asarray((grp[:, None] == grp[None, :]).astype(np.float32) / cnt)

    def tile_c(v):                    # (1, C) -> (1, W*C) per-lane vector
        return jnp.tile(jnp.asarray(v, jnp.float32).reshape(1, C), (1, W))

    b1 = _band_weights(p["w1"], W)
    b2 = _band_weights(p["w2"], W)
    args = (x2, gmat, tile_c(p["g1"]), tile_c(p["be1"]), b1, tile_c(p["bc1"]),
            tile_c(p["g2"]), tile_c(p["be2"]), b2, tile_c(p["bc2"]))

    def full_spec(a):
        nd = a.ndim
        return pl.BlockSpec(a.shape, lambda n, _nd=nd: (0,) * _nd)

    kernel = functools.partial(_resblock_kernel, D=D, H=H, WC=WC, eps=eps)
    out2 = pl.pallas_call(
        kernel,
        out_shape=jax.ShapeDtypeStruct((N, DH, WC), x.dtype),
        grid=(N,),
        in_specs=[pl.BlockSpec((1, DH, WC), lambda n: (n, 0, 0))]
                 + [full_spec(a) for a in args[1:]],
        out_specs=pl.BlockSpec((1, DH, WC), lambda n: (n, 0, 0)),
        scratch_shapes=[pltpu.VMEM((D + 2, H + 2, WC), jnp.float32)],
        compiler_params=pltpu.CompilerParams(dimension_semantics=("parallel",)),
    )(*args)
    return out2.reshape(N, D, H, W, C)


def resblock_ref(x, p, *, num_groups, eps=1e-6):
    """Pure-JAX reference matching PyTorch semantics (channels-last layout)."""
    def gn(h, gamma, beta):
        N, D, H, W, C = h.shape
        hg = h.reshape(N, D * H * W, num_groups, C // num_groups)
        mean = hg.mean(axis=(1, 3), keepdims=True)
        var = ((hg - mean) ** 2).mean(axis=(1, 3), keepdims=True)
        hn = (hg - mean) / jnp.sqrt(var + eps)
        return hn.reshape(N, D, H, W, C) * gamma[0] + beta[0]

    def silu(h):
        return h * jax.nn.sigmoid(h)

    def conv(h, w, b):
        hp = jnp.pad(h, ((0, 0), (1, 1), (1, 1), (1, 1), (0, 0)), mode="edge")
        out = jax.lax.conv_general_dilated(
            hp, w, window_strides=(1, 1, 1), padding="VALID",
            dimension_numbers=("NDHWC", "DHWIO", "NDHWC"),
            precision=jax.lax.Precision.HIGHEST)
        return out + b[0]

    h = silu(gn(x, p["g1"], p["be1"]))
    h = conv(h, p["w1"], p["bc1"])
    h = silu(gn(h, p["g2"], p["be2"]))
    h = conv(h, p["w2"], p["bc2"])
    return x + h


if __name__ == "__main__":
    N, D, H, W, C = 2, 4, 8, 8, 32        # PyTorch NCDHW equivalent: (2, 32, 4, 8, 8)
    G = 8                                 # ResBlock(..., num_groups=8)
    eps = 1e-6

    key = jax.random.PRNGKey(0)
    ks = jax.random.split(key, 9)
    x = jax.random.normal(ks[0], (N, D, H, W, C), jnp.float32)

    params = dict(
        g1=1.0 + 0.1 * jax.random.normal(ks[1], (1, C), jnp.float32),
        be1=0.1 * jax.random.normal(ks[2], (1, C), jnp.float32),
        w1=0.05 * jax.random.normal(ks[3], (3, 3, 3, C, C), jnp.float32),
        bc1=0.1 * jax.random.normal(ks[4], (1, C), jnp.float32),
        g2=1.0 + 0.1 * jax.random.normal(ks[5], (1, C), jnp.float32),
        be2=0.1 * jax.random.normal(ks[6], (1, C), jnp.float32),
        w2=0.05 * jax.random.normal(ks[7], (3, 3, 3, C, C), jnp.float32),
        bc2=0.1 * jax.random.normal(ks[8], (1, C), jnp.float32),
    )

    out = resblock_pallas(x, params, num_groups=G, eps=eps)
    out = jax.block_until_ready(out)

    ref = resblock_ref(x, params, num_groups=G, eps=eps)
    assert out.shape == (N, D, H, W, C)
    max_err = float(jnp.max(jnp.abs(out - ref)))
    assert max_err < 5e-3, f"max abs error too large: {max_err}"
    print("KERNEL_OK")
</pallas_src>

<mosaic_0001>
module attributes {stable_mosaic.version = 11 : i64} {
  func.func @_resblock_kernel(%arg0: i32, %arg1: memref<1x32x256xf32, #tpu.memory_space<vmem>>, %arg2: memref<256x256xf32, #tpu.memory_space<vmem>>, %arg3: memref<1x256xf32, #tpu.memory_space<vmem>>, %arg4: memref<1x256xf32, #tpu.memory_space<vmem>>, %arg5: memref<9x256x256xf32, #tpu.memory_space<vmem>>, %arg6: memref<1x256xf32, #tpu.memory_space<vmem>>, %arg7: memref<1x256xf32, #tpu.memory_space<vmem>>, %arg8: memref<1x256xf32, #tpu.memory_space<vmem>>, %arg9: memref<9x256x256xf32, #tpu.memory_space<vmem>>, %arg10: memref<1x256xf32, #tpu.memory_space<vmem>>, %arg11: memref<1x32x256xf32, #tpu.memory_space<vmem>>, %arg12: memref<6x10x256xf32, #tpu.memory_space<vmem>>) attributes {dimension_semantics = [#tpu.dimension_semantics<parallel>], iteration_bounds = array<i64: 2>, scalar_prefetch = 0 : i64, scratch_operands = 1 : i64, tpu.core_type = #tpu.core_type<tc>, window_params = [{transform_indices = @transform_0, window_bounds = array<i64: 1, 32, 256>}, {pipeline_mode = #tpu.pipeline_mode<synchronous>, transform_indices = @transform_1, window_bounds = array<i64: 256, 256>}, {pipeline_mode = #tpu.pipeline_mode<synchronous>, transform_indices = @transform_2, window_bounds = array<i64: 1, 256>}, {pipeline_mode = #tpu.pipeline_mode<synchronous>, transform_indices = @transform_3, window_bounds = array<i64: 1, 256>}, {pipeline_mode = #tpu.pipeline_mode<synchronous>, transform_indices = @transform_4, window_bounds = array<i64: 9, 256, 256>}, {pipeline_mode = #tpu.pipeline_mode<synchronous>, transform_indices = @transform_5, window_bounds = array<i64: 1, 256>}, {pipeline_mode = #tpu.pipeline_mode<synchronous>, transform_indices = @transform_6, window_bounds = array<i64: 1, 256>}, {pipeline_mode = #tpu.pipeline_mode<synchronous>, transform_indices = @transform_7, window_bounds = array<i64: 1, 256>}, {pipeline_mode = #tpu.pipeline_mode<synchronous>, transform_indices = @transform_8, window_bounds = array<i64: 9, 256, 256>}, {pipeline_mode = #tpu.pipeline_mode<synchronous>, transform_indices = @transform_9, window_bounds = array<i64: 1, 256>}, {transform_indices = @transform_10, window_bounds = array<i64: 1, 32, 256>}]} {
    %c0 = arith.constant 0 : index
    %c0_0 = arith.constant 0 : index
    %0 = vector.load %arg2[%c0, %c0_0] : memref<256x256xf32, #tpu.memory_space<vmem>>, vector<256x256xf32>
    %c0_1 = arith.constant 0 : index
    %c0_2 = arith.constant 0 : index
    %c0_3 = arith.constant 0 : index
    %1 = vector.load %arg1[%c0_1, %c0_2, %c0_3] : memref<1x32x256xf32, #tpu.memory_space<vmem>>, vector<1x32x256xf32>
    %2 = vector.shape_cast %1 : vector<1x32x256xf32> to vector<32x256xf32>
    %c0_4 = arith.constant 0 : index
    %c0_5 = arith.constant 0 : index
    %3 = vector.load %arg3[%c0_4, %c0_5] : memref<1x256xf32, #tpu.memory_space<vmem>>, vector<1x256xf32>
    %c0_6 = arith.constant 0 : index
    %c0_7 = arith.constant 0 : index
    %4 = vector.load %arg4[%c0_6, %c0_7] : memref<1x256xf32, #tpu.memory_space<vmem>>, vector<1x256xf32>
    %cst = arith.constant dense<0.000000e+00> : vector<256xf32>
    %5 = vector.multi_reduction <add>, %2, %cst [0] : vector<32x256xf32> to vector<256xf32>
    %6 = vector.shape_cast %5 : vector<256xf32> to vector<1x256xf32>
    %7 = arith.mulf %2, %2 : vector<32x256xf32>
    %cst_8 = arith.constant dense<0.000000e+00> : vector<256xf32>
    %8 = vector.multi_reduction <add>, %7, %cst_8 [0] : vector<32x256xf32> to vector<256xf32>
    %9 = vector.shape_cast %8 : vector<256xf32> to vector<1x256xf32>
    %10 = tpu.concatenate %6, %9 in 0 : vector<1x256xf32>, vector<1x256xf32> -> vector<2x256xf32>
    %cst_9 = arith.constant dense<0.000000e+00> : vector<2x256xf32>
    %11 = tpu.matmul %10, %0, %cst_9 {dimension_numbers = #tpu.dot_dimension_numbers<[1], [0], [0], [1], [0, 0, 1, 1], [], []>} : vector<2x256xf32>, vector<256x256xf32>, vector<2x256xf32> -> vector<2x256xf32>
    %12 = vector.extract_strided_slice %11 {offsets = [0, 0], sizes = [1, 256], strides = [1, 1]} : vector<2x256xf32> to vector<1x256xf32>
    %13 = vector.extract_strided_slice %11 {offsets = [1, 0], sizes = [1, 256], strides = [1, 1]} : vector<2x256xf32> to vector<1x256xf32>
    %14 = arith.mulf %12, %12 : vector<1x256xf32>
    %15 = arith.subf %13, %14 : vector<1x256xf32>
    %cst_10 = arith.constant 9.99999997E-7 : f32
    %16 = vector.broadcast %cst_10 : f32 to vector<1x256xf32>
    %17 = arith.addf %15, %16 : vector<1x256xf32>
    %18 = math.rsqrt %17 : vector<1x256xf32>
    %19 = arith.mulf %18, %3 : vector<1x256xf32>
    %20 = vector.broadcast %12 : vector<1x256xf32> to vector<32x256xf32>
    %21 = arith.subf %2, %20 : vector<32x256xf32>
    %22 = vector.broadcast %19 : vector<1x256xf32> to vector<32x256xf32>
    %23 = arith.mulf %21, %22 : vector<32x256xf32>
    %24 = vector.broadcast %4 : vector<1x256xf32> to vector<32x256xf32>
    %25 = arith.addf %23, %24 : vector<32x256xf32>
    %26 = arith.negf %25 : vector<32x256xf32>
    %27 = math.exp %26 : vector<32x256xf32>
    %cst_11 = arith.constant 1.000000e+00 : f32
    %28 = vector.broadcast %cst_11 : f32 to vector<32x256xf32>
    %29 = arith.addf %28, %27 : vector<32x256xf32>
    %30 = arith.divf %28, %29 : vector<32x256xf32>
    %31 = arith.mulf %25, %30 : vector<32x256xf32>
    %c0_12 = arith.constant 0 : index
    %c0_13 = arith.constant 0 : index
    %32 = vector.load %arg6[%c0_12, %c0_13] : memref<1x256xf32, #tpu.memory_space<vmem>>, vector<1x256xf32>
    %33 = vector.shape_cast %31 : vector<32x256xf32> to vector<4x8x256xf32>
    %c1 = arith.constant 1 : index
    %c1_14 = arith.constant 1 : index
    %c0_15 = arith.constant 0 : index
    %34 = vector.load %arg12[%c1, %c1_14, %c0_15] : memref<6x10x256xf32, #tpu.memory_space<vmem>>, vector<4x8x256xf32>
    tpu.vector_store %arg12[%c1, %c1_14, %c0_15], %33 {strides = array<i32>} : memref<6x10x256xf32, #tpu.memory_space<vmem>>, vector<4x8x256xf32>,
    %35 = vector.extract_strided_slice %33 {offsets = [0, 0, 0], sizes = [4, 1, 256], strides = [1, 1, 1]} : vector<4x8x256xf32> to vector<4x1x256xf32>
    %c1_16 = arith.constant 1 : index
    %c0_17 = arith.constant 0 : index
    %c0_18 = arith.constant 0 : index
    %36 = vector.load %arg12[%c1_16, %c0_17, %c0_18] : memref<6x10x256xf32, #tpu.memory_space<vmem>>, vector<4x1x256xf32>
    tpu.vector_store %arg12[%c1_16, %c0_17, %c0_18], %35 {strides = array<i32>} : memref<6x10x256xf32, #tpu.memory_space<vmem>>, vector<4x1x256xf32>,
    %37 = vector.extract_strided_slice %33 {offsets = [0, 7, 0], sizes = [4, 1, 256], strides = [1, 1, 1]} : vector<4x8x256xf32> to vector<4x1x256xf32>
    %c1_19 = arith.constant 1 : index
    %c9 = arith.constant 9 : index
    %c0_20 = arith.constant 0 : index
    %38 = vector.load %arg12[%c1_19, %c9, %c0_20] : memref<6x10x256xf32, #tpu.memory_space<vmem>>, vector<4x1x256xf32>
    tpu.vector_store %arg12[%c1_19, %c9, %c0_20], %37 {strides = array<i32>} : memref<6x10x256xf32, #tpu.memory_space<vmem>>, vector<4x1x256xf32>,
    %c1_21 = arith.constant 1 : index
    %c0_22 = arith.constant 0 : index
    %c0_23 = arith.constant 0 : index
    %39 = vector.load %arg12[%c1_21, %c0_22, %c0_23] : memref<6x10x256xf32, #tpu.memory_space<vmem>>, vector<1x10x256xf32>
    %c0_24 = arith.constant 0 : index
    %c0_25 = arith.constant 0 : index
    %c0_26 = arith.constant 0 : index
    %40 = vector.load %arg12[%c0_24, %c0_25, %c0_26] : memref<6x10x256xf32, #tpu.memory_space<vmem>>, vector<1x10x256xf32>
    tpu.vector_store %arg12[%c0_24, %c0_25, %c0_26], %39 {strides = array<i32>} : memref<6x10x256xf32, #tpu.memory_space<vmem>>, vector<1x10x256xf32>,
    %c4 = arith.constant 4 : index
    %c0_27 = arith.constant 0 : index
    %c0_28 = arith.constant 0 : index
    %41 = vector.load %arg12[%c4, %c0_27, %c0_28] : memref<6x10x256xf32, #tpu.memory_space<vmem>>, vector<1x10x256xf32>
    %c5 = arith.constant 5 : index
    %c0_29 = arith.constant 0 : index
    %c0_30 = arith.constant 0 : index
    %42 = vector.load %arg12[%c5, %c0_29, %c0_30] : memref<6x10x256xf32, #tpu.memory_space<vmem>>, vector<1x10x256xf32>
    tpu.vector_store %arg12[%c5, %c0_29, %c0_30], %41 {strides = array<i32>} : memref<6x10x256xf32, #tpu.memory_space<vmem>>, vector<1x10x256xf32>,
    %cst_31 = arith.constant 0.000000e+00 : f32
    %43 = vector.broadcast %cst_31 : f32 to vector<32x256xf32>
    %c0_32 = arith.constant 0 : index
    %c0_33 = arith.constant 0 : index
    %c0_34 = arith.constant 0 : index
    %44 = vector.load %arg12[%c0_32, %c0_33, %c0_34] : memref<6x10x256xf32, #tpu.memory_space<vmem>>, vector<4x8x256xf32>
    %45 = vector.shape_cast %44 : vector<4x8x256xf32> to vector<32x256xf32>
    %c0_35 = arith.constant 0 : index
    %c0_36 = arith.constant 0 : index
    %c0_37 = arith.constant 0 : index
    %46 = vector.load %arg5[%c0_35, %c0_36, %c0_37] : memref<9x256x256xf32, #tpu.memory_space<vmem>>, vector<1x256x256xf32>
    %47 = vector.shape_cast %46 : vector<1x256x256xf32> to vector<256x256xf32>
    %cst_38 = arith.constant dense<0.000000e+00> : vector<32x256xf32>
    %48 = tpu.matmul %45, %47, %cst_38 {dimension_numbers = #tpu.dot_dimension_numbers<[1], [0], [0], [1], [0, 0, 1, 1], [], []>} : vector<32x256xf32>, vector<256x256xf32>, vector<32x256xf32> -> vector<32x256xf32>
    %49 = arith.addf %43, %48 : vector<32x256xf32>
    %c0_39 = arith.constant 0 : index
    %c1_40 = arith.constant 1 : index
    %c0_41 = arith.constant 0 : index
    %50 = vector.load %arg12[%c0_39, %c1_40, %c0_41] : memref<6x10x256xf32, #tpu.memory_space<vmem>>, vector<4x8x256xf32>
    %51 = vector.shape_cast %50 : vector<4x8x256xf32> to vector<32x256xf32>
    %c1_42 = arith.constant 1 : index
    %c0_43 = arith.constant 0 : index
    %c0_44 = arith.constant 0 : index
    %52 = vector.load %arg5[%c1_42, %c0_43, %c0_44] : memref<9x256x256xf32, #tpu.memory_space<vmem>>, vector<1x256x256xf32>
    %53 = vector.shape_cast %52 : vector<1x256x256xf32> to vector<256x256xf32>
    %cst_45 = arith.constant dense<0.000000e+00> : vector<32x256xf32>
    %54 = tpu.matmul %51, %53, %cst_45 {dimension_numbers = #tpu.dot_dimension_numbers<[1], [0], [0], [1], [0, 0, 1, 1], [], []>} : vector<32x256xf32>, vector<256x256xf32>, vector<32x256xf32> -> vector<32x256xf32>
    %55 = arith.addf %49, %54 : vector<32x256xf32>
    %c0_46 = arith.constant 0 : index
    %c2 = arith.constant 2 : index
    %c0_47 = arith.constant 0 : index
    %56 = vector.load %arg12[%c0_46, %c2, %c0_47] : memref<6x10x256xf32, #tpu.memory_space<vmem>>, vector<4x8x256xf32>
    %57 = vector.shape_cast %56 : vector<4x8x256xf32> to vector<32x256xf32>
    %c2_48 = arith.constant 2 : index
    %c0_49 = arith.constant 0 : index
    %c0_50 = arith.constant 0 : index
    %58 = vector.load %arg5[%c2_48, %c0_49, %c0_50] : memref<9x256x256xf32, #tpu.memory_space<vmem>>, vector<1x256x256xf32>
    %59 = vector.shape_cast %58 : vector<1x256x256xf32> to vector<256x256xf32>
    %cst_51 = arith.constant dense<0.000000e+00> : vector<32x256xf32>
    %60 = tpu.matmul %57, %59, %cst_51 {dimension_numbers = #tpu.dot_dimension_numbers<[1], [0], [0], [1], [0, 0, 1, 1], [], []>} : vector<32x256xf32>, vector<256x256xf32>, vector<32x256xf32> -> vector<32x256xf32>
    %61 = arith.addf %55, %60 : vector<32x256xf32>
    %c1_52 = arith.constant 1 : index
    %c0_53 = arith.constant 0 : index
    %c0_54 = arith.constant 0 : index
    %62 = vector.load %arg12[%c1_52, %c0_53, %c0_54] : memref<6x10x256xf32, #tpu.memory_space<vmem>>, vector<4x8x256xf32>
    %63 = vector.shape_cast %62 : vector<4x8x256xf32> to vector<32x256xf32>
    %c3 = arith.constant 3 : index
    %c0_55 = arith.constant 0 : index
    %c0_56 = arith.constant 0 : index
    %64 = vector.load %arg5[%c3, %c0_55, %c0_56] : memref<9x256x256xf32, #tpu.memory_space<vmem>>, vector<1x256x256xf32>
    %65 = vector.shape_cast %64 : vector<1x256x256xf32> to vector<256x256xf32>
    %cst_57 = arith.constant dense<0.000000e+00> : vector<32x256xf32>
    %66 = tpu.matmul %63, %65, %cst_57 {dimension_numbers = #tpu.dot_dimension_numbers<[1], [0], [0], [1], [0, 0, 1, 1], [], []>} : vector<32x256xf32>, vector<256x256xf32>, vector<32x256xf32> -> vector<32x256xf32>
    %67 = arith.addf %61, %66 : vector<32x256xf32>
    %c1_58 = arith.constant 1 : index
    %c1_59 = arith.constant 1 : index
    %c0_60 = arith.constant 0 : index
    %68 = vector.load %arg12[%c1_58, %c1_59, %c0_60] : memref<6x10x256xf32, #tpu.memory_space<vmem>>, vector<4x8x256xf32>
    %69 = vector.shape_cast %68 : vector<4x8x256xf32> to vector<32x256xf32>
    %c4_61 = arith.constant 4 : index
    %c0_62 = arith.constant 0 : index
    %c0_63 = arith.constant 0 : index
    %70 = vector.load %arg5[%c4_61, %c0_62, %c0_63] : memref<9x256x256xf32, #tpu.memory_space<vmem>>, vector<1x256x256xf32>
    %71 = vector.shape_cast %70 : vector<1x256x256xf32> to vector<256x256xf32>
    %cst_64 = arith.constant dense<0.000000e+00> : vector<32x256xf32>
    %72 = tpu.matmul %69, %71, %cst_64 {dimension_numbers = #tpu.dot_dimension_numbers<[1], [0], [0], [1], [0, 0, 1, 1], [], []>} : vector<32x256xf32>, vector<256x256xf32>, vector<32x256xf32> -> vector<32x256xf32>
    %73 = arith.addf %67, %72 : vector<32x256xf32>
    %c1_65 = arith.constant 1 : index
    %c2_66 = arith.constant 2 : index
    %c0_67 = arith.constant 0 : index
    %74 = vector.load %arg12[%c1_65, %c2_66, %c0_67] : memref<6x10x256xf32, #tpu.memory_space<vmem>>, vector<4x8x256xf32>
    %75 = vector.shape_cast %74 : vector<4x8x256xf32> to vector<32x256xf32>
    %c5_68 = arith.constant 5 : index
    %c0_69 = arith.constant 0 : index
    %c0_70 = arith.constant 0 : index
    %76 = vector.load %arg5[%c5_68, %c0_69, %c0_70] : memref<9x256x256xf32, #tpu.memory_space<vmem>>, vector<1x256x256xf32>
    %77 = vector.shape_cast %76 : vector<1x256x256xf32> to vector<256x256xf32>
    %cst_71 = arith.constant dense<0.000000e+00> : vector<32x256xf32>
    %78 = tpu.matmul %75, %77, %cst_71 {dimension_numbers = #tpu.dot_dimension_numbers<[1], [0], [0], [1], [0, 0, 1, 1], [], []>} : vector<32x256xf32>, vector<256x256xf32>, vector<32x256xf32> -> vector<32x256xf32>
    %79 = arith.addf %73, %78 : vector<32x256xf32>
    %c2_72 = arith.constant 2 : index
    %c0_73 = arith.constant 0 : index
    %c0_74 = arith.constant 0 : index
    %80 = vector.load %arg12[%c2_72, %c0_73, %c0_74] : memref<6x10x256xf32, #tpu.memory_space<vmem>>, vector<4x8x256xf32>
    %81 = vector.shape_cast %80 : vector<4x8x256xf32> to vector<32x256xf32>
    %c6 = arith.constant 6 : index
    %c0_75 = arith.constant 0 : index
    %c0_76 = arith.constant 0 : index
    %82 = vector.load %arg5[%c6, %c0_75, %c0_76] : memref<9x256x256xf32, #tpu.memory_space<vmem>>, vector<1x256x256xf32>
    %83 = vector.shape_cast %82 : vector<1x256x256xf32> to vector<256x256xf32>
    %cst_77 = arith.constant dense<0.000000e+00> : vector<32x256xf32>
    %84 = tpu.matmul %81, %83, %cst_77 {dimension_numbers = #tpu.dot_dimension_numbers<[1], [0], [0], [1], [0, 0, 1, 1], [], []>} : vector<32x256xf32>, vector<256x256xf32>, vector<32x256xf32> -> vector<32x256xf32>
    %85 = arith.addf %79, %84 : vector<32x256xf32>
    %c2_78 = arith.constant 2 : index
    %c1_79 = arith.constant 1 : index
    %c0_80 = arith.constant 0 : index
    %86 = vector.load %arg12[%c2_78, %c1_79, %c0_80] : memref<6x10x256xf32, #tpu.memory_space<vmem>>, vector<4x8x256xf32>
    %87 = vector.shape_cast %86 : vector<4x8x256xf32> to vector<32x256xf32>
    %c7 = arith.constant 7 : index
    %c0_81 = arith.constant 0 : index
    %c0_82 = arith.constant 0 : index
    %88 = vector.load %arg5[%c7, %c0_81, %c0_82] : memref<9x256x256xf32, #tpu.memory_space<vmem>>, vector<1x256x256xf32>
    %89 = vector.shape_cast %88 : vector<1x256x256xf32> to vector<256x256xf32>
    %cst_83 = arith.constant dense<0.000000e+00> : vector<32x256xf32>
    %90 = tpu.matmul %87, %89, %cst_83 {dimension_numbers = #tpu.dot_dimension_numbers<[1], [0], [0], [1], [0, 0, 1, 1], [], []>} : vector<32x256xf32>, vector<256x256xf32>, vector<32x256xf32> -> vector<32x256xf32>
    %91 = arith.addf %85, %90 : vector<32x256xf32>
    %c2_84 = arith.constant 2 : index
    %c2_85 = arith.constant 2 : index
    %c0_86 = arith.constant 0 : index
    %92 = vector.load %arg12[%c2_84, %c2_85, %c0_86] : memref<6x10x256xf32, #tpu.memory_space<vmem>>, vector<4x8x256xf32>
    %93 = vector.shape_cast %92 : vector<4x8x256xf32> to vector<32x256xf32>
    %c8 = arith.constant 8 : index
    %c0_87 = arith.constant 0 : index
    %c0_88 = arith.constant 0 : index
    %94 = vector.load %arg5[%c8, %c0_87, %c0_88] : memref<9x256x256xf32, #tpu.memory_space<vmem>>, vector<1x256x256xf32>
    %95 = vector.shape_cast %94 : vector<1x256x256xf32> to vector<256x256xf32>
    %cst_89 = arith.constant dense<0.000000e+00> : vector<32x256xf32>
    %96 = tpu.matmul %93, %95, %cst_89 {dimension_numbers = #tpu.dot_dimension_numbers<[1], [0], [0], [1], [0, 0, 1, 1], [], []>} : vector<32x256xf32>, vector<256x256xf32>, vector<32x256xf32> -> vector<32x256xf32>
    %97 = arith.addf %91, %96 : vector<32x256xf32>
    %98 = vector.broadcast %32 : vector<1x256xf32> to vector<32x256xf32>
    %99 = arith.addf %97, %98 : vector<32x256xf32>
    %c0_90 = arith.constant 0 : index
    %c0_91 = arith.constant 0 : index
    %100 = vector.load %arg7[%c0_90, %c0_91] : memref<1x256xf32, #tpu.memory_space<vmem>>, vector<1x256xf32>
    %c0_92 = arith.constant 0 : index
    %c0_93 = arith.constant 0 : index
    %101 = vector.load %arg8[%c0_92, %c0_93] : memref<1x256xf32, #tpu.memory_space<vmem>>, vector<1x256xf32>
    %cst_94 = arith.constant dense<0.000000e+00> : vector<256xf32>
    %102 = vector.multi_reduction <add>, %99, %cst_94 [0] : vector<32x256xf32> to vector<256xf32>
    %103 = vector.shape_cast %102 : vector<256xf32> to vector<1x256xf32>
    %104 = arith.mulf %99, %99 : vector<32x256xf32>
    %cst_95 = arith.constant dense<0.000000e+00> : vector<256xf32>
    %105 = vector.multi_reduction <add>, %104, %cst_95 [0] : vector<32x256xf32> to vector<256xf32>
    %106 = vector.shape_cast %105 : vector<256xf32> to vector<1x256xf32>
    %107 = tpu.concatenate %103, %106 in 0 : vector<1x256xf32>, vector<1x256xf32> -> vector<2x256xf32>
    %cst_96 = arith.constant dense<0.000000e+00> : vector<2x256xf32>
    %108 = tpu.matmul %107, %0, %cst_96 {dimension_numbers = #tpu.dot_dimension_numbers<[1], [0], [0], [1], [0, 0, 1, 1], [], []>} : vector<2x256xf32>, vector<256x256xf32>, vector<2x256xf32> -> vector<2x256xf32>
    %109 = vector.extract_strided_slice %108 {offsets = [0, 0], sizes = [1, 256], strides = [1, 1]} : vector<2x256xf32> to vector<1x256xf32>
    %110 = vector.extract_strided_slice %108 {offsets = [1, 0], sizes = [1, 256], strides = [1, 1]} : vector<2x256xf32> to vector<1x256xf32>
    %111 = arith.mulf %109, %109 : vector<1x256xf32>
    %112 = arith.subf %110, %111 : vector<1x256xf32>
    %cst_97 = arith.constant 9.99999997E-7 : f32
    %113 = vector.broadcast %cst_97 : f32 to vector<1x256xf32>
    %114 = arith.addf %112, %113 : vector<1x256xf32>
    %115 = math.rsqrt %114 : vector<1x256xf32>
    %116 = arith.mulf %115, %100 : vector<1x256xf32>
    %117 = vector.broadcast %109 : vector<1x256xf32> to vector<32x256xf32>
    %118 = arith.subf %99, %117 : vector<32x256xf32>
    %119 = vector.broadcast %116 : vector<1x256xf32> to vector<32x256xf32>
    %120 = arith.mulf %118, %119 : vector<32x256xf32>
    %121 = vector.broadcast %101 : vector<1x256xf32> to vector<32x256xf32>
    %122 = arith.addf %120, %121 : vector<32x256xf32>
    %123 = arith.negf %122 : vector<32x256xf32>
    %124 = math.exp %123 : vector<32x256xf32>
    %cst_98 = arith.constant 1.000000e+00 : f32
    %125 = vector.broadcast %cst_98 : f32 to vector<32x256xf32>
    %126 = arith.addf %125, %124 : vector<32x256xf32>
    %127 = arith.divf %125, %126 : vector<32x256xf32>
    %128 = arith.mulf %122, %127 : vector<32x256xf32>
    %c0_99 = arith.constant 0 : index
    %c0_100 = arith.constant 0 : index
    %129 = vector.load %arg10[%c0_99, %c0_100] : memref<1x256xf32, #tpu.memory_space<vmem>>, vector<1x256xf32>
    %130 = vector.shape_cast %128 : vector<32x256xf32> to vector<4x8x256xf32>
    %c1_101 = arith.constant 1 : index
    %c1_102 = arith.constant 1 : index
    %c0_103 = arith.constant 0 : index
    %131 = vector.load %arg12[%c1_101, %c1_102, %c0_103] : memref<6x10x256xf32, #tpu.memory_space<vmem>>, vector<4x8x256xf32>
    tpu.vector_store %arg12[%c1_101, %c1_102, %c0_103], %130 {strides = array<i32>} : memref<6x10x256xf32, #tpu.memory_space<vmem>>, vector<4x8x256xf32>,
    %132 = vector.extract_strided_slice %130 {offsets = [0, 0, 0], sizes = [4, 1, 256], strides = [1, 1, 1]} : vector<4x8x256xf32> to vector<4x1x256xf32>
    %c1_104 = arith.constant 1 : index
    %c0_105 = arith.constant 0 : index
    %c0_106 = arith.constant 0 : index
    %133 = vector.load %arg12[%c1_104, %c0_105, %c0_106] : memref<6x10x256xf32, #tpu.memory_space<vmem>>, vector<4x1x256xf32>
    tpu.vector_store %arg12[%c1_104, %c0_105, %c0_106], %132 {strides = array<i32>} : memref<6x10x256xf32, #tpu.memory_space<vmem>>, vector<4x1x256xf32>,
    %134 = vector.extract_strided_slice %130 {offsets = [0, 7, 0], sizes = [4, 1, 256], strides = [1, 1, 1]} : vector<4x8x256xf32> to vector<4x1x256xf32>
    %c1_107 = arith.constant 1 : index
    %c9_108 = arith.constant 9 : index
    %c0_109 = arith.constant 0 : index
    %135 = vector.load %arg12[%c1_107, %c9_108, %c0_109] : memref<6x10x256xf32, #tpu.memory_space<vmem>>, vector<4x1x256xf32>
    tpu.vector_store %arg12[%c1_107, %c9_108, %c0_109], %134 {strides = array<i32>} : memref<6x10x256xf32, #tpu.memory_space<vmem>>, vector<4x1x256xf32>,
    %c1_110 = arith.constant 1 : index
    %c0_111 = arith.constant 0 : index
    %c0_112 = arith.constant 0 : index
    %136 = vector.load %arg12[%c1_110, %c0_111, %c0_112] : memref<6x10x256xf32, #tpu.memory_space<vmem>>, vector<1x10x256xf32>
    %c0_113 = arith.constant 0 : index
    %c0_114 = arith.constant 0 : index
    %c0_115 = arith.constant 0 : index
    %137 = vector.load %arg12[%c0_113, %c0_114, %c0_115] : memref<6x10x256xf32, #tpu.memory_space<vmem>>, vector<1x10x256xf32>
    tpu.vector_store %arg12[%c0_113, %c0_114, %c0_115], %136 {strides = array<i32>} : memref<6x10x256xf32, #tpu.memory_space<vmem>>, vector<1x10x256xf32>,
    %c4_116 = arith.constant 4 : index
    %c0_117 = arith.constant 0 : index
    %c0_118 = arith.constant 0 : index
    %138 = vector.load %arg12[%c4_116, %c0_117, %c0_118] : memref<6x10x256xf32, #tpu.memory_space<vmem>>, vector<1x10x256xf32>
    %c5_119 = arith.constant 5 : index
    %c0_120 = arith.constant 0 : index
    %c0_121 = arith.constant 0 : index
    %139 = vector.load %arg12[%c5_119, %c0_120, %c0_121] : memref<6x10x256xf32, #tpu.memory_space<vmem>>, vector<1x10x256xf32>
    tpu.vector_store %arg12[%c5_119, %c0_120, %c0_121], %138 {strides = array<i32>} : memref<6x10x256xf32, #tpu.memory_space<vmem>>, vector<1x10x256xf32>,
    %cst_122 = arith.constant 0.000000e+00 : f32
    %140 = vector.broadcast %cst_122 : f32 to vector<32x256xf32>
    %c0_123 = arith.constant 0 : index
    %c0_124 = arith.constant 0 : index
    %c0_125 = arith.constant 0 : index
    %141 = vector.load %arg12[%c0_123, %c0_124, %c0_125] : memref<6x10x256xf32, #tpu.memory_space<vmem>>, vector<4x8x256xf32>
    %142 = vector.shape_cast %141 : vector<4x8x256xf32> to vector<32x256xf32>
    %c0_126 = arith.constant 0 : index
    %c0_127 = arith.constant 0 : index
    %c0_128 = arith.constant 0 : index
    %143 = vector.load %arg9[%c0_126, %c0_127, %c0_128] : memref<9x256x256xf32, #tpu.memory_space<vmem>>, vector<1x256x256xf32>
    %144 = vector.shape_cast %143 : vector<1x256x256xf32> to vector<256x256xf32>
    %cst_129 = arith.constant dense<0.000000e+00> : vector<32x256xf32>
    %145 = tpu.matmul %142, %144, %cst_129 {dimension_numbers = #tpu.dot_dimension_numbers<[1], [0], [0], [1], [0, 0, 1, 1], [], []>} : vector<32x256xf32>, vector<256x256xf32>, vector<32x256xf32> -> vector<32x256xf32>
    %146 = arith.addf %140, %145 : vector<32x256xf32>
    %c0_130 = arith.constant 0 : index
    %c1_131 = arith.constant 1 : index
    %c0_132 = arith.constant 0 : index
    %147 = vector.load %arg12[%c0_130, %c1_131, %c0_132] : memref<6x10x256xf32, #tpu.memory_space<vmem>>, vector<4x8x256xf32>
    %148 = vector.shape_cast %147 : vector<4x8x256xf32> to vector<32x256xf32>
    %c1_133 = arith.constant 1 : index
    %c0_134 = arith.constant 0 : index
    %c0_135 = arith.constant 0 : index
    %149 = vector.load %arg9[%c1_133, %c0_134, %c0_135] : memref<9x256x256xf32, #tpu.memory_space<vmem>>, vector<1x256x256xf32>
    %150 = vector.shape_cast %149 : vector<1x256x256xf32> to vector<256x256xf32>
    %cst_136 = arith.constant dense<0.000000e+00> : vector<32x256xf32>
    %151 = tpu.matmul %148, %150, %cst_136 {dimension_numbers = #tpu.dot_dimension_numbers<[1], [0], [0], [1], [0, 0, 1, 1], [], []>} : vector<32x256xf32>, vector<256x256xf32>, vector<32x256xf32> -> vector<32x256xf32>
    %152 = arith.addf %146, %151 : vector<32x256xf32>
    %c0_137 = arith.constant 0 : index
    %c2_138 = arith.constant 2 : index
    %c0_139 = arith.constant 0 : index
    %153 = vector.load %arg12[%c0_137, %c2_138, %c0_139] : memref<6x10x256xf32, #tpu.memory_space<vmem>>, vector<4x8x256xf32>
    %154 = vector.shape_cast %153 : vector<4x8x256xf32> to vector<32x256xf32>
    %c2_140 = arith.constant 2 : index
    %c0_141 = arith.constant 0 : index
    %c0_142 = arith.constant 0 : index
    %155 = vector.load %arg9[%c2_140, %c0_141, %c0_142] : memref<9x256x256xf32, #tpu.memory_space<vmem>>, vector<1x256x256xf32>
    %156 = vector.shape_cast %155 : vector<1x256x256xf32> to vector<256x256xf32>
    %cst_143 = arith.constant dense<0.000000e+00> : vector<32x256xf32>
    %157 = tpu.matmul %154, %156, %cst_143 {dimension_numbers = #tpu.dot_dimension_numbers<[1], [0], [0], [1], [0, 0, 1, 1], [], []>} : vector<32x256xf32>, vector<256x256xf32>, vector<32x256xf32> -> vector<32x256xf32>
    %158 = arith.addf %152, %157 : vector<32x256xf32>
    %c1_144 = arith.constant 1 : index
    %c0_145 = arith.constant 0 : index
    %c0_146 = arith.constant 0 : index
    %159 = vector.load %arg12[%c1_144, %c0_145, %c0_146] : memref<6x10x256xf32, #tpu.memory_space<vmem>>, vector<4x8x256xf32>
    %160 = vector.shape_cast %159 : vector<4x8x256xf32> to vector<32x256xf32>
    %c3_147 = arith.constant 3 : index
    %c0_148 = arith.constant 0 : index
    %c0_149 = arith.constant 0 : index
    %161 = vector.load %arg9[%c3_147, %c0_148, %c0_149] : memref<9x256x256xf32, #tpu.memory_space<vmem>>, vector<1x256x256xf32>
    %162 = vector.shape_cast %161 : vector<1x256x256xf32> to vector<256x256xf32>
    %cst_150 = arith.constant dense<0.000000e+00> : vector<32x256xf32>
    %163 = tpu.matmul %160, %162, %cst_150 {dimension_numbers = #tpu.dot_dimension_numbers<[1], [0], [0], [1], [0, 0, 1, 1], [], []>} : vector<32x256xf32>, vector<256x256xf32>, vector<32x256xf32> -> vector<32x256xf32>
    %164 = arith.addf %158, %163 : vector<32x256xf32>
    %c1_151 = arith.constant 1 : index
    %c1_152 = arith.constant 1 : index
    %c0_153 = arith.constant 0 : index
    %165 = vector.load %arg12[%c1_151, %c1_152, %c0_153] : memref<6x10x256xf32, #tpu.memory_space<vmem>>, vector<4x8x256xf32>
    %166 = vector.shape_cast %165 : vector<4x8x256xf32> to vector<32x256xf32>
    %c4_154 = arith.constant 4 : index
    %c0_155 = arith.constant 0 : index
    %c0_156 = arith.constant 0 : index
    %167 = vector.load %arg9[%c4_154, %c0_155, %c0_156] : memref<9x256x256xf32, #tpu.memory_space<vmem>>, vector<1x256x256xf32>
    %168 = vector.shape_cast %167 : vector<1x256x256xf32> to vector<256x256xf32>
    %cst_157 = arith.constant dense<0.000000e+00> : vector<32x256xf32>
    %169 = tpu.matmul %166, %168, %cst_157 {dimension_numbers = #tpu.dot_dimension_numbers<[1], [0], [0], [1], [0, 0, 1, 1], [], []>} : vector<32x256xf32>, vector<256x256xf32>, vector<32x256xf32> -> vector<32x256xf32>
    %170 = arith.addf %164, %169 : vector<32x256xf32>
    %c1_158 = arith.constant 1 : index
    %c2_159 = arith.constant 2 : index
    %c0_160 = arith.constant 0 : index
    %171 = vector.load %arg12[%c1_158, %c2_159, %c0_160] : memref<6x10x256xf32, #tpu.memory_space<vmem>>, vector<4x8x256xf32>
    %172 = vector.shape_cast %171 : vector<4x8x256xf32> to vector<32x256xf32>
    %c5_161 = arith.constant 5 : index
    %c0_162 = arith.constant 0 : index
    %c0_163 = arith.constant 0 : index
    %173 = vector.load %arg9[%c5_161, %c0_162, %c0_163] : memref<9x256x256xf32, #tpu.memory_space<vmem>>, vector<1x256x256xf32>
    %174 = vector.shape_cast %173 : vector<1x256x256xf32> to vector<256x256xf32>
    %cst_164 = arith.constant dense<0.000000e+00> : vector<32x256xf32>
    %175 = tpu.matmul %172, %174, %cst_164 {dimension_numbers = #tpu.dot_dimension_numbers<[1], [0], [0], [1], [0, 0, 1, 1], [], []>} : vector<32x256xf32>, vector<256x256xf32>, vector<32x256xf32> -> vector<32x256xf32>
    %176 = arith.addf %170, %175 : vector<32x256xf32>
    %c2_165 = arith.constant 2 : index
    %c0_166 = arith.constant 0 : index
    %c0_167 = arith.constant 0 : index
    %177 = vector.load %arg12[%c2_165, %c0_166, %c0_167] : memref<6x10x256xf32, #tpu.memory_space<vmem>>, vector<4x8x256xf32>
    %178 = vector.shape_cast %177 : vector<4x8x256xf32> to vector<32x256xf32>
    %c6_168 = arith.constant 6 : index
    %c0_169 = arith.constant 0 : index
    %c0_170 = arith.constant 0 : index
    %179 = vector.load %arg9[%c6_168, %c0_169, %c0_170] : memref<9x256x256xf32, #tpu.memory_space<vmem>>, vector<1x256x256xf32>
    %180 = vector.shape_cast %179 : vector<1x256x256xf32> to vector<256x256xf32>
    %cst_171 = arith.constant dense<0.000000e+00> : vector<32x256xf32>
    %181 = tpu.matmul %178, %180, %cst_171 {dimension_numbers = #tpu.dot_dimension_numbers<[1], [0], [0], [1], [0, 0, 1, 1], [], []>} : vector<32x256xf32>, vector<256x256xf32>, vector<32x256xf32> -> vector<32x256xf32>
    %182 = arith.addf %176, %181 : vector<32x256xf32>
    %c2_172 = arith.constant 2 : index
    %c1_173 = arith.constant 1 : index
    %c0_174 = arith.constant 0 : index
    %183 = vector.load %arg12[%c2_172, %c1_173, %c0_174] : memref<6x10x256xf32, #tpu.memory_space<vmem>>, vector<4x8x256xf32>
    %184 = vector.shape_cast %183 : vector<4x8x256xf32> to vector<32x256xf32>
    %c7_175 = arith.constant 7 : index
    %c0_176 = arith.constant 0 : index
    %c0_177 = arith.constant 0 : index
    %185 = vector.load %arg9[%c7_175, %c0_176, %c0_177] : memref<9x256x256xf32, #tpu.memory_space<vmem>>, vector<1x256x256xf32>
    %186 = vector.shape_cast %185 : vector<1x256x256xf32> to vector<256x256xf32>
    %cst_178 = arith.constant dense<0.000000e+00> : vector<32x256xf32>
    %187 = tpu.matmul %184, %186, %cst_178 {dimension_numbers = #tpu.dot_dimension_numbers<[1], [0], [0], [1], [0, 0, 1, 1], [], []>} : vector<32x256xf32>, vector<256x256xf32>, vector<32x256xf32> -> vector<32x256xf32>
    %188 = arith.addf %182, %187 : vector<32x256xf32>
    %c2_179 = arith.constant 2 : index
    %c2_180 = arith.constant 2 : index
    %c0_181 = arith.constant 0 : index
    %189 = vector.load %arg12[%c2_179, %c2_180, %c0_181] : memref<6x10x256xf32, #tpu.memory_space<vmem>>, vector<4x8x256xf32>
    %190 = vector.shape_cast %189 : vector<4x8x256xf32> to vector<32x256xf32>
    %c8_182 = arith.constant 8 : index
    %c0_183 = arith.constant 0 : index
    %c0_184 = arith.constant 0 : index
    %191 = vector.load %arg9[%c8_182, %c0_183, %c0_184] : memref<9x256x256xf32, #tpu.memory_space<vmem>>, vector<1x256x256xf32>
    %192 = vector.shape_cast %191 : vector<1x256x256xf32> to vector<256x256xf32>
    %cst_185 = arith.constant dense<0.000000e+00> : vector<32x256xf32>
    %193 = tpu.matmul %190, %192, %cst_185 {dimension_numbers = #tpu.dot_dimension_numbers<[1], [0], [0], [1], [0, 0, 1, 1], [], []>} : vector<32x256xf32>, vector<256x256xf32>, vector<32x256xf32> -> vector<32x256xf32>
    %194 = arith.addf %188, %193 : vector<32x256xf32>
    %195 = vector.broadcast %129 : vector<1x256xf32> to vector<32x256xf32>
    %196 = arith.addf %194, %195 : vector<32x256xf32>
    %197 = arith.addf %2, %196 : vector<32x256xf32>
    %c0_186 = arith.constant 0 : index
    %c0_187 = arith.constant 0 : index
    %c0_188 = arith.constant 0 : index
    %198 = vector.load %arg11[%c0_186, %c0_187, %c0_188] : memref<1x32x256xf32, #tpu.memory_space<vmem>>, vector<1x32x256xf32>
    %199 = vector.shape_cast %198 : vector<1x32x256xf32> to vector<32x256xf32>
    %200 = vector.shape_cast %197 : vector<32x256xf32> to vector<1x32x256xf32>
    tpu.vector_store %arg11[%c0_186, %c0_187, %c0_188], %200 {strides = array<i32>} : memref<1x32x256xf32, #tpu.memory_space<vmem>>, vector<1x32x256xf32>,
    return
  }
  func.func @transform_0(%arg0: i32) -> (i32, i32, i32) {
    %c0_i32 = arith.constant 0 : i32
    %c0_i32_0 = arith.constant 0 : i32
    %c0_i32_1 = arith.constant 0 : i32
    return %arg0, %c0_i32, %c0_i32_0 : i32, i32, i32
  }
  func.func @transform_1(%arg0: i32) -> (i32, i32) {
    %c0_i32 = arith.constant 0 : i32
    %c0_i32_0 = arith.constant 0 : i32
    %c0_i32_1 = arith.constant 0 : i32
    return %c0_i32, %c0_i32_0 : i32, i32
  }
  func.func @transform_2(%arg0: i32) -> (i32, i32) {
    %c0_i32 = arith.constant 0 : i32
    %c0_i32_0 = arith.constant 0 : i32
    %c0_i32_1 = arith.constant 0 : i32
    return %c0_i32, %c0_i32_0 : i32, i32
  }
  func.func @transform_3(%arg0: i32) -> (i32, i32) {
    %c0_i32 = arith.constant 0 : i32
    %c0_i32_0 = arith.constant 0 : i32
    %c0_i32_1 = arith.constant 0 : i32
    return %c0_i32, %c0_i32_0 : i32, i32
  }
  func.func @transform_4(%arg0: i32) -> (i32, i32, i32) {
    %c0_i32 = arith.constant 0 : i32
    %c0_i32_0 = arith.constant 0 : i32
    %c0_i32_1 = arith.constant 0 : i32
    %c0_i32_2 = arith.constant 0 : i32
    return %c0_i32, %c0_i32_0, %c0_i32_1 : i32, i32, i32
  }
  func.func @transform_5(%arg0: i32) -> (i32, i32) {
    %c0_i32 = arith.constant 0 : i32
    %c0_i32_0 = arith.constant 0 : i32
    %c0_i32_1 = arith.constant 0 : i32
    return %c0_i32, %c0_i32_0 : i32, i32
  }
  func.func @transform_6(%arg0: i32) -> (i32, i32) {
    %c0_i32 = arith.constant 0 : i32
    %c0_i32_0 = arith.constant 0 : i32
    %c0_i32_1 = arith.constant 0 : i32
    return %c0_i32, %c0_i32_0 : i32, i32
  }
  func.func @transform_7(%arg0: i32) -> (i32, i32) {
    %c0_i32 = arith.constant 0 : i32
    %c0_i32_0 = arith.constant 0 : i32
    %c0_i32_1 = arith.constant 0 : i32
    return %c0_i32, %c0_i32_0 : i32, i32
  }
  func.func @transform_8(%arg0: i32) -> (i32, i32, i32) {
    %c0_i32 = arith.constant 0 : i32
    %c0_i32_0 = arith.constant 0 : i32
    %c0_i32_1 = arith.constant 0 : i32
    %c0_i32_2 = arith.constant 0 : i32
    return %c0_i32, %c0_i32_0, %c0_i32_1 : i32, i32, i32
  }
  func.func @transform_9(%arg0: i32) -> (i32, i32) {
    %c0_i32 = arith.constant 0 : i32
    %c0_i32_0 = arith.constant 0 : i32
    %c0_i32_1 = arith.constant 0 : i32
    return %c0_i32, %c0_i32_0 : i32, i32
  }
  func.func @transform_10(%arg0: i32) -> (i32, i32, i32) {
    %c0_i32 = arith.constant 0 : i32
    %c0_i32_0 = arith.constant 0 : i32
    %c0_i32_1 = arith.constant 0 : i32
    return %arg0, %c0_i32, %c0_i32_0 : i32, i32, i32
  }
}

</mosaic_0001>

<llo_original>
// kernel: tpu_custom_call.1
$region0: #{tpu_custom_call.1}
  #allocation0 [shape = 'u32[]', space=smem, size = 0x4, offset = 0x4, fixed_abs, tag = 'smem constant byte address 0x4 - core index']
  #allocation1 [shape = 'u32[144,128]{1,0:T(1,128)}', space=vmem, size = 0x12000, scoped, tag = 'internal scratch']
  #allocation2 [shape = 'f32[6,10,256]{2,1,0:T(8,128)}', space=vmem, size = 0x18000, scoped, tag = 'scratch operand']
  %s0 = inlined_call_operand.hbm [shape: f32[2,32,256], index: 0, kind: input, shape index: {}]
  %s1 = inlined_call_operand.hbm [shape: f32[256,256], index: 1, kind: input, shape index: {}]
  %s2 = inlined_call_operand.hbm [shape: f32[1,256], index: 2, kind: input, shape index: {}]
  %s3 = inlined_call_operand.hbm [shape: f32[1,256], index: 3, kind: input, shape index: {}]
  %s4 = inlined_call_operand.hbm [shape: f32[9,256,256], index: 4, kind: input, shape index: {}]
  %s5 = inlined_call_operand.hbm [shape: f32[1,256], index: 5, kind: input, shape index: {}]
  %s6 = inlined_call_operand.hbm [shape: f32[1,256], index: 6, kind: input, shape index: {}]
  %s7 = inlined_call_operand.hbm [shape: f32[1,256], index: 7, kind: input, shape index: {}]
  %s8 = inlined_call_operand.hbm [shape: f32[9,256,256], index: 8, kind: input, shape index: {}]
  %s9 = inlined_call_operand.hbm [shape: f32[1,256], index: 9, kind: input, shape index: {}]
  %s10 = inlined_call_operand.hbm [shape: f32[2,32,256], index: 10, kind: output, shape index: {}]
  %s11 = sld [smem:[#allocation0]]
  $region113: #{tpu_custom_call.1} parent=0
    _
  %s13 = ssub.s32 1, %s11
  %s14 = scalar_select 0, %s13, %s11
  $region1: #{tpu_custom_call.1} parent=0
    #allocation3 [shape = 'u8[65536]{0}', space=vmem, size = 0x10000, scoped, tag = 'input window, operand 0']
    #allocation4 [shape = 's32[2]{0}', space=sflag, size = 0x8, scoped, tag = 'scoped memory for tpu_custom_call.1']
    #allocation5 [shape = 's32[2]{0}', space=sflag, size = 0x8, scoped, tag = 'scoped memory for tpu_custom_call.1']
    #allocation6 [shape = 'u8[262144]{0}', space=vmem, size = 0x40000, scoped, tag = 'input window, operand 1, single buffered']
    #allocation7 [shape = 's32[1]{0}', space=sflag, size = 0x4, scoped, tag = 'scoped memory for tpu_custom_call.1']
    #allocation8 [shape = 'u8[1024]{0}', space=vmem, size = 0x400, scoped, tag = 'input window, operand 2, single buffered']
    #allocation9 [shape = 'u8[1024]{0}', space=vmem, size = 0x400, scoped, tag = 'input window, operand 3, single buffered']
    #allocation10 [shape = 's32[1]{0}', space=sflag, size = 0x4, scoped, tag = 'scoped memory for tpu_custom_call.1']
    #allocation11 [shape = 'u8[2359296]{0}', space=vmem, size = 0x240000, scoped, tag = 'input window, operand 4, single buffered']
    #allocation12 [shape = 'u8[1024]{0}', space=vmem, size = 0x400, scoped, tag = 'input window, operand 5, single buffered']
    #allocation13 [shape = 's32[1]{0}', space=sflag, size = 0x4, scoped, tag = 'scoped memory for tpu_custom_call.1']
    #allocation14 [shape = 'u8[1024]{0}', space=vmem, size = 0x400, scoped, tag = 'input window, operand 6, single buffered']
    #allocation15 [shape = 'u8[1024]{0}', space=vmem, size = 0x400, scoped, tag = 'input window, operand 7, single buffered']
    #allocation16 [shape = 's32[1]{0}', space=sflag, size = 0x4, scoped, tag = 'scoped memory for tpu_custom_call.1']
    #allocation17 [shape = 'u8[2359296]{0}', space=vmem, size = 0x240000, scoped, tag = 'input window, operand 8, single buffered']
    #allocation18 [shape = 'u8[1024]{0}', space=vmem, size = 0x400, scoped, tag = 'input window, operand 9, single buffered']
    #allocation19 [shape = 's32[1]{0}', space=sflag, size = 0x4, scoped, tag = 'scoped memory for tpu_custom_call.1']
    #allocation20 [shape = 'u8[65536]{0}', space=vmem, size = 0x10000, scoped, tag = 'output window, operand 0']
    %15 = vsyncpa [#allocation4], 0
    %s16 = scalar_lea.sflag [#allocation4], 1
    %17 = vsyncpa %s16, 0
    %18 = vsyncpa [#allocation7], 0
    %19 = vsyncpa [#allocation10], 0
    %20 = vsyncpa [#allocation13], 0
    %21 = vsyncpa [#allocation16], 0
    %22 = vsyncpa [#allocation19], 0
    %23 = vsyncpa [#allocation5], 0
    %s24 = scalar_lea.sflag [#allocation5], 1
    %25 = vsyncpa %s24, 0
    loop: start=0, step=1, limit=4
    $region2: #{tpu_custom_call.1} parent=1 // loop_pre_header
      _
    $region3: #{tpu_custom_call.1} parent=1 // loop_header
      %s27 = sphi 0, %s31
      %p28 = scmp.ge.s32.totalorder %s27, 4
      %s37 = sphi 0, %s39
      %s40 = sphi 0, %s37
      %s41 = sphi 0, %s40
      %s57 = sphi 0, %s41
      %s61 = sphi 0, %s61
      %s63 = sphi 0, %s61
      %s64 = sphi 0, %s63
      %s78 = sphi 0, %s64
      %s82 = sphi 0, %s82
      %s84 = sphi 0, %s82
      %s85 = sphi 0, %s84
      %s99 = sphi 0, %s85
      %s103 = sphi 0, %s103
      %s105 = sphi 0, %s103
      %s106 = sphi 0, %s105
      %s120 = sphi 0, %s106
      %s124 = sphi 0, %s124
      %s126 = sphi 0, %s124
      %s127 = sphi 0, %s126
      %s141 = sphi 0, %s127
      %s145 = sphi 0, %s145
      %s147 = sphi 0, %s145
      %s148 = sphi 0, %s147
      %s162 = sphi 0, %s148
      %s166 = sphi 0, %s166
      %s168 = sphi 0, %s166
      %s169 = sphi 0, %s168
      %s183 = sphi 0, %s169
      %s187 = sphi 0, %s187
      %s189 = sphi 0, %s187
      %s190 = sphi 0, %s189
      %s204 = sphi 0, %s190
      %s208 = sphi 0, %s208
      %s210 = sphi 0, %s208
      %s211 = sphi 0, %s210
      %s225 = sphi 0, %s211
      %s229 = sphi 0, %s229
      %s231 = sphi 0, %s229
      %s232 = sphi 0, %s231
      %s246 = sphi 0, %s232
      %s252 = sphi 0, %s254
      %s255 = sphi 0, %s252
      %s256 = sphi 0, %s255
      %s272 = sphi 0, %s256
    $region4: #{tpu_custom_call.1} parent=1 // loop_header_branch
      %30 = sbr.rel (%p28) target = $region8
    $region5: #{tpu_custom_call.1} parent=1 // loop_body
      %s32 = ssub.s32 %s27, 1
      %s33 = ssub.s32 %s27, 2
      %s34 = sadd.s32 %s27, 1
      %s35 = ssub.s32 %s27, %s34
      %p36 = scmp.eq.s32.totalorder %s35, 0
      %s38 = sadd.s32 %s37, 1
      %s39 = scalar_select %p36, %s37, %s38
      %p42 = pneg %p36
      %p43 = scmp.eq.s32.totalorder %s27, 1
      %p44 = por %p42, %p43
      %p45 = scmp.ne.s32.totalorder %s37, %s40
      %p46 = scmp.eq.s32.totalorder %s27, 0
      %p47 = por %p45, %p46
      %p48 = scmp.ne.s32.totalorder %s37, %s40
      %p49 = scmp.eq.s32.totalorder %s32, 1
      %p50 = por %p48, %p49
      %p51 = scmp.ne.s32.totalorder %s40, %s41
      %p52 = scmp.eq.s32.totalorder %s32, 0
      %p53 = por %p51, %p52
      %p54 = scmp.ne.s32.totalorder %s40, %s41
      %p55 = scmp.eq.s32.totalorder %s33, 1
      %p56 = por %p54, %p55
      %p58 = scmp.ne.s32.totalorder %s41, %s57
      %p59 = scmp.eq.s32.totalorder %s33, 0
      %p60 = por %p58, %p59
      %s62 = sadd.s32 %s61, 1
      %p65 = scmp.eq.s32.totalorder %s27, 1
      %p66 = scmp.ne.s32.totalorder %s61, %s63
      %p67 = scmp.eq.s32.totalorder %s27, 0
      %p68 = por %p66, %p67
      %p69 = scmp.ne.s32.totalorder %s61, %s63
      %p70 = scmp.eq.s32.totalorder %s32, 1
      %p71 = por %p69, %p70
      %p72 = scmp.ne.s32.totalorder %s63, %s64
      %p73 = scmp.eq.s32.totalorder %s32, 0
      %p74 = por %p72, %p73
      %p75 = scmp.ne.s32.totalorder %s63, %s64
      %p76 = scmp.eq.s32.totalorder %s33, 1
      %p77 = por %p75, %p76
      %p79 = scmp.ne.s32.totalorder %s64, %s78
      %p80 = scmp.eq.s32.totalorder %s33, 0
      %p81 = por %p79, %p80
      %s83 = sadd.s32 %s82, 1
      %p86 = scmp.eq.s32.totalorder %s27, 1
      %p87 = scmp.ne.s32.totalorder %s82, %s84
      %p88 = scmp.eq.s32.totalorder %s27, 0
      %p89 = por %p87, %p88
      %p90 = scmp.ne.s32.totalorder %s82, %s84
      %p91 = scmp.eq.s32.totalorder %s32, 1
      %p92 = por %p90, %p91
      %p93 = scmp.ne.s32.totalorder %s84, %s85
      %p94 = scmp.eq.s32.totalorder %s32, 0
      %p95 = por %p93, %p94
      %p96 = scmp.ne.s32.totalorder %s84, %s85
      %p97 = scmp.eq.s32.totalorder %s33, 1
      %p98 = por %p96, %p97
      %p100 = scmp.ne.s32.totalorder %s85, %s99
      %p101 = scmp.eq.s32.totalorder %s33, 0
      %p102 = por %p100, %p101
      %s104 = sadd.s32 %s103, 1
      %p107 = scmp.eq.s32.totalorder %s27, 1
      %p108 = scmp.ne.s32.totalorder %s103, %s105
      %p109 = scmp.eq.s32.totalorder %s27, 0
      %p110 = por %p108, %p109
      %p111 = scmp.ne.s32.totalorder %s103, %s105
      %p112 = scmp.eq.s32.totalorder %s32, 1
      %p113 = por %p111, %p112
      %p114 = scmp.ne.s32.totalorder %s105, %s106
      %p115 = scmp.eq.s32.totalorder %s32, 0
      %p116 = por %p114, %p115
      %p117 = scmp.ne.s32.totalorder %s105, %s106
      %p118 = scmp.eq.s32.totalorder %s33, 1
      %p119 = por %p117, %p118
      %p121 = scmp.ne.s32.totalorder %s106, %s120
      %p122 = scmp.eq.s32.totalorder %s33, 0
      %p123 = por %p121, %p122
      %s125 = sadd.s32 %s124, 1
      %p128 = scmp.eq.s32.totalorder %s27, 1
      %p129 = scmp.ne.s32.totalorder %s124, %s126
      %p130 = scmp.eq.s32.totalorder %s27, 0
      %p131 = por %p129, %p130
      %p132 = scmp.ne.s32.totalorder %s124, %s126
      %p133 = scmp.eq.s32.totalorder %s32, 1
      %p134 = por %p132, %p133
      %p135 = scmp.ne.s32.totalorder %s126, %s127
      %p136 = scmp.eq.s32.totalorder %s32, 0
      %p137 = por %p135, %p136
      %p138 = scmp.ne.s32.totalorder %s126, %s127
      %p139 = scmp.eq.s32.totalorder %s33, 1
      %p140 = por %p138, %p139
      %p142 = scmp.ne.s32.totalorder %s127, %s141
      %p143 = scmp.eq.s32.totalorder %s33, 0
      %p144 = por %p142, %p143
      %s146 = sadd.s32 %s145, 1
      %p149 = scmp.eq.s32.totalorder %s27, 1
      %p150 = scmp.ne.s32.totalorder %s145, %s147
      %p151 = scmp.eq.s32.totalorder %s27, 0
      %p152 = por %p150, %p151
      %p153 = scmp.ne.s32.totalorder %s145, %s147
      %p154 = scmp.eq.s32.totalorder %s32, 1
      %p155 = por %p153, %p154
      %p156 = scmp.ne.s32.totalorder %s147, %s148
      %p157 = scmp.eq.s32.totalorder %s32, 0
      %p158 = por %p156, %p157
      %p159 = scmp.ne.s32.totalorder %s147, %s148
      %p160 = scmp.eq.s32.totalorder %s33, 1
      %p161 = por %p159, %p160
      %p163 = scmp.ne.s32.totalorder %s148, %s162
      %p164 = scmp.eq.s32.totalorder %s33, 0
      %p165 = por %p163, %p164
      %s167 = sadd.s32 %s166, 1
      %p170 = scmp.eq.s32.totalorder %s27, 1
      %p171 = scmp.ne.s32.totalorder %s166, %s168
      %p172 = scmp.eq.s32.totalorder %s27, 0
      %p173 = por %p171, %p172
      %p174 = scmp.ne.s32.totalorder %s166, %s168
      %p175 = scmp.eq.s32.totalorder %s32, 1
      %p176 = por %p174, %p175
      %p177 = scmp.ne.s32.totalorder %s168, %s169
      %p178 = scmp.eq.s32.totalorder %s32, 0
      %p179 = por %p177, %p178
      %p180 = scmp.ne.s32.totalorder %s168, %s169
      %p181 = scmp.eq.s32.totalorder %s33, 1
      %p182 = por %p180, %p181
      %p184 = scmp.ne.s32.totalorder %s169, %s183
      %p185 = scmp.eq.s32.totalorder %s33, 0
      %p186 = por %p184, %p185
      %s188 = sadd.s32 %s187, 1
      %p191 = scmp.eq.s32.totalorder %s27, 1
      %p192 = scmp.ne.s32.totalorder %s187, %s189
      %p193 = scmp.eq.s32.totalorder %s27, 0
      %p194 = por %p192, %p193
      %p195 = scmp.ne.s32.totalorder %s187, %s189
      %p196 = scmp.eq.s32.totalorder %s32, 1
      %p197 = por %p195, %p196
      %p198 = scmp.ne.s32.totalorder %s189, %s190
      %p199 = scmp.eq.s32.totalorder %s32, 0
      %p200 = por %p198, %p199
      %p201 = scmp.ne.s32.totalorder %s189, %s190
      %p202 = scmp.eq.s32.totalorder %s33, 1
      %p203 = por %p201, %p202
      %p205 = scmp.ne.s32.totalorder %s190, %s204
      %p206 = scmp.eq.s32.totalorder %s33, 0
      %p207 = por %p205, %p206
      %s209 = sadd.s32 %s208, 1
      %p212 = scmp.eq.s32.totalorder %s27, 1
      %p213 = scmp.ne.s32.totalorder %s208, %s210
      %p214 = scmp.eq.s32.totalorder %s27, 0
      %p215 = por %p213, %p214
      %p216 = scmp.ne.s32.totalorder %s208, %s210
      %p217 = scmp.eq.s32.totalorder %s32, 1
      %p218 = por %p216, %p217
      %p219 = scmp.ne.s32.totalorder %s210, %s211
      %p220 = scmp.eq.s32.totalorder %s32, 0
      %p221 = por %p219, %p220
      %p222 = scmp.ne.s32.totalorder %s210, %s211
      %p223 = scmp.eq.s32.totalorder %s33, 1
      %p224 = por %p222, %p223
      %p226 = scmp.ne.s32.totalorder %s211, %s225
      %p227 = scmp.eq.s32.totalorder %s33, 0
      %p228 = por %p226, %p227
      %s230 = sadd.s32 %s229, 1
      %p233 = scmp.eq.s32.totalorder %s27, 1
      %p234 = scmp.ne.s32.totalorder %s229, %s231
      %p235 = scmp.eq.s32.totalorder %s27, 0
      %p236 = por %p234, %p235
      %p237 = scmp.ne.s32.totalorder %s229, %s231
      %p238 = scmp.eq.s32.totalorder %s32, 1
      %p239 = por %p237, %p238
      %p240 = scmp.ne.s32.totalorder %s231, %s232
      %p241 = scmp.eq.s32.totalorder %s32, 0
      %p242 = por %p240, %p241
      %p243 = scmp.ne.s32.totalorder %s231, %s232
      %p244 = scmp.eq.s32.totalorder %s33, 1
      %p245 = por %p243, %p244
      %p247 = scmp.ne.s32.totalorder %s232, %s246
      %p248 = scmp.eq.s32.totalorder %s33, 0
      %p249 = por %p247, %p248
      %s250 = ssub.s32 %s27, %s34
      %p251 = scmp.eq.s32.totalorder %s250, 0
      %s253 = sadd.s32 %s252, 1
      %s254 = scalar_select %p251, %s252, %s253
      %p257 = pneg %p251
      %p258 = scmp.eq.s32.totalorder %s27, 1
      %p259 = por %p257, %p258
      %p260 = scmp.ne.s32.totalorder %s252, %s255
      %p261 = scmp.eq.s32.totalorder %s27, 0
      %p262 = por %p260, %p261
      %p263 = scmp.ne.s32.totalorder %s252, %s255
      %p264 = scmp.eq.s32.totalorder %s32, 1
      %p265 = por %p263, %p264
      %p266 = scmp.ne.s32.totalorder %s255, %s256
      %p267 = scmp.eq.s32.totalorder %s32, 0
      %p268 = por %p266, %p267
      %p269 = scmp.ne.s32.totalorder %s255, %s256
      %p270 = scmp.eq.s32.totalorder %s33, 1
      %p271 = por %p269, %p270
      %p273 = scmp.ne.s32.totalorder %s256, %s272
      %p274 = scmp.eq.s32.totalorder %s33, 0
      %p275 = por %p273, %p274
      %p276 = scmp.le.s32.totalorder 1, %s27
      %p277 = scmp.lt.s32.totalorder %s27, 3
      %p278 = pnand %p276, %p277
      %p279 = pneg %p278
      // Predicated region
      $region9: #{tpu_custom_call.1} parent=5 // pred_check
        _
      $region10: #{tpu_custom_call.1} parent=5 // pred_check_branch
        %281 = sbr.rel (%p278) target = $region12
      $region11: #{tpu_custom_call.1} parent=5 // pred_region
        %s282 = ssub.s32 %s27, 1
        // Predicated region
        $region13: #{tpu_custom_call.1} parent=11 // pred_check
          %p283 = pneg %p74
        $region14: #{tpu_custom_call.1} parent=11 // pred_check_branch
          %285 = sbr.rel (%p283) target = $region16
        $region15: #{tpu_custom_call.1} parent=11 // pred_region
          %s287 = ssub.s32 8192, 8192
          %288 = vsyncadd [#allocation7], %s287
          %s289 = sshll.u32 [#allocation6], 4
          %s290 = int_to_ptr.vmem [resolvable:$true] %s289
          %295 = dma.hbm_to_vmem [thread:$0]  %s1, 8192, %s290, [#allocation7], 256, 256, 16
        $region16: #{tpu_custom_call.1} parent=11 // pred_fallthru
          _
        // Predicated region
        $region17: #{tpu_custom_call.1} parent=11 // pred_check
          %p296 = pneg %p95
        $region18: #{tpu_custom_call.1} parent=11 // pred_check_branch
          %298 = sbr.rel (%p296) target = $region20
        $region19: #{tpu_custom_call.1} parent=11 // pred_region
          %s300 = ssub.s32 32, 32
          %301 = vsyncadd [#allocation7], %s300
          %s303 = sshll.u32 [#allocation8], 4
          %s304 = int_to_ptr.vmem [resolvable:$true] %s303
          %306 = dma.hbm_to_vmem [thread:$0]  %s2, 32, %s304, [#allocation7]
        $region20: #{tpu_custom_call.1} parent=11 // pred_fallthru
          _
        // Predicated region
        $region21: #{tpu_custom_call.1} parent=11 // pred_check
          %p307 = pneg %p116
        $region22: #{tpu_custom_call.1} parent=11 // pred_check_branch
          %309 = sbr.rel (%p307) target = $region24
        $region23: #{tpu_custom_call.1} parent=11 // pred_region
          %s311 = ssub.s32 32, 32
          %312 = vsyncadd [#allocation10], %s311
          %s314 = sshll.u32 [#allocation9], 4
          %s315 = int_to_ptr.vmem [resolvable:$true] %s314
          %317 = dma.hbm_to_vmem [thread:$0]  %s3, 32, %s315, [#allocation10]
        $region24: #{tpu_custom_call.1} parent=11 // pred_fallthru
          _
        // Predicated region
        $region25: #{tpu_custom_call.1} parent=11 // pred_check
          %p318 = pneg %p137
        $region26: #{tpu_custom_call.1} parent=11 // pred_check_branch
          %320 = sbr.rel (%p318) target = $region28
        $region27: #{tpu_custom_call.1} parent=11 // pred_region
          %s322 = ssub.s32 73728, 73728
          %323 = vsyncadd [#allocation10], %s322
          %s324 = sshll.u32 [#allocation11], 4
          %s325 = int_to_ptr.vmem [resolvable:$true] %s324
          %330 = dma.hbm_to_vmem [thread:$0]  %s4, 73728, %s325, [#allocation10], 256, 256, 16
        $region28: #{tpu_custom_call.1} parent=11 // pred_fallthru
          _
        // Predicated region
        $region29: #{tpu_custom_call.1} parent=11 // pred_check
          %p331 = pneg %p158
        $region30: #{tpu_custom_call.1} parent=11 // pred_check_branch
          %333 = sbr.rel (%p331) target = $region32
        $region31: #{tpu_custom_call.1} parent=11 // pred_region
          %s335 = ssub.s32 32, 32
          %336 = vsyncadd [#allocation13], %s335
          %s338 = sshll.u32 [#allocation12], 4
          %s339 = int_to_ptr.vmem [resolvable:$true] %s338
          %341 = dma.hbm_to_vmem [thread:$0]  %s5, 32, %s339, [#allocation13]
        $region32: #{tpu_custom_call.1} parent=11 // pred_fallthru
          _
        // Predicated region
        $region33: #{tpu_custom_call.1} parent=11 // pred_check
          %p342 = pneg %p179
        $region34: #{tpu_custom_call.1} parent=11 // pred_check_branch
          %344 = sbr.rel (%p342) target = $region36
        $region35: #{tpu_custom_call.1} parent=11 // pred_region
          %s346 = ssub.s32 32, 32
          %347 = vsyncadd [#allocation13], %s346
          %s349 = sshll.u32 [#allocation14], 4
          %s350 = int_to_ptr.vmem [resolvable:$true] %s349
          %352 = dma.hbm_to_vmem [thread:$0]  %s6, 32, %s350, [#allocation13]
        $region36: #{tpu_custom_call.1} parent=11 // pred_fallthru
          _
        // Predicated region
        $region37: #{tpu_custom_call.1} parent=11 // pred_check
          %p353 = pneg %p200
        $region38: #{tpu_custom_call.1} parent=11 // pred_check_branch
          %355 = sbr.rel (%p353) target = $region40
        $region39: #{tpu_custom_call.1} parent=11 // pred_region
          %s357 = ssub.s32 32, 32
          %358 = vsyncadd [#allocation16], %s357
          %s360 = sshll.u32 [#allocation15], 4
          %s361 = int_to_ptr.vmem [resolvable:$true] %s360
          %363 = dma.hbm_to_vmem [thread:$0]  %s7, 32, %s361, [#allocation16]
        $region40: #{tpu_custom_call.1} parent=11 // pred_fallthru
          _
        // Predicated region
        $region41: #{tpu_custom_call.1} parent=11 // pred_check
          %p364 = pneg %p221
        $region42: #{tpu_custom_call.1} parent=11 // pred_check_branch
          %366 = sbr.rel (%p364) target = $region44
        $region43: #{tpu_custom_call.1} parent=11 // pred_region
          %s368 = ssub.s32 73728, 73728
          %369 = vsyncadd [#allocation16], %s368
          %s370 = sshll.u32 [#allocation17], 4
          %s371 = int_to_ptr.vmem [resolvable:$true] %s370
          %376 = dma.hbm_to_vmem [thread:$0]  %s8, 73728, %s371, [#allocation16], 256, 256, 16
        $region44: #{tpu_custom_call.1} parent=11 // pred_fallthru
          _
        // Predicated region
        $region45: #{tpu_custom_call.1} parent=11 // pred_check
          %p377 = pneg %p242
        $region46: #{tpu_custom_call.1} parent=11 // pred_check_branch
          %379 = sbr.rel (%p377) target = $region48
        $region47: #{tpu_custom_call.1} parent=11 // pred_region
          %s381 = ssub.s32 32, 32
          %382 = vsyncadd [#allocation19], %s381
          %s384 = sshll.u32 [#allocation18], 4
          %s385 = int_to_ptr.vmem [resolvable:$true] %s384
          %387 = dma.hbm_to_vmem [thread:$0]  %s9, 32, %s385, [#allocation19]
        $region48: #{tpu_custom_call.1} parent=11 // pred_fallthru
          _
      $region12: #{tpu_custom_call.1} parent=5 // pred_fallthru
        _
      %p388 = scmp.lt.s32.totalorder %s27, 2
      // Predicated region
      $region49: #{tpu_custom_call.1} parent=5 // pred_check
        %p389 = pneg %p388
      $region50: #{tpu_custom_call.1} parent=5 // pred_check_branch
        %391 = sbr.rel (%p389) target = $region52
      $region51: #{tpu_custom_call.1} parent=5 // pred_region
        // Predicated region
        $region53: #{tpu_custom_call.1} parent=51 // pred_check
          %p392 = pneg %p47
        $region54: #{tpu_custom_call.1} parent=51 // pred_check_branch
          %394 = sbr.rel (%p392) target = $region56
        $region55: #{tpu_custom_call.1} parent=51 // pred_region
          %s395 = sand.u32 %s37, 1
          %s396 = scalar_lea.sflag [#allocation4], %s395
          %s397 = sand.u32 %s37, 1
          %s398 = smul.addr %s397, 64
          %s399 = scalar_lea.vmem [#allocation3], %s398
          %s401 = ssub.s32 1024, 1024
          %402 = vsyncadd %s396, %s401
          %s403 = smul.addr %s27, 8
          %s404 = smul.addr %s403, 128
          %s405 = scalar_lea.hbm %s0, %s404
          %s406 = sshll.u32 %s399, 4
          %s407 = int_to_ptr.vmem [resolvable:$true] %s406
          %412 = dma.hbm_to_vmem [thread:$0]  %s405, 1024, %s407, %s396, 256, 256, 16
        $region56: #{tpu_custom_call.1} parent=51 // pred_fallthru
          _
      $region52: #{tpu_custom_call.1} parent=5 // pred_fallthru
        _
      %p413 = scmp.le.s32.totalorder 1, %s27
      %p414 = scmp.lt.s32.totalorder %s27, 3
      %p415 = pnand %p413, %p414
      %p416 = pneg %p415
      // Predicated region
      $region57: #{tpu_custom_call.1} parent=5 // pred_check
        _
      $region58: #{tpu_custom_call.1} parent=5 // pred_check_branch
        %418 = sbr.rel (%p415) target = $region60
      $region59: #{tpu_custom_call.1} parent=5 // pred_region
        %s419 = ssub.s32 %s27, 1
        %s420 = sand.u32 %s40, 1
        %s421 = scalar_lea.sflag [#allocation4], %s420
        %s422 = sand.u32 %s40, 1
        %s423 = smul.addr %s422, 64
        %s424 = scalar_lea.vmem [#allocation3], %s423
        // Predicated region
        $region61: #{tpu_custom_call.1} parent=59 // pred_check
          %p425 = pneg %p53
        $region62: #{tpu_custom_call.1} parent=59 // pred_check_branch
          %427 = sbr.rel (%p425) target = $region64
        $region63: #{tpu_custom_call.1} parent=59 // pred_region
          %428 = dma.done %s421, 1024
        $region64: #{tpu_custom_call.1} parent=59 // pred_fallthru
          _
        // Predicated region
        $region65: #{tpu_custom_call.1} parent=59 // pred_check
          %p429 = pneg %p74
        $region66: #{tpu_custom_call.1} parent=59 // pred_check_branch
          %431 = sbr.rel (%p429) target = $region68
        $region67: #{tpu_custom_call.1} parent=59 // pred_region
          %432 = dma.done [#allocation7], 8192
        $region68: #{tpu_custom_call.1} parent=59 // pred_fallthru
          _
        // Predicated region
        $region69: #{tpu_custom_call.1} parent=59 // pred_check
          %p433 = pneg %p95
        $region70: #{tpu_custom_call.1} parent=59 // pred_check_branch
          %435 = sbr.rel (%p433) target = $region72
        $region71: #{tpu_custom_call.1} parent=59 // pred_region
          %436 = dma.done [#allocation7], 32
        $region72: #{tpu_custom_call.1} parent=59 // pred_fallthru
          _
        // Predicated region
        $region73: #{tpu_custom_call.1} parent=59 // pred_check
          %p437 = pneg %p116
        $region74: #{tpu_custom_call.1} parent=59 // pred_check_branch
          %439 = sbr.rel (%p437) target = $region76
        $region75: #{tpu_custom_call.1} parent=59 // pred_region
          %440 = dma.done [#allocation10], 32
        $region76: #{tpu_custom_call.1} parent=59 // pred_fallthru
          _
        // Predicated region
        $region77: #{tpu_custom_call.1} parent=59 // pred_check
          %p441 = pneg %p137
        $region78: #{tpu_custom_call.1} parent=59 // pred_check_branch
          %443 = sbr.rel (%p441) target = $region80
        $region79: #{tpu_custom_call.1} parent=59 // pred_region
          %444 = dma.done [#allocation10], 73728
        $region80: #{tpu_custom_call.1} parent=59 // pred_fallthru
          _
        // Predicated region
        $region81: #{tpu_custom_call.1} parent=59 // pred_check
          %p445 = pneg %p158
        $region82: #{tpu_custom_call.1} parent=59 // pred_check_branch
          %447 = sbr.rel (%p445) target = $region84
        $region83: #{tpu_custom_call.1} parent=59 // pred_region
          %448 = dma.done [#allocation13], 32
        $region84: #{tpu_custom_call.1} parent=59 // pred_fallthru
          _
        // Predicated region
        $region85: #{tpu_custom_call.1} parent=59 // pred_check
          %p449 = pneg %p179
        $region86: #{tpu_custom_call.1} parent=59 // pred_check_branch
          %451 = sbr.rel (%p449) target = $region88
        $region87: #{tpu_custom_call.1} parent=59 // pred_region
          %452 = dma.done [#allocation13], 32
        $region88: #{tpu_custom_call.1} parent=59 // pred_fallthru
          _
        // Predicated region
        $region89: #{tpu_custom_call.1} parent=59 // pred_check
          %p453 = pneg %p200
        $region90: #{tpu_custom_call.1} parent=59 // pred_check_branch
          %455 = sbr.rel (%p453) target = $region92
        $region91: #{tpu_custom_call.1} parent=59 // pred_region
          %456 = dma.done [#allocation16], 32
        $region92: #{tpu_custom_call.1} parent=59 // pred_fallthru
          _
        // Predicated region
        $region93: #{tpu_custom_call.1} parent=59 // pred_check
          %p457 = pneg %p221
        $region94: #{tpu_custom_call.1} parent=59 // pred_check_branch
          %459 = sbr.rel (%p457) target = $region96
        $region95: #{tpu_custom_call.1} parent=59 // pred_region
          %460 = dma.done [#allocation16], 73728
        $region96: #{tpu_custom_call.1} parent=59 // pred_fallthru
          _
        // Predicated region
        $region97: #{tpu_custom_call.1} parent=59 // pred_check
          %p461 = pneg %p242
        $region98: #{tpu_custom_call.1} parent=59 // pred_check_branch
          %463 = sbr.rel (%p461) target = $region100
        $region99: #{tpu_custom_call.1} parent=59 // pred_region
          %464 = dma.done [#allocation19], 32
        $region100: #{tpu_custom_call.1} parent=59 // pred_fallthru
          _
        %s465 = sand.u32 %s40, 1
        %s466 = scalar_lea.sflag [#allocation4], %s465
        %s467 = sand.u32 %s40, 1
        %s468 = smul.addr %s467, 64
        %s469 = scalar_lea.vmem [#allocation3], %s468
        %p470 = pneg %p53
        %p471 = pneg %p50
        %p472 = pneg %p74
        %p473 = pneg %p71
        %p474 = pneg %p95
        %p475 = pneg %p92
        %p476 = pneg %p116
        %p477 = pneg %p113
        %p478 = pneg %p137
        %p479 = pneg %p134
        %p480 = pneg %p158
        %p481 = pneg %p155
        %p482 = pneg %p179
        %p483 = pneg %p176
        %p484 = pneg %p200
        %p485 = pneg %p197
        %p486 = pneg %p221
        %p487 = pneg %p218
        %p488 = pneg %p242
        %p489 = pneg %p239
        %p490 = pneg %p268
        %p491 = pneg %p265
        %s492 = sand.u32 %s255, 1
        %s493 = scalar_lea.sflag [#allocation5], %s492
        %s494 = sand.u32 %s255, 1
        %s495 = smul.addr %s494, 64
        %s496 = scalar_lea.vmem [#allocation20], %s495
        %v497 = vld [vmem:[#allocation6] sm:$0xff]
        %v498 = vld [vmem:[#allocation6 + $0x8] sm:$0xff]
        %v499 = vld [vmem:[#allocation6 + $0x10] sm:$0xff]
        %v500 = vld [vmem:[#allocation6 + $0x18] sm:$0xff]
        %v501 = vld [vmem:[#allocation6 + $0x20] sm:$0xff]
        %v502 = vld [vmem:[#allocation6 + $0x28] sm:$0xff]
        %v503 = vld [vmem:[#allocation6 + $0x30] sm:$0xff]
        %v504 = vld [vmem:[#allocation6 + $0x38] sm:$0xff]
        %v505 = vld [vmem:[#allocation6 + $0x40] sm:$0xff]
        %v506 = vld [vmem:[#allocation6 + $0x48] sm:$0xff]
        %v507 = vld [vmem:[#allocation6 + $0x50] sm:$0xff]
        %v508 = vld [vmem:[#allocation6 + $0x58] sm:$0xff]
        %v509 = vld [vmem:[#allocation6 + $0x60] sm:$0xff]
        %v510 = vld [vmem:[#allocation6 + $0x68] sm:$0xff]
        %v511 = vld [vmem:[#allocation6 + $0x70] sm:$0xff]
        %v512 = vld [vmem:[#allocation6 + $0x78] sm:$0xff]
        %v513 = vld [vmem:[#allocation6 + $0x80] sm:$0xff]
        %v514 = vld [vmem:[#allocation6 + $0x88] sm:$0xff]
        %v515 = vld [vmem:[#allocation6 + $0x90] sm:$0xff]
        %v516 = vld [vmem:[#allocation6 + $0x98] sm:$0xff]
        %v517 = vld [vmem:[#allocation6 + $0xa0] sm:$0xff]
        %v518 = vld [vmem:[#allocation6 + $0xa8] sm:$0xff]
        %v519 = vld [vmem:[#allocation6 + $0xb0] sm:$0xff]
        %v520 = vld [vmem:[#allocation6 + $0xb8] sm:$0xff]
        %v521 = vld [vmem:[#allocation6 + $0xc0] sm:$0xff]
        %v522 = vld [vmem:[#allocation6 + $0xc8] sm:$0xff]
        %v523 = vld [vmem:[#allocation6 + $0xd0] sm:$0xff]
        %v524 = vld [vmem:[#allocation6 + $0xd8] sm:$0xff]
        %v525 = vld [vmem:[#allocation6 + $0xe0] sm:$0xff]
        %v526 = vld [vmem:[#allocation6 + $0xe8] sm:$0xff]
        %v527 = vld [vmem:[#allocation6 + $0xf0] sm:$0xff]
        %v528 = vld [vmem:[#allocation6 + $0xf8] sm:$0xff]
        %v529 = vld [vmem:[#allocation6 + $0x100] sm:$0xff]
        %v530 = vld [vmem:[#allocation6 + $0x108] sm:$0xff]
        %v531 = vld [vmem:[#allocation6 + $0x110] sm:$0xff]
        %v532 = vld [vmem:[#allocation6 + $0x118] sm:$0xff]
        %v533 = vld [vmem:[#allocation6 + $0x120] sm:$0xff]
        %v534 = vld [vmem:[#allocation6 + $0x128] sm:$0xff]
        %v535 = vld [vmem:[#allocation6 + $0x130] sm:$0xff]
        %v536 = vld [vmem:[#allocation6 + $0x138] sm:$0xff]
        %v537 = vld [vmem:[#allocation6 + $0x140] sm:$0xff]
        %v538 = vld [vmem:[#allocation6 + $0x148] sm:$0xff]
        %v539 = vld [vmem:[#allocation6 + $0x150] sm:$0xff]
        %v540 = vld [vmem:[#allocation6 + $0x158] sm:$0xff]
        %v541 = vld [vmem:[#allocation6 + $0x160] sm:$0xff]
        %v542 = vld [vmem:[#allocation6 + $0x168] sm:$0xff]
        %v543 = vld [vmem:[#allocation6 + $0x170] sm:$0xff]
        %v544 = vld [vmem:[#allocation6 + $0x178] sm:$0xff]
        %v545 = vld [vmem:[#allocation6 + $0x180] sm:$0xff]
        %v546 = vld [vmem:[#allocation6 + $0x188] sm:$0xff]
        %v547 = vld [vmem:[#allocation6 + $0x190] sm:$0xff]
        %v548 = vld [vmem:[#allocation6 + $0x198] sm:$0xff]
        %v549 = vld [vmem:[#allocation6 + $0x1a0] sm:$0xff]
        %v550 = vld [vmem:[#allocation6 + $0x1a8] sm:$0xff]
        %v551 = vld [vmem:[#allocation6 + $0x1b0] sm:$0xff]
        %v552 = vld [vmem:[#allocation6 + $0x1b8] sm:$0xff]
        %v553 = vld [vmem:[#allocation6 + $0x1c0] sm:$0xff]
        %v554 = vld [vmem:[#allocation6 + $0x1c8] sm:$0xff]
        %v555 = vld [vmem:[#allocation6 + $0x1d0] sm:$0xff]
        %v556 = vld [vmem:[#allocation6 + $0x1d8] sm:$0xff]
        %v557 = vld [vmem:[#allocation6 + $0x1e0] sm:$0xff]
        %v558 = vld [vmem:[#allocation6 + $0x1e8] sm:$0xff]
        %v559 = vld [vmem:[#allocation6 + $0x1f0] sm:$0xff]
        %v560 = vld [vmem:[#allocation6 + $0x1f8] sm:$0xff]
        %v561 = vld [vmem:[%s424] sm:$0xff]
        %v562 = vld [vmem:[%s424 + $0x8] sm:$0xff]
        %v563 = vld [vmem:[%s424 + $0x10] sm:$0xff]
        %v564 = vld [vmem:[%s424 + $0x18] sm:$0xff]
        %v565 = vld [vmem:[%s424 + $0x20] sm:$0xff]
        %v566 = vld [vmem:[%s424 + $0x28] sm:$0xff]
        %v567 = vld [vmem:[%s424 + $0x30] sm:$0xff]
        %v568 = vld [vmem:[%s424 + $0x38] sm:$0xff]
        %v569 = vld [vmem:[#allocation8] sm:$0x3]
        %v570 = vld [vmem:[#allocation9] sm:$0x3]
        %v571 = vadd.f32 %v561, %v563
        %v572 = vadd.f32 %v571, %v565
        %v573 = vadd.f32 %v572, %v567
        %v574 = vrot.slane %v573, 4
        %v575 = vadd.f32 %v573, %v574
        %v576 = vrot.slane %v575, 2
        %v577 = vadd.f32 %v575, %v576
        %v578 = vrot.slane %v577, 1
        %v579 = vadd.f32 %v577, %v578
        %v580 = vadd.f32 %v562, %v564
        %v581 = vadd.f32 %v580, %v566
        %v582 = vadd.f32 %v581, %v568
        %v583 = vrot.slane %v582, 4
        %v584 = vadd.f32 %v582, %v583
        %v585 = vrot.slane %v584, 2
        %v586 = vadd.f32 %v584, %v585
        %v587 = vrot.slane %v586, 1
        %v588 = vadd.f32 %v586, %v587
        %v589 = vmul.f32 %v561, %v561
        %v590 = vmul.f32 %v562, %v562
        %v591 = vmul.f32 %v563, %v563
        %v592 = vmul.f32 %v564, %v564
        %v593 = vmul.f32 %v565, %v565
        %v594 = vmul.f32 %v566, %v566
        %v595 = vmul.f32 %v567, %v567
        %v596 = vmul.f32 %v568, %v568
        %v597 = vadd.f32 %v589, %v591
        %v598 = vadd.f32 %v597, %v593
        %v599 = vadd.f32 %v598, %v595
        %v600 = vrot.slane %v599, 4
        %v601 = vadd.f32 %v599, %v600
        %v602 = vrot.slane %v601, 2
        %v603 = vadd.f32 %v601, %v602
        %v604 = vrot.slane %v603, 1
        %v605 = vadd.f32 %v603, %v604
        %v606 = vadd.f32 %v590, %v592
        %v607 = vadd.f32 %v606, %v594
        %v608 = vadd.f32 %v607, %v596
        %v609 = vrot.slane %v608, 4
        %v610 = vadd.f32 %v608, %v609
        %v611 = vrot.slane %v610, 2
        %v612 = vadd.f32 %v610, %v611
        %v613 = vrot.slane %v612, 1
        %v614 = vadd.f32 %v612, %v613
        %vm615 = vcmask 1040384
        %v616 = vsel %vm615, %v579, %v605
        %v617 = vsel %vm615, %v588, %v614
        %618 = vmatprep.subr.mxu0 %v498
        %619 = vmatpush1.msra.mxu0 %v497
        %620 = vmatprep.subr.mxu0 %v500
        %621 = vmatpush1.msra.mxu0 %v499
        %622 = vmatprep.subr.mxu0 %v502
        %623 = vmatpush1.msra.mxu0 %v501
        %624 = vmatprep.subr.mxu0 %v504
        %625 = vmatpush1.msra.mxu0 %v503
        %626 = vmatprep.subr.mxu0 %v506
        %627 = vmatpush1.msra.mxu0 %v505
        %628 = vmatprep.subr.mxu0 %v508
        %629 = vmatpush1.msra.mxu0 %v507
        %630 = vmatprep.subr.mxu0 %v510
        %631 = vmatpush1.msra.mxu0 %v509
        %632 = vmatprep.subr.mxu0 %v512
        %633 = vmatpush1.msra.mxu0 %v511
        %634 = vmatprep.subr.mxu0 %v514
        %635 = vmatpush1.msra.mxu0 %v513
        %636 = vmatprep.subr.mxu0 %v516
        %637 = vmatpush1.msra.mxu0 %v515
        %638 = vmatprep.subr.mxu0 %v518
        %639 = vmatpush1.msra.mxu0 %v517
        %640 = vmatprep.subr.mxu0 %v520
        %641 = vmatpush1.msra.mxu0 %v519
        %642 = vmatprep.subr.mxu0 %v522
        %643 = vmatpush1.msra.mxu0 %v521
        %644 = vmatprep.subr.mxu0 %v524
        %645 = vmatpush1.msra.mxu0 %v523
        %646 = vmatprep.subr.mxu0 %v526
        %647 = vmatpush1.msra.mxu0 %v525
        %648 = vmatprep.subr.mxu0 %v528
        %649 = vmatpush1.msra.mxu0 %v527
        %650 = vmatprep.subr.mxu0 %v530
        %651 = vmatpush1.msra.mxu0 %v529
        %652 = vmatprep.subr.mxu0 %v532
        %653 = vmatpush1.msra.mxu0 %v531
        %654 = vmatprep.subr.mxu0 %v534
        %655 = vmatpush1.msra.mxu0 %v533
        %656 = vmatprep.subr.mxu0 %v536
        %657 = vmatpush1.msra.mxu0 %v535
        %658 = vmatprep.subr.mxu0 %v538
        %659 = vmatpush1.msra.mxu0 %v537
        %660 = vmatprep.subr.mxu0 %v540
        %661 = vmatpush1.msra.mxu0 %v539
        %662 = vmatprep.subr.mxu0 %v542
        %663 = vmatpush1.msra.mxu0 %v541
        %664 = vmatprep.subr.mxu0 %v544
        %665 = vmatpush1.msra.mxu0 %v543
        %666 = vmatprep.subr.mxu0 %v546
        %667 = vmatpush1.msra.mxu0 %v545
        %668 = vmatprep.subr.mxu0 %v548
        %669 = vmatpush1.msra.mxu0 %v547
        %670 = vmatprep.subr.mxu0 %v550
        %671 = vmatpush1.msra.mxu0 %v549
        %672 = vmatprep.subr.mxu0 %v552
        %673 = vmatpush1.msra.mxu0 %v551
        %674 = vmatprep.subr.mxu0 %v554
        %675 = vmatpush1.msra.mxu0 %v553
        %676 = vmatprep.subr.mxu0 %v556
        %677 = vmatpush1.msra.mxu0 %v555
        %678 = vmatprep.subr.mxu0 %v558
        %679 = vmatpush1.msra.mxu0 %v557
        %680 = vmatprep.subr.mxu0 %v560
        %681 = vmatpush1.msra.mxu0 %v559
        %682 = vmatprep.mubr.f32.mxu0 %v617
        %683 = vmatmul.mubr.f32.gmra.mrb[0].mxu0 %v616
        %v684 = vpop.f32.mrb[0].mxu0
        %v685 = vadd.f32 0.0, %v684
        %v686 = vpop.f32.mrb[0].mxu0
        %v687 = vadd.f32 0.0, %v686
        %688 = vdwg.mxu0
        %v689 = vmul.f32 %v685, %v685
        %v690 = vmul.f32 %v687, %v687
        %v693 = vrot.slane %v689, 7
        %v694 = vrot.slane %v690, 7
        %v697 = vsub.f32 %v685, %v693
        %v698 = vsub.f32 %v687, %v694
        %v699 = vadd.f32 %v697, 1e-06
        %v700 = vadd.f32 %v698, 1e-06
        %v701 = vrsqrt.pop %v699
        %v702 = vrsqrt.pop %v700
        %v704 = vlaneseq
        %v705 = vshrl.u32 %v704, 7
        %v706 = vsub.s32 0, %v705
        %v707 = vrot.slane %v569, %v706
        %v708 = vlaneseq
        %v709 = vshrl.u32 %v708, 7
        %v710 = vsub.s32 1, %v709
        %v711 = vrot.slane %v569, %v710
        %v714 = vmul.f32 %v701, %v707
        %v715 = vmul.f32 %v702, %v711
        %v716 = vlaneseq
        %v717 = vshrl.u32 %v716, 7
        %v718 = vsub.s32 0, %v717
        %v719 = vrot.slane %v685, %v718
        %v720 = vlaneseq
        %v721 = vshrl.u32 %v720, 7
        %v722 = vsub.s32 0, %v721
        %v723 = vrot.slane %v687, %v722
        %v724 = vsub.f32 %v561, %v719
        %v725 = vsub.f32 %v562, %v723
        %v726 = vsub.f32 %v563, %v719
        %v727 = vsub.f32 %v564, %v723
        %v728 = vsub.f32 %v565, %v719
        %v729 = vsub.f32 %v566, %v723
        %v730 = vsub.f32 %v567, %v719
        %v731 = vsub.f32 %v568, %v723
        %v732 = vlaneseq
        %v733 = vshrl.u32 %v732, 7
        %v734 = vsub.s32 1, %v733
        %v735 = vrot.slane %v714, %v734
        %v736 = vlaneseq
        %v737 = vshrl.u32 %v736, 7
        %v738 = vsub.s32 1, %v737
        %v739 = vrot.slane %v715, %v738
        %v740 = vmul.f32 %v724, %v735
        %v741 = vmul.f32 %v725, %v739
        %v742 = vmul.f32 %v726, %v735
        %v743 = vmul.f32 %v727, %v739
        %v744 = vmul.f32 %v728, %v735
        %v745 = vmul.f32 %v729, %v739
        %v746 = vmul.f32 %v730, %v735
        %v747 = vmul.f32 %v731, %v739
        %v749 = vlaneseq
        %v750 = vshrl.u32 %v749, 7
        %v751 = vsub.s32 0, %v750
        %v752 = vrot.slane %v570, %v751
        %v753 = vlaneseq
        %v754 = vshrl.u32 %v753, 7
        %v755 = vsub.s32 1, %v754
        %v756 = vrot.slane %v570, %v755
        %v759 = vadd.f32 %v740, %v752
        %v760 = vadd.f32 %v741, %v756
        %v761 = vadd.f32 %v742, %v752
        %v762 = vadd.f32 %v743, %v756
        %v763 = vadd.f32 %v744, %v752
        %v764 = vadd.f32 %v745, %v756
        %v765 = vadd.f32 %v746, %v752
        %v766 = vadd.f32 %v747, %v756
        %v767 = vxor.u32 %v759, 2147483648
        %v768 = vxor.u32 %v760, 2147483648
        %v769 = vxor.u32 %v761, 2147483648
        %v770 = vxor.u32 %v762, 2147483648
        %v771 = vxor.u32 %v763, 2147483648
        %v772 = vxor.u32 %v764, 2147483648
        %v773 = vxor.u32 %v765, 2147483648
        %v774 = vxor.u32 %v766, 2147483648
        %v775 = vmul.f32 %v767, 1.442695
        %v776 = vpow.pop %v775
        %v777 = vmul.f32 %v768, 1.442695
        %v778 = vpow.pop %v777
        %v779 = vmul.f32 %v769, 1.442695
        %v780 = vpow.pop %v779
        %v781 = vmul.f32 %v770, 1.442695
        %v782 = vpow.pop %v781
        %v783 = vmul.f32 %v771, 1.442695
        %v784 = vpow.pop %v783
        %v785 = vmul.f32 %v772, 1.442695
        %v786 = vpow.pop %v785
        %v787 = vmul.f32 %v773, 1.442695
        %v788 = vpow.pop %v787
        %v789 = vmul.f32 %v774, 1.442695
        %v790 = vpow.pop %v789
        %v791 = vadd.f32 %v776, 1.0
        %v792 = vadd.f32 %v778, 1.0
        %v793 = vadd.f32 %v780, 1.0
        %v794 = vadd.f32 %v782, 1.0
        %v795 = vadd.f32 %v784, 1.0
        %v796 = vadd.f32 %v786, 1.0
        %v797 = vadd.f32 %v788, 1.0
        %v798 = vadd.f32 %v790, 1.0
        %v799 = vrcp.pop %v791
        %v800 = vmul.f32 1.0, %v799
        %v801 = vrcp.pop %v792
        %v802 = vmul.f32 1.0, %v801
        %v803 = vrcp.pop %v793
        %v804 = vmul.f32 1.0, %v803
        %v805 = vrcp.pop %v794
        %v806 = vmul.f32 1.0, %v805
        %v807 = vrcp.pop %v795
        %v808 = vmul.f32 1.0, %v807
        %v809 = vrcp.pop %v796
        %v810 = vmul.f32 1.0, %v809
        %v811 = vrcp.pop %v797
        %v812 = vmul.f32 1.0, %v811
        %v813 = vrcp.pop %v798
        %v814 = vmul.f32 1.0, %v813
        %v815 = vmul.f32 %v759, %v800
        %v816 = vmul.f32 %v760, %v802
        %v817 = vmul.f32 %v761, %v804
        %v818 = vmul.f32 %v762, %v806
        %v819 = vmul.f32 %v763, %v808
        %v820 = vmul.f32 %v764, %v810
        %v821 = vmul.f32 %v765, %v812
        %v822 = vmul.f32 %v766, %v814
        %v823 = vld [vmem:[#allocation12] sm:$0x3]
        %v832 = vrot.slane %v815, 7
        %v833 = vrot.slane %v816, 7
        %v834 = vrot.slane %v817, 7
        %v835 = vrot.slane %v818, 7
        %v836 = vrot.slane %v819, 7
        %v837 = vrot.slane %v820, 7
        %v838 = vrot.slane %v821, 7
        %v839 = vrot.slane %v822, 7
        %s848 = scalar_lea.vmem [#allocation2], 32
        %849 = vst [vmem:[%s848] sm:$0xfe] %v832
        %850 = vst [vmem:[%s848 + $0x8] sm:$0xfe] %v833
        %851 = vst [vmem:[%s848 + $0x10] sm:$0x1] %v832
        %852 = vst [vmem:[%s848 + $0x18] sm:$0x1] %v833
        %853 = vst [vmem:[%s848 + $0x20] sm:$0xfe] %v834
        %854 = vst [vmem:[%s848 + $0x28] sm:$0xfe] %v835
        %855 = vst [vmem:[%s848 + $0x30] sm:$0x1] %v834
        %856 = vst [vmem:[%s848 + $0x38] sm:$0x1] %v835
        %857 = vst [vmem:[%s848 + $0x40] sm:$0xfe] %v836
        %858 = vst [vmem:[%s848 + $0x48] sm:$0xfe] %v837
        %859 = vst [vmem:[%s848 + $0x50] sm:$0x1] %v836
        %860 = vst [vmem:[%s848 + $0x58] sm:$0x1] %v837
        %861 = vst [vmem:[%s848 + $0x60] sm:$0xfe] %v838
        %862 = vst [vmem:[%s848 + $0x68] sm:$0xfe] %v839
        %863 = vst [vmem:[%s848 + $0x70] sm:$0x1] %v838
        %864 = vst [vmem:[%s848 + $0x78] sm:$0x1] %v839
        %v865 = vcombine.low %v815, %v816
        %v867 = vunpack.c.l.s4 1966171168
        %v868 = vunpack.c.0.s8 %v867
        %v869 = vlaneseq
        %v870 = vshrl.u32 %v869, 7
        %v871 = vsub.s32 %v868, %v870
        %v872 = vrot.slane %v865, %v871
        %v874 = vunpack.c.l.s4 1966171168
        %v875 = vunpack.c.0.s8 %v874
        %v876 = vlaneseq
        %v877 = vshrl.u32 %v876, 7
        %v878 = vsub.s32 %v875, %v877
        %v879 = vrot.slane %v872, %v878
        %v880 = vcombine.low %v817, %v818
        %v882 = vunpack.c.l.s4 1966171168
        %v883 = vunpack.c.0.s8 %v882
        %v884 = vlaneseq
        %v885 = vshrl.u32 %v884, 7
        %v886 = vsub.s32 %v883, %v885
        %v887 = vrot.slane %v880, %v886
        %v889 = vunpack.c.l.s4 1966171168
        %v890 = vunpack.c.0.s8 %v889
        %v891 = vlaneseq
        %v892 = vshrl.u32 %v891, 7
        %v893 = vsub.s32 %v890, %v892
        %v894 = vrot.slane %v887, %v893
        %v895 = vcombine.low %v819, %v820
        %v897 = vunpack.c.l.s4 1966171168
        %v898 = vunpack.c.0.s8 %v897
        %v899 = vlaneseq
        %v900 = vshrl.u32 %v899, 7
        %v901 = vsub.s32 %v898, %v900
        %v902 = vrot.slane %v895, %v901
        %v904 = vunpack.c.l.s4 1966171168
        %v905 = vunpack.c.0.s8 %v904
        %v906 = vlaneseq
        %v907 = vshrl.u32 %v906, 7
        %v908 = vsub.s32 %v905, %v907
        %v909 = vrot.slane %v902, %v908
        %v910 = vcombine.low %v821, %v822
        %v912 = vunpack.c.l.s4 1966171168
        %v913 = vunpack.c.0.s8 %v912
        %v914 = vlaneseq
        %v915 = vshrl.u32 %v914, 7
        %v916 = vsub.s32 %v913, %v915
        %v917 = vrot.slane %v910, %v916
        %v919 = vunpack.c.l.s4 1966171168
        %v920 = vunpack.c.0.s8 %v919
        %v921 = vlaneseq
        %v922 = vshrl.u32 %v921, 7
        %v923 = vsub.s32 %v920, %v922
        %v924 = vrot.slane %v917, %v923
        %v929 = vlaneseq
        %vm930 = vcmp.ge.s32.totalorder %v929, 0
        %vm931 = vcmp.lt.s32.totalorder %v929, 256
        %vm932 = vmand %vm930, %vm931
        %933 = vst.msk [vmem:[%s848] ss:$8 sm:$0x3] %vm932, %v879
        %934 = vst.msk [vmem:[%s848] ss:$8 sm:$0x0] %vm932, %v879
        %s935 = scalar_lea.vmem %s848, 32 [#allocation2]
        %936 = vst.msk [vmem:[%s935] ss:$8 sm:$0x3] %vm932, %v894
        %937 = vst.msk [vmem:[%s935] ss:$8 sm:$0x0] %vm932, %v894
        %s938 = scalar_lea.vmem %s848, 64 [#allocation2]
        %939 = vst.msk [vmem:[%s938] ss:$8 sm:$0x3] %vm932, %v909
        %940 = vst.msk [vmem:[%s938] ss:$8 sm:$0x0] %vm932, %v909
        %s941 = scalar_lea.vmem %s848, 96 [#allocation2]
        %942 = vst.msk [vmem:[%s941] ss:$8 sm:$0x3] %vm932, %v924
        %943 = vst.msk [vmem:[%s941] ss:$8 sm:$0x0] %vm932, %v924
        %v944 = vcombine.high %v815, %v816
        %v946 = vunpack.c.l.s4 1966171168
        %v947 = vunpack.c.0.s8 %v946
        %v948 = vlaneseq
        %v949 = vshrl.u32 %v948, 7
        %v950 = vsub.s32 %v947, %v949
        %v951 = vrot.slane %v944, %v950
        %v952 = vcombine.high %v951, %v951
        %v954 = vunpack.c.l.s4 1966171168
        %v955 = vunpack.c.0.s8 %v954
        %v956 = vlaneseq
        %v957 = vshrl.u32 %v956, 7
        %v958 = vsub.s32 %v955, %v957
        %v959 = vrot.slane %v952, %v958
        %v960 = vcombine.high %v959, %v959
        %v961 = vcombine.high %v817, %v818
        %v963 = vunpack.c.l.s4 1966171168
        %v964 = vunpack.c.0.s8 %v963
        %v965 = vlaneseq
        %v966 = vshrl.u32 %v965, 7
        %v967 = vsub.s32 %v964, %v966
        %v968 = vrot.slane %v961, %v967
        %v969 = vcombine.high %v968, %v968
        %v971 = vunpack.c.l.s4 1966171168
        %v972 = vunpack.c.0.s8 %v971
        %v973 = vlaneseq
        %v974 = vshrl.u32 %v973, 7
        %v975 = vsub.s32 %v972, %v974
        %v976 = vrot.slane %v969, %v975
        %v977 = vcombine.high %v976, %v976
        %v978 = vcombine.high %v819, %v820
        %v980 = vunpack.c.l.s4 1966171168
        %v981 = vunpack.c.0.s8 %v980
        %v982 = vlaneseq
        %v983 = vshrl.u32 %v982, 7
        %v984 = vsub.s32 %v981, %v983
        %v985 = vrot.slane %v978, %v984
        %v986 = vcombine.high %v985, %v985
        %v988 = vunpack.c.l.s4 1966171168
        %v989 = vunpack.c.0.s8 %v988
        %v990 = vlaneseq
        %v991 = vshrl.u32 %v990, 7
        %v992 = vsub.s32 %v989, %v991
        %v993 = vrot.slane %v986, %v992
        %v994 = vcombine.high %v993, %v993
        %v995 = vcombine.high %v821, %v822
        %v997 = vunpack.c.l.s4 1966171168
        %v998 = vunpack.c.0.s8 %v997
        %v999 = vlaneseq
        %v1000 = vshrl.u32 %v999, 7
        %v1001 = vsub.s32 %v998, %v1000
        %v1002 = vrot.slane %v995, %v1001
        %v1003 = vcombine.high %v1002, %v1002
        %v1005 = vunpack.c.l.s4 1966171168
        %v1006 = vunpack.c.0.s8 %v1005
        %v1007 = vlaneseq
        %v1008 = vshrl.u32 %v1007, 7
        %v1009 = vsub.s32 %v1006, %v1008
        %v1010 = vrot.slane %v1003, %v1009
        %v1011 = vcombine.high %v1010, %v1010
        %s1016 = scalar_lea.vmem %s848, 17 [#allocation2]
        %1017 = vst.msk [vmem:[%s1016] ss:$8 sm:$0x3] %vm932, %v960
        %1018 = vst.msk [vmem:[%s1016] ss:$8 sm:$0x0] %vm932, %v960
        %s1019 = scalar_lea.vmem %s848, 49 [#allocation2]
        %1020 = vst.msk [vmem:[%s1019] ss:$8 sm:$0x3] %vm932, %v977
        %1021 = vst.msk [vmem:[%s1019] ss:$8 sm:$0x0] %vm932, %v977
        %s1022 = scalar_lea.vmem %s848, 81 [#allocation2]
        %1023 = vst.msk [vmem:[%s1022] ss:$8 sm:$0x3] %vm932, %v994
        %1024 = vst.msk [vmem:[%s1022] ss:$8 sm:$0x0] %vm932, %v994
        %s1025 = scalar_lea.vmem %s848, 113 [#allocation2]
        %1026 = vst.msk [vmem:[%s1025] ss:$8 sm:$0x3] %vm932, %v1011
        %1027 = vst.msk [vmem:[%s1025] ss:$8 sm:$0x0] %vm932, %v1011
        %v1028 = vld [vmem:[%s848] sm:$0xff]
        %v1029 = vld [vmem:[%s848 + $0x8] sm:$0xff]
        %v1030 = vld [vmem:[%s848 + $0x10] sm:$0x3]
        %v1031 = vld [vmem:[%s848 + $0x18] sm:$0x3]
        %1032 = vst [vmem:[#allocation2] sm:$0xff] %v1028
        %1033 = vst [vmem:[#allocation2 + $0x8] sm:$0xff] %v1029
        %1034 = vst [vmem:[#allocation2 + $0x10] sm:$0x3] %v1030
        %1035 = vst [vmem:[#allocation2 + $0x18] sm:$0x3] %v1031
        %s1036 = scalar_lea.vmem [#allocation2], 128
        %v1037 = vld [vmem:[%s1036] sm:$0xff]
        %v1038 = vld [vmem:[%s1036 + $0x8] sm:$0xff]
        %v1039 = vld [vmem:[%s1036 + $0x10] sm:$0x3]
        %v1040 = vld [vmem:[%s1036 + $0x18] sm:$0x3]
        %s1041 = scalar_lea.vmem [#allocation2], 160
        %1042 = vst [vmem:[%s1041] sm:$0xff] %v1037
        %1043 = vst [vmem:[%s1041 + $0x8] sm:$0xff] %v1038
        %1044 = vst [vmem:[%s1041 + $0x10] sm:$0x3] %v1039
        %1045 = vst [vmem:[%s1041 + $0x18] sm:$0x3] %v1040
        %v1046 = vld [vmem:[#allocation2] sm:$0xff]
        %v1047 = vld [vmem:[#allocation2 + $0x8] sm:$0xff]
        %v1048 = vld [vmem:[#allocation2 + $0x20] sm:$0xff]
        %v1049 = vld [vmem:[#allocation2 + $0x28] sm:$0xff]
        %v1050 = vld [vmem:[#allocation2 + $0x40] sm:$0xff]
        %v1051 = vld [vmem:[#allocation2 + $0x48] sm:$0xff]
        %v1052 = vld [vmem:[#allocation2 + $0x60] sm:$0xff]
        %v1053 = vld [vmem:[#allocation2 + $0x68] sm:$0xff]
        %v1054 = vld [vmem:[#allocation11] sm:$0xff]
        %v1055 = vld [vmem:[#allocation11 + $0x8] sm:$0xff]
        %v1056 = vld [vmem:[#allocation11 + $0x10] sm:$0xff]
        %v1057 = vld [vmem:[#allocation11 + $0x18] sm:$0xff]
        %v1058 = vld [vmem:[#allocation11 + $0x20] sm:$0xff]
        %v1059 = vld [vmem:[#allocation11 + $0x28] sm:$0xff]
        %v1060 = vld [vmem:[#allocation11 + $0x30] sm:$0xff]
        %v1061 = vld [vmem:[#allocation11 + $0x38] sm:$0xff]
        %v1062 = vld [vmem:[#allocation11 + $0x40] sm:$0xff]
        %v1063 = vld [vmem:[#allocation11 + $0x48] sm:$0xff]
        %v1064 = vld [vmem:[#allocation11 + $0x50] sm:$0xff]
        %v1065 = vld [vmem:[#allocation11 + $0x58] sm:$0xff]
        %v1066 = vld [vmem:[#allocation11 + $0x60] sm:$0xff]
        %v1067 = vld [vmem:[#allocation11 + $0x68] sm:$0xff]
        %v1068 = vld [vmem:[#allocation11 + $0x70] sm:$0xff]
        %v1069 = vld [vmem:[#allocation11 + $0x78] sm:$0xff]
        %v1070 = vld [vmem:[#allocation11 + $0x80] sm:$0xff]
        %v1071 = vld [vmem:[#allocation11 + $0x88] sm:$0xff]
        %v1072 = vld [vmem:[#allocation11 + $0x90] sm:$0xff]
        %v1073 = vld [vmem:[#allocation11 + $0x98] sm:$0xff]
        %v1074 = vld [vmem:[#allocation11 + $0xa0] sm:$0xff]
        %v1075 = vld [vmem:[#allocation11 + $0xa8] sm:$0xff]
        %v1076 = vld [vmem:[#allocation11 + $0xb0] sm:$0xff]
        %v1077 = vld [vmem:[#allocation11 + $0xb8] sm:$0xff]
        %v1078 = vld [vmem:[#allocation11 + $0xc0] sm:$0xff]
        %v1079 = vld [vmem:[#allocation11 + $0xc8] sm:$0xff]
        %v1080 = vld [vmem:[#allocation11 + $0xd0] sm:$0xff]
        %v1081 = vld [vmem:[#allocation11 + $0xd8] sm:$0xff]
        %v1082 = vld [vmem:[#allocation11 + $0xe0] sm:$0xff]
        %v1083 = vld [vmem:[#allocation11 + $0xe8] sm:$0xff]
        %v1084 = vld [vmem:[#allocation11 + $0xf0] sm:$0xff]
        %v1085 = vld [vmem:[#allocation11 + $0xf8] sm:$0xff]
        %v1086 = vld [vmem:[#allocation11 + $0x100] sm:$0xff]
        %v1087 = vld [vmem:[#allocation11 + $0x108] sm:$0xff]
        %v1088 = vld [vmem:[#allocation11 + $0x110] sm:$0xff]
        %v1089 = vld [vmem:[#allocation11 + $0x118] sm:$0xff]
        %v1090 = vld [vmem:[#allocation11 + $0x120] sm:$0xff]
        %v1091 = vld [vmem:[#allocation11 + $0x128] sm:$0xff]
        %v1092 = vld [vmem:[#allocation11 + $0x130] sm:$0xff]
        %v1093 = vld [vmem:[#allocation11 + $0x138] sm:$0xff]
        %v1094 = vld [vmem:[#allocation11 + $0x140] sm:$0xff]
        %v1095 = vld [vmem:[#allocation11 + $0x148] sm:$0xff]
        %v1096 = vld [vmem:[#allocation11 + $0x150] sm:$0xff]
        %v1097 = vld [vmem:[#allocation11 + $0x158] sm:$0xff]
        %v1098 = vld [vmem:[#allocation11 + $0x160] sm:$0xff]
        %v1099 = vld [vmem:[#allocation11 + $0x168] sm:$0xff]
        %v1100 = vld [vmem:[#allocation11 + $0x170] sm:$0xff]
        %v1101 = vld [vmem:[#allocation11 + $0x178] sm:$0xff]
        %v1102 = vld [vmem:[#allocation11 + $0x180] sm:$0xff]
        %v1103 = vld [vmem:[#allocation11 + $0x188] sm:$0xff]
        %v1104 = vld [vmem:[#allocation11 + $0x190] sm:$0xff]
        %v1105 = vld [vmem:[#allocation11 + $0x198] sm:$0xff]
        %v1106 = vld [vmem:[#allocation11 + $0x1a0] sm:$0xff]
        %v1107 = vld [vmem:[#allocation11 + $0x1a8] sm:$0xff]
        %v1108 = vld [vmem:[#allocation11 + $0x1b0] sm:$0xff]
        %v1109 = vld [vmem:[#allocation11 + $0x1b8] sm:$0xff]
        %v1110 = vld [vmem:[#allocation11 + $0x1c0] sm:$0xff]
        %v1111 = vld [vmem:[#allocation11 + $0x1c8] sm:$0xff]
        %v1112 = vld [vmem:[#allocation11 + $0x1d0] sm:$0xff]
        %v1113 = vld [vmem:[#allocation11 + $0x1d8] sm:$0xff]
        %v1114 = vld [vmem:[#allocation11 + $0x1e0] sm:$0xff]
        %v1115 = vld [vmem:[#allocation11 + $0x1e8] sm:$0xff]
        %v1116 = vld [vmem:[#allocation11 + $0x1f0] sm:$0xff]
        %v1117 = vld [vmem:[#allocation11 + $0x1f8] sm:$0xff]
        %v1118 = vld [vmem:[#allocation2] sm:$0xfe]
        %v1119 = vld [vmem:[#allocation2 + $0x8] sm:$0xfe]
        %v1120 = vld [vmem:[#allocation2 + $0x10] sm:$0x1]
        %v1121 = vld [vmem:[#allocation2 + $0x18] sm:$0x1]
        %v1122 = vld [vmem:[#allocation2 + $0x20] sm:$0xfe]
        %v1123 = vld [vmem:[#allocation2 + $0x28] sm:$0xfe]
        %v1124 = vld [vmem:[#allocation2 + $0x30] sm:$0x1]
        %v1125 = vld [vmem:[#allocation2 + $0x38] sm:$0x1]
        %v1126 = vld [vmem:[#allocation2 + $0x40] sm:$0xfe]
        %v1127 = vld [vmem:[#allocation2 + $0x48] sm:$0xfe]
        %v1128 = vld [vmem:[#allocation2 + $0x50] sm:$0x1]
        %v1129 = vld [vmem:[#allocation2 + $0x58] sm:$0x1]
        %v1130 = vld [vmem:[#allocation2 + $0x60] sm:$0xfe]
        %v1131 = vld [vmem:[#allocation2 + $0x68] sm:$0xfe]
        %v1132 = vld [vmem:[#allocation2 + $0x70] sm:$0x1]
        %v1133 = vld [vmem:[#allocation2 + $0x78] sm:$0x1]
        %vm1150 = vcmask 1046528
        %v1151 = vrot.slane %v1118, 1
        %v1152 = vrot.slane %v1120, 1
        %v1153 = vsel %vm1150, %v1151, %v1152
        %v1154 = vrot.slane %v1119, 1
        %v1155 = vrot.slane %v1121, 1
        %v1156 = vsel %vm1150, %v1154, %v1155
        %v1157 = vrot.slane %v1122, 1
        %v1158 = vrot.slane %v1124, 1
        %v1159 = vsel %vm1150, %v1157, %v1158
        %v1160 = vrot.slane %v1123, 1
        %v1161 = vrot.slane %v1125, 1
        %v1162 = vsel %vm1150, %v1160, %v1161
        %v1163 = vrot.slane %v1126, 1
        %v1164 = vrot.slane %v1128, 1
        %v1165 = vsel %vm1150, %v1163, %v1164
        %v1166 = vrot.slane %v1127, 1
        %v1167 = vrot.slane %v1129, 1
        %v1168 = vsel %vm1150, %v1166, %v1167
        %v1169 = vrot.slane %v1130, 1
        %v1170 = vrot.slane %v1132, 1
        %v1171 = vsel %vm1150, %v1169, %v1170
        %v1172 = vrot.slane %v1131, 1
        %v1173 = vrot.slane %v1133, 1
        %v1174 = vsel %vm1150, %v1172, %v1173
        %s1183 = scalar_lea.vmem [#allocation11], 512
        %v1184 = vld [vmem:[%s1183] sm:$0xff]
        %v1185 = vld [vmem:[%s1183 + $0x8] sm:$0xff]
        %v1186 = vld [vmem:[%s1183 + $0x10] sm:$0xff]
        %v1187 = vld [vmem:[%s1183 + $0x18] sm:$0xff]
        %v1188 = vld [vmem:[%s1183 + $0x20] sm:$0xff]
        %v1189 = vld [vmem:[%s1183 + $0x28] sm:$0xff]
        %v1190 = vld [vmem:[%s1183 + $0x30] sm:$0xff]
        %v1191 = vld [vmem:[%s1183 + $0x38] sm:$0xff]
        %v1192 = vld [vmem:[%s1183 + $0x40] sm:$0xff]
        %v1193 = vld [vmem:[%s1183 + $0x48] sm:$0xff]
        %v1194 = vld [vmem:[%s1183 + $0x50] sm:$0xff]
        %v1195 = vld [vmem:[%s1183 + $0x58] sm:$0xff]
        %v1196 = vld [vmem:[%s1183 + $0x60] sm:$0xff]
        %v1197 = vld [vmem:[%s1183 + $0x68] sm:$0xff]
        %v1198 = vld [vmem:[%s1183 + $0x70] sm:$0xff]
        %v1199 = vld [vmem:[%s1183 + $0x78] sm:$0xff]
        %v1200 = vld [vmem:[%s1183 + $0x80] sm:$0xff]
        %v1201 = vld [vmem:[%s1183 + $0x88] sm:$0xff]
        %v1202 = vld [vmem:[%s1183 + $0x90] sm:$0xff]
        %v1203 = vld [vmem:[%s1183 + $0x98] sm:$0xff]
        %v1204 = vld [vmem:[%s1183 + $0xa0] sm:$0xff]
        %v1205 = vld [vmem:[%s1183 + $0xa8] sm:$0xff]
        %v1206 = vld [vmem:[%s1183 + $0xb0] sm:$0xff]
        %v1207 = vld [vmem:[%s1183 + $0xb8] sm:$0xff]
        %v1208 = vld [vmem:[%s1183 + $0xc0] sm:$0xff]
        %v1209 = vld [vmem:[%s1183 + $0xc8] sm:$0xff]
        %v1210 = vld [vmem:[%s1183 + $0xd0] sm:$0xff]
        %v1211 = vld [vmem:[%s1183 + $0xd8] sm:$0xff]
        %v1212 = vld [vmem:[%s1183 + $0xe0] sm:$0xff]
        %v1213 = vld [vmem:[%s1183 + $0xe8] sm:$0xff]
        %v1214 = vld [vmem:[%s1183 + $0xf0] sm:$0xff]
        %v1215 = vld [vmem:[%s1183 + $0xf8] sm:$0xff]
        %v1216 = vld [vmem:[%s1183 + $0x100] sm:$0xff]
        %v1217 = vld [vmem:[%s1183 + $0x108] sm:$0xff]
        %v1218 = vld [vmem:[%s1183 + $0x110] sm:$0xff]
        %v1219 = vld [vmem:[%s1183 + $0x118] sm:$0xff]
        %v1220 = vld [vmem:[%s1183 + $0x120] sm:$0xff]
        %v1221 = vld [vmem:[%s1183 + $0x128] sm:$0xff]
        %v1222 = vld [vmem:[%s1183 + $0x130] sm:$0xff]
        %v1223 = vld [vmem:[%s1183 + $0x138] sm:$0xff]
        %v1224 = vld [vmem:[%s1183 + $0x140] sm:$0xff]
        %v1225 = vld [vmem:[%s1183 + $0x148] sm:$0xff]
        %v1226 = vld [vmem:[%s1183 + $0x150] sm:$0xff]
        %v1227 = vld [vmem:[%s1183 + $0x158] sm:$0xff]
        %v1228 = vld [vmem:[%s1183 + $0x160] sm:$0xff]
        %v1229 = vld [vmem:[%s1183 + $0x168] sm:$0xff]
        %v1230 = vld [vmem:[%s1183 + $0x170] sm:$0xff]
        %v1231 = vld [vmem:[%s1183 + $0x178] sm:$0xff]
        %v1232 = vld [vmem:[%s1183 + $0x180] sm:$0xff]
        %v1233 = vld [vmem:[%s1183 + $0x188] sm:$0xff]
        %v1234 = vld [vmem:[%s1183 + $0x190] sm:$0xff]
        %v1235 = vld [vmem:[%s1183 + $0x198] sm:$0xff]
        %v1236 = vld [vmem:[%s1183 + $0x1a0] sm:$0xff]
        %v1237 = vld [vmem:[%s1183 + $0x1a8] sm:$0xff]
        %v1238 = vld [vmem:[%s1183 + $0x1b0] sm:$0xff]
        %v1239 = vld [vmem:[%s1183 + $0x1b8] sm:$0xff]
        %v1240 = vld [vmem:[%s1183 + $0x1c0] sm:$0xff]
        %v1241 = vld [vmem:[%s1183 + $0x1c8] sm:$0xff]
        %v1242 = vld [vmem:[%s1183 + $0x1d0] sm:$0xff]
        %v1243 = vld [vmem:[%s1183 + $0x1d8] sm:$0xff]
        %v1244 = vld [vmem:[%s1183 + $0x1e0] sm:$0xff]
        %v1245 = vld [vmem:[%s1183 + $0x1e8] sm:$0xff]
        %v1246 = vld [vmem:[%s1183 + $0x1f0] sm:$0xff]
        %v1247 = vld [vmem:[%s1183 + $0x1f8] sm:$0xff]
        %1248 = vmatprep.subr.mxu0 %v1185
        %1249 = vmatpush1.msra.mxu0 %v1184
        %1250 = vmatprep.subr.mxu0 %v1187
        %1251 = vmatpush1.msra.mxu0 %v1186
        %1252 = vmatprep.subr.mxu0 %v1189
        %1253 = vmatpush1.msra.mxu0 %v1188
        %1254 = vmatprep.subr.mxu0 %v1191
        %1255 = vmatpush1.msra.mxu0 %v1190
        %1256 = vmatprep.subr.mxu0 %v1193
        %1257 = vmatpush1.msra.mxu0 %v1192
        %1258 = vmatprep.subr.mxu0 %v1195
        %1259 = vmatpush1.msra.mxu0 %v1194
        %1260 = vmatprep.subr.mxu0 %v1197
        %1261 = vmatpush1.msra.mxu0 %v1196
        %1262 = vmatprep.subr.mxu0 %v1199
        %1263 = vmatpush1.msra.mxu0 %v1198
        %1264 = vmatprep.subr.mxu0 %v1201
        %1265 = vmatpush1.msra.mxu0 %v1200
        %1266 = vmatprep.subr.mxu0 %v1203
        %1267 = vmatpush1.msra.mxu0 %v1202
        %1268 = vmatprep.subr.mxu0 %v1205
        %1269 = vmatpush1.msra.mxu0 %v1204
        %1270 = vmatprep.subr.mxu0 %v1207
        %1271 = vmatpush1.msra.mxu0 %v1206
        %1272 = vmatprep.subr.mxu0 %v1209
        %1273 = vmatpush1.msra.mxu0 %v1208
        %1274 = vmatprep.subr.mxu0 %v1211
        %1275 = vmatpush1.msra.mxu0 %v1210
        %1276 = vmatprep.subr.mxu0 %v1213
        %1277 = vmatpush1.msra.mxu0 %v1212
        %1278 = vmatprep.subr.mxu0 %v1215
        %1279 = vmatpush1.msra.mxu0 %v1214
        %1280 = vmatprep.subr.mxu0 %v1217
        %1281 = vmatpush1.msra.mxu0 %v1216
        %1282 = vmatprep.subr.mxu0 %v1219
        %1283 = vmatpush1.msra.mxu0 %v1218
        %1284 = vmatprep.subr.mxu0 %v1221
        %1285 = vmatpush1.msra.mxu0 %v1220
        %1286 = vmatprep.subr.mxu0 %v1223
        %1287 = vmatpush1.msra.mxu0 %v1222
        %1288 = vmatprep.subr.mxu0 %v1225
        %1289 = vmatpush1.msra.mxu0 %v1224
        %1290 = vmatprep.subr.mxu0 %v1227
        %1291 = vmatpush1.msra.mxu0 %v1226
        %1292 = vmatprep.subr.mxu0 %v1229
        %1293 = vmatpush1.msra.mxu0 %v1228
        %1294 = vmatprep.subr.mxu0 %v1231
        %1295 = vmatpush1.msra.mxu0 %v1230
        %1296 = vmatprep.subr.mxu0 %v1233
        %1297 = vmatpush1.msra.mxu0 %v1232
        %1298 = vmatprep.subr.mxu0 %v1235
        %1299 = vmatpush1.msra.mxu0 %v1234
        %1300 = vmatprep.subr.mxu0 %v1237
        %1301 = vmatpush1.msra.mxu0 %v1236
        %1302 = vmatprep.subr.mxu0 %v1239
        %1303 = vmatpush1.msra.mxu0 %v1238
        %1304 = vmatprep.subr.mxu0 %v1241
        %1305 = vmatpush1.msra.mxu0 %v1240
        %1306 = vmatprep.subr.mxu0 %v1243
        %1307 = vmatpush1.msra.mxu0 %v1242
        %1308 = vmatprep.subr.mxu0 %v1245
        %1309 = vmatpush1.msra.mxu0 %v1244
        %1310 = vmatprep.subr.mxu0 %v1247
        %1311 = vmatpush1.msra.mxu0 %v1246
        %1312 = vmatprep.mubr.f32.mxu0 %v1156
        %1313 = vmatmul.mubr.f32.gmra.mrb[0].mxu0 %v1153
        %v1314 = vpop.f32.mrb[0].mxu0
        %v1315 = vadd.f32 0.0, %v1314
        %v1316 = vpop.f32.mrb[0].mxu0
        %v1317 = vadd.f32 0.0, %v1316
        %1318 = vmatprep.mubr.f32.mxu0 %v1162
        %1319 = vmatmul.mubr.f32.gmra.mrb[0].mxu0 %v1159
        %v1320 = vpop.f32.mrb[0].mxu0
        %v1321 = vadd.f32 0.0, %v1320
        %v1322 = vpop.f32.mrb[0].mxu0
        %v1323 = vadd.f32 0.0, %v1322
        %1324 = vmatprep.mubr.f32.mxu0 %v1168
        %1325 = vmatmul.mubr.f32.gmra.mrb[0].mxu0 %v1165
        %v1326 = vpop.f32.mrb[0].mxu0
        %v1327 = vadd.f32 0.0, %v1326
        %v1328 = vpop.f32.mrb[0].mxu0
        %v1329 = vadd.f32 0.0, %v1328
        %1330 = vmatprep.mubr.f32.mxu0 %v1174
        %1331 = vmatmul.mubr.f32.gmra.mrb[0].mxu0 %v1171
        %v1332 = vpop.f32.mrb[0].mxu0
        %v1333 = vadd.f32 0.0, %v1332
        %v1334 = vpop.f32.mrb[0].mxu0
        %v1335 = vadd.f32 0.0, %v1334
        %1336 = vdwg.mxu0
        %1337 = vmatprep.subr.mxu0 %v1055
        %1338 = vmatpush1.msra.mxu0 %v1054
        %1339 = vmatprep.subr.mxu0 %v1057
        %1340 = vmatpush1.msra.mxu0 %v1056
        %1341 = vmatprep.subr.mxu0 %v1059
        %1342 = vmatpush1.msra.mxu0 %v1058
        %1343 = vmatprep.subr.mxu0 %v1061
        %1344 = vmatpush1.msra.mxu0 %v1060
        %1345 = vmatprep.subr.mxu0 %v1063
        %1346 = vmatpush1.msra.mxu0 %v1062
        %1347 = vmatprep.subr.mxu0 %v1065
        %1348 = vmatpush1.msra.mxu0 %v1064
        %1349 = vmatprep.subr.mxu0 %v1067
        %1350 = vmatpush1.msra.mxu0 %v1066
        %1351 = vmatprep.subr.mxu0 %v1069
        %1352 = vmatpush1.msra.mxu0 %v1068
        %1353 = vmatprep.subr.mxu0 %v1071
        %1354 = vmatpush1.msra.mxu0 %v1070
        %1355 = vmatprep.subr.mxu0 %v1073
        %1356 = vmatpush1.msra.mxu0 %v1072
        %1357 = vmatprep.subr.mxu0 %v1075
        %1358 = vmatpush1.msra.mxu0 %v1074
        %1359 = vmatprep.subr.mxu0 %v1077
        %1360 = vmatpush1.msra.mxu0 %v1076
        %1361 = vmatprep.subr.mxu0 %v1079
        %1362 = vmatpush1.msra.mxu0 %v1078
        %1363 = vmatprep.subr.mxu0 %v1081
        %1364 = vmatpush1.msra.mxu0 %v1080
        %1365 = vmatprep.subr.mxu0 %v1083
        %1366 = vmatpush1.msra.mxu0 %v1082
        %1367 = vmatprep.subr.mxu0 %v1085
        %1368 = vmatpush1.msra.mxu0 %v1084
        %1369 = vmatprep.subr.mxu0 %v1087
        %1370 = vmatpush1.msra.mxu0 %v1086
        %1371 = vmatprep.subr.mxu0 %v1089
        %1372 = vmatpush1.msra.mxu0 %v1088
        %1373 = vmatprep.subr.mxu0 %v1091
        %1374 = vmatpush1.msra.mxu0 %v1090
        %1375 = vmatprep.subr.mxu0 %v1093
        %1376 = vmatpush1.msra.mxu0 %v1092
        %1377 = vmatprep.subr.mxu0 %v1095
        %1378 = vmatpush1.msra.mxu0 %v1094
        %1379 = vmatprep.subr.mxu0 %v1097
        %1380 = vmatpush1.msra.mxu0 %v1096
        %1381 = vmatprep.subr.mxu0 %v1099
        %1382 = vmatpush1.msra.mxu0 %v1098
        %1383 = vmatprep.subr.mxu0 %v1101
        %1384 = vmatpush1.msra.mxu0 %v1100
        %1385 = vmatprep.subr.mxu0 %v1103
        %1386 = vmatpush1.msra.mxu0 %v1102
        %1387 = vmatprep.subr.mxu0 %v1105
        %1388 = vmatpush1.msra.mxu0 %v1104
        %1389 = vmatprep.subr.mxu0 %v1107
        %1390 = vmatpush1.msra.mxu0 %v1106
        %1391 = vmatprep.subr.mxu0 %v1109
        %1392 = vmatpush1.msra.mxu0 %v1108
        %1393 = vmatprep.subr.mxu0 %v1111
        %1394 = vmatpush1.msra.mxu0 %v1110
        %1395 = vmatprep.subr.mxu0 %v1113
        %1396 = vmatpush1.msra.mxu0 %v1112
        %1397 = vmatprep.subr.mxu0 %v1115
        %1398 = vmatpush1.msra.mxu0 %v1114
        %1399 = vmatprep.subr.mxu0 %v1117
        %1400 = vmatpush1.msra.mxu0 %v1116
        %1401 = vmatprep.mubr.f32.mxu0 %v1047
        %1402 = vmatmul.mubr.f32.gmra.mrb[0].mxu0 %v1046
        %v1403 = vpop.f32.mrb[0].mxu0
        %v1404 = vadd.f32 %v1315, %v1403
        %v1405 = vpop.f32.mrb[0].mxu0
        %v1406 = vadd.f32 %v1317, %v1405
        %1407 = vmatprep.mubr.f32.mxu0 %v1049
        %1408 = vmatmul.mubr.f32.gmra.mrb[0].mxu0 %v1048
        %v1409 = vpop.f32.mrb[0].mxu0
        %v1410 = vadd.f32 %v1321, %v1409
        %v1411 = vpop.f32.mrb[0].mxu0
        %v1412 = vadd.f32 %v1323, %v1411
        %1413 = vmatprep.mubr.f32.mxu0 %v1051
        %1414 = vmatmul.mubr.f32.gmra.mrb[0].mxu0 %v1050
        %v1415 = vpop.f32.mrb[0].mxu0
        %v1416 = vadd.f32 %v1327, %v1415
        %v1417 = vpop.f32.mrb[0].mxu0
        %v1418 = vadd.f32 %v1329, %v1417
        %1419 = vmatprep.mubr.f32.mxu0 %v1053
        %1420 = vmatmul.mubr.f32.gmra.mrb[0].mxu0 %v1052
        %v1421 = vpop.f32.mrb[0].mxu0
        %v1422 = vadd.f32 %v1333, %v1421
        %v1423 = vpop.f32.mrb[0].mxu0
        %v1424 = vadd.f32 %v1335, %v1423
        %1425 = vdwg.mxu0
        %v1426 = vld [vmem:[#allocation2] sm:$0xfc]
        %v1427 = vld [vmem:[#allocation2 + $0x8] sm:$0xfc]
        %v1428 = vld [vmem:[#allocation2 + $0x10] sm:$0x3]
        %v1429 = vld [vmem:[#allocation2 + $0x18] sm:$0x3]
        %v1430 = vld [vmem:[#allocation2 + $0x20] sm:$0xfc]
        %v1431 = vld [vmem:[#allocation2 + $0x28] sm:$0xfc]
        %v1432 = vld [vmem:[#allocation2 + $0x30] sm:$0x3]
        %v1433 = vld [vmem:[#allocation2 + $0x38] sm:$0x3]
        %v1434 = vld [vmem:[#allocation2 + $0x40] sm:$0xfc]
        %v1435 = vld [vmem:[#allocation2 + $0x48] sm:$0xfc]
        %v1436 = vld [vmem:[#allocation2 + $0x50] sm:$0x3]
        %v1437 = vld [vmem:[#allocation2 + $0x58] sm:$0x3]
        %v1438 = vld [vmem:[#allocation2 + $0x60] sm:$0xfc]
        %v1439 = vld [vmem:[#allocation2 + $0x68] sm:$0xfc]
        %v1440 = vld [vmem:[#allocation2 + $0x70] sm:$0x3]
        %v1441 = vld [vmem:[#allocation2 + $0x78] sm:$0x3]
        %vm1458 = vcmask 1045504
        %v1459 = vrot.slane %v1426, 2
        %v1460 = vrot.slane %v1428, 2
        %v1461 = vsel %vm1458, %v1459, %v1460
        %v1462 = vrot.slane %v1427, 2
        %v1463 = vrot.slane %v1429, 2
        %v1464 = vsel %vm1458, %v1462, %v1463
        %v1465 = vrot.slane %v1430, 2
        %v1466 = vrot.slane %v1432, 2
        %v1467 = vsel %vm1458, %v1465, %v1466
        %v1468 = vrot.slane %v1431, 2
        %v1469 = vrot.slane %v1433, 2
        %v1470 = vsel %vm1458, %v1468, %v1469
        %v1471 = vrot.slane %v1434, 2
        %v1472 = vrot.slane %v1436, 2
        %v1473 = vsel %vm1458, %v1471, %v1472
        %v1474 = vrot.slane %v1435, 2
        %v1475 = vrot.slane %v1437, 2
        %v1476 = vsel %vm1458, %v1474, %v1475
        %v1477 = vrot.slane %v1438, 2
        %v1478 = vrot.slane %v1440, 2
        %v1479 = vsel %vm1458, %v1477, %v1478
        %v1480 = vrot.slane %v1439, 2
        %v1481 = vrot.slane %v1441, 2
        %v1482 = vsel %vm1458, %v1480, %v1481
        %s1491 = scalar_lea.vmem [#allocation11], 1024
        %v1492 = vld [vmem:[%s1491] sm:$0xff]
        %v1493 = vld [vmem:[%s1491 + $0x8] sm:$0xff]
        %v1494 = vld [vmem:[%s1491 + $0x10] sm:$0xff]
        %v1495 = vld [vmem:[%s1491 + $0x18] sm:$0xff]
        %v1496 = vld [vmem:[%s1491 + $0x20] sm:$0xff]
        %v1497 = vld [vmem:[%s1491 + $0x28] sm:$0xff]
        %v1498 = vld [vmem:[%s1491 + $0x30] sm:$0xff]
        %v1499 = vld [vmem:[%s1491 + $0x38] sm:$0xff]
        %v1500 = vld [vmem:[%s1491 + $0x40] sm:$0xff]
        %v1501 = vld [vmem:[%s1491 + $0x48] sm:$0xff]
        %v1502 = vld [vmem:[%s1491 + $0x50] sm:$0xff]
        %v1503 = vld [vmem:[%s1491 + $0x58] sm:$0xff]
        %v1504 = vld [vmem:[%s1491 + $0x60] sm:$0xff]
        %v1505 = vld [vmem:[%s1491 + $0x68] sm:$0xff]
        %v1506 = vld [vmem:[%s1491 + $0x70] sm:$0xff]
        %v1507 = vld [vmem:[%s1491 + $0x78] sm:$0xff]
        %v1508 = vld [vmem:[%s1491 + $0x80] sm:$0xff]
        %v1509 = vld [vmem:[%s1491 + $0x88] sm:$0xff]
        %v1510 = vld [vmem:[%s1491 + $0x90] sm:$0xff]
        %v1511 = vld [vmem:[%s1491 + $0x98] sm:$0xff]
        %v1512 = vld [vmem:[%s1491 + $0xa0] sm:$0xff]
        %v1513 = vld [vmem:[%s1491 + $0xa8] sm:$0xff]
        %v1514 = vld [vmem:[%s1491 + $0xb0] sm:$0xff]
        %v1515 = vld [vmem:[%s1491 + $0xb8] sm:$0xff]
        %v1516 = vld [vmem:[%s1491 + $0xc0] sm:$0xff]
        %v1517 = vld [vmem:[%s1491 + $0xc8] sm:$0xff]
        %v1518 = vld [vmem:[%s1491 + $0xd0] sm:$0xff]
        %v1519 = vld [vmem:[%s1491 + $0xd8] sm:$0xff]
        %v1520 = vld [vmem:[%s1491 + $0xe0] sm:$0xff]
        %v1521 = vld [vmem:[%s1491 + $0xe8] sm:$0xff]
        %v1522 = vld [vmem:[%s1491 + $0xf0] sm:$0xff]
        %v1523 = vld [vmem:[%s1491 + $0xf8] sm:$0xff]
        %v1524 = vld [vmem:[%s1491 + $0x100] sm:$0xff]
        %v1525 = vld [vmem:[%s1491 + $0x108] sm:$0xff]
        %v1526 = vld [vmem:[%s1491 + $0x110] sm:$0xff]
        %v1527 = vld [vmem:[%s1491 + $0x118] sm:$0xff]
        %v1528 = vld [vmem:[%s1491 + $0x120] sm:$0xff]
        %v1529 = vld [vmem:[%s1491 + $0x128] sm:$0xff]
        %v1530 = vld [vmem:[%s1491 + $0x130] sm:$0xff]
        %v1531 = vld [vmem:[%s1491 + $0x138] sm:$0xff]
        %v1532 = vld [vmem:[%s1491 + $0x140] sm:$0xff]
        %v1533 = vld [vmem:[%s1491 + $0x148] sm:$0xff]
        %v1534 = vld [vmem:[%s1491 + $0x150] sm:$0xff]
        %v1535 = vld [vmem:[%s1491 + $0x158] sm:$0xff]
        %v1536 = vld [vmem:[%s1491 + $0x160] sm:$0xff]
        %v1537 = vld [vmem:[%s1491 + $0x168] sm:$0xff]
        %v1538 = vld [vmem:[%s1491 + $0x170] sm:$0xff]
        %v1539 = vld [vmem:[%s1491 + $0x178] sm:$0xff]
        %v1540 = vld [vmem:[%s1491 + $0x180] sm:$0xff]
        %v1541 = vld [vmem:[%s1491 + $0x188] sm:$0xff]
        %v1542 = vld [vmem:[%s1491 + $0x190] sm:$0xff]
        %v1543 = vld [vmem:[%s1491 + $0x198] sm:$0xff]
        %v1544 = vld [vmem:[%s1491 + $0x1a0] sm:$0xff]
        %v1545 = vld [vmem:[%s1491 + $0x1a8] sm:$0xff]
        %v1546 = vld [vmem:[%s1491 + $0x1b0] sm:$0xff]
        %v1547 = vld [vmem:[%s1491 + $0x1b8] sm:$0xff]
        %v1548 = vld [vmem:[%s1491 + $0x1c0] sm:$0xff]
        %v1549 = vld [vmem:[%s1491 + $0x1c8] sm:$0xff]
        %v1550 = vld [vmem:[%s1491 + $0x1d0] sm:$0xff]
        %v1551 = vld [vmem:[%s1491 + $0x1d8] sm:$0xff]
        %v1552 = vld [vmem:[%s1491 + $0x1e0] sm:$0xff]
        %v1553 = vld [vmem:[%s1491 + $0x1e8] sm:$0xff]
        %v1554 = vld [vmem:[%s1491 + $0x1f0] sm:$0xff]
        %v1555 = vld [vmem:[%s1491 + $0x1f8] sm:$0xff]
        %1556 = vmatprep.subr.mxu0 %v1493
        %1557 = vmatpush1.msra.mxu0 %v1492
        %1558 = vmatprep.subr.mxu0 %v1495
        %1559 = vmatpush1.msra.mxu0 %v1494
        %1560 = vmatprep.subr.mxu0 %v1497
        %1561 = vmatpush1.msra.mxu0 %v1496
        %1562 = vmatprep.subr.mxu0 %v1499
        %1563 = vmatpush1.msra.mxu0 %v1498
        %1564 = vmatprep.subr.mxu0 %v1501
        %1565 = vmatpush1.msra.mxu0 %v1500
        %1566 = vmatprep.subr.mxu0 %v1503
        %1567 = vmatpush1.msra.mxu0 %v1502
        %1568 = vmatprep.subr.mxu0 %v1505
        %1569 = vmatpush1.msra.mxu0 %v1504
        %1570 = vmatprep.subr.mxu0 %v1507
        %1571 = vmatpush1.msra.mxu0 %v1506
        %1572 = vmatprep.subr.mxu0 %v1509
        %1573 = vmatpush1.msra.mxu0 %v1508
        %1574 = vmatprep.subr.mxu0 %v1511
        %1575 = vmatpush1.msra.mxu0 %v1510
        %1576 = vmatprep.subr.mxu0 %v1513
        %1577 = vmatpush1.msra.mxu0 %v1512
        %1578 = vmatprep.subr.mxu0 %v1515
        %1579 = vmatpush1.msra.mxu0 %v1514
        %1580 = vmatprep.subr.mxu0 %v1517
        %1581 = vmatpush1.msra.mxu0 %v1516
        %1582 = vmatprep.subr.mxu0 %v1519
        %1583 = vmatpush1.msra.mxu0 %v1518
        %1584 = vmatprep.subr.mxu0 %v1521
        %1585 = vmatpush1.msra.mxu0 %v1520
        %1586 = vmatprep.subr.mxu0 %v1523
        %1587 = vmatpush1.msra.mxu0 %v1522
        %1588 = vmatprep.subr.mxu0 %v1525
        %1589 = vmatpush1.msra.mxu0 %v1524
        %1590 = vmatprep.subr.mxu0 %v1527
        %1591 = vmatpush1.msra.mxu0 %v1526
        %1592 = vmatprep.subr.mxu0 %v1529
        %1593 = vmatpush1.msra.mxu0 %v1528
        %1594 = vmatprep.subr.mxu0 %v1531
        %1595 = vmatpush1.msra.mxu0 %v1530
        %1596 = vmatprep.subr.mxu0 %v1533
        %1597 = vmatpush1.msra.mxu0 %v1532
        %1598 = vmatprep.subr.mxu0 %v1535
        %1599 = vmatpush1.msra.mxu0 %v1534
        %1600 = vmatprep.subr.mxu0 %v1537
        %1601 = vmatpush1.msra.mxu0 %v1536
        %1602 = vmatprep.subr.mxu0 %v1539
        %1603 = vmatpush1.msra.mxu0 %v1538
        %1604 = vmatprep.subr.mxu0 %v1541
        %1605 = vmatpush1.msra.mxu0 %v1540
        %1606 = vmatprep.subr.mxu0 %v1543
        %1607 = vmatpush1.msra.mxu0 %v1542
        %1608 = vmatprep.subr.mxu0 %v1545
        %1609 = vmatpush1.msra.mxu0 %v1544
        %1610 = vmatprep.subr.mxu0 %v1547
        %1611 = vmatpush1.msra.mxu0 %v1546
        %1612 = vmatprep.subr.mxu0 %v1549
        %1613 = vmatpush1.msra.mxu0 %v1548
        %1614 = vmatprep.subr.mxu0 %v1551
        %1615 = vmatpush1.msra.mxu0 %v1550
        %1616 = vmatprep.subr.mxu0 %v1553
        %1617 = vmatpush1.msra.mxu0 %v1552
        %1618 = vmatprep.subr.mxu0 %v1555
        %1619 = vmatpush1.msra.mxu0 %v1554
        %1620 = vmatprep.mubr.f32.mxu0 %v1464
        %1621 = vmatmul.mubr.f32.gmra.mrb[0].mxu0 %v1461
        %v1622 = vpop.f32.mrb[0].mxu0
        %v1623 = vadd.f32 0.0, %v1622
        %v1624 = vpop.f32.mrb[0].mxu0
        %v1625 = vadd.f32 0.0, %v1624
        %1626 = vmatprep.mubr.f32.mxu0 %v1470
        %1627 = vmatmul.mubr.f32.gmra.mrb[0].mxu0 %v1467
        %v1628 = vpop.f32.mrb[0].mxu0
        %v1629 = vadd.f32 0.0, %v1628
        %v1630 = vpop.f32.mrb[0].mxu0
        %v1631 = vadd.f32 0.0, %v1630
        %1632 = vmatprep.mubr.f32.mxu0 %v1476
        %1633 = vmatmul.mubr.f32.gmra.mrb[0].mxu0 %v1473
        %v1634 = vpop.f32.mrb[0].mxu0
        %v1635 = vadd.f32 0.0, %v1634
        %v1636 = vpop.f32.mrb[0].mxu0
        %v1637 = vadd.f32 0.0, %v1636
        %1638 = vmatprep.mubr.f32.mxu0 %v1482
        %1639 = vmatmul.mubr.f32.gmra.mrb[0].mxu0 %v1479
        %v1640 = vpop.f32.mrb[0].mxu0
        %v1641 = vadd.f32 0.0, %v1640
        %v1642 = vpop.f32.mrb[0].mxu0
        %v1643 = vadd.f32 0.0, %v1642
        %1644 = vdwg.mxu0
        %v1645 = vadd.f32 %v1404, %v1623
        %v1646 = vadd.f32 %v1406, %v1625
        %v1647 = vadd.f32 %v1410, %v1629
        %v1648 = vadd.f32 %v1412, %v1631
        %v1649 = vadd.f32 %v1416, %v1635
        %v1650 = vadd.f32 %v1418, %v1637
        %v1651 = vadd.f32 %v1422, %v1641
        %v1652 = vadd.f32 %v1424, %v1643
        %v1653 = vld [vmem:[%s848] sm:$0xff]
        %v1654 = vld [vmem:[%s848 + $0x8] sm:$0xff]
        %v1655 = vld [vmem:[%s848 + $0x20] sm:$0xff]
        %v1656 = vld [vmem:[%s848 + $0x28] sm:$0xff]
        %v1657 = vld [vmem:[%s848 + $0x40] sm:$0xff]
        %v1658 = vld [vmem:[%s848 + $0x48] sm:$0xff]
        %v1659 = vld [vmem:[%s848 + $0x60] sm:$0xff]
        %v1660 = vld [vmem:[%s848 + $0x68] sm:$0xff]
        %s1661 = scalar_lea.vmem [#allocation11], 1536
        %v1662 = vld [vmem:[%s1661] sm:$0xff]
        %v1663 = vld [vmem:[%s1661 + $0x8] sm:$0xff]
        %v1664 = vld [vmem:[%s1661 + $0x10] sm:$0xff]
        %v1665 = vld [vmem:[%s1661 + $0x18] sm:$0xff]
        %v1666 = vld [vmem:[%s1661 + $0x20] sm:$0xff]
        %v1667 = vld [vmem:[%s1661 + $0x28] sm:$0xff]
        %v1668 = vld [vmem:[%s1661 + $0x30] sm:$0xff]
        %v1669 = vld [vmem:[%s1661 + $0x38] sm:$0xff]
        %v1670 = vld [vmem:[%s1661 + $0x40] sm:$0xff]
        %v1671 = vld [vmem:[%s1661 + $0x48] sm:$0xff]
        %v1672 = vld [vmem:[%s1661 + $0x50] sm:$0xff]
        %v1673 = vld [vmem:[%s1661 + $0x58] sm:$0xff]
        %v1674 = vld [vmem:[%s1661 + $0x60] sm:$0xff]
        %v1675 = vld [vmem:[%s1661 + $0x68] sm:$0xff]
        %v1676 = vld [vmem:[%s1661 + $0x70] sm:$0xff]
        %v1677 = vld [vmem:[%s1661 + $0x78] sm:$0xff]
        %v1678 = vld [vmem:[%s1661 + $0x80] sm:$0xff]
        %v1679 = vld [vmem:[%s1661 + $0x88] sm:$0xff]
        %v1680 = vld [vmem:[%s1661 + $0x90] sm:$0xff]
        %v1681 = vld [vmem:[%s1661 + $0x98] sm:$0xff]
        %v1682 = vld [vmem:[%s1661 + $0xa0] sm:$0xff]
        %v1683 = vld [vmem:[%s1661 + $0xa8] sm:$0xff]
        %v1684 = vld [vmem:[%s1661 + $0xb0] sm:$0xff]
        %v1685 = vld [vmem:[%s1661 + $0xb8] sm:$0xff]
        %v1686 = vld [vmem:[%s1661 + $0xc0] sm:$0xff]
        %v1687 = vld [vmem:[%s1661 + $0xc8] sm:$0xff]
        %v1688 = vld [vmem:[%s1661 + $0xd0] sm:$0xff]
        %v1689 = vld [vmem:[%s1661 + $0xd8] sm:$0xff]
        %v1690 = vld [vmem:[%s1661 + $0xe0] sm:$0xff]
        %v1691 = vld [vmem:[%s1661 + $0xe8] sm:$0xff]
        %v1692 = vld [vmem:[%s1661 + $0xf0] sm:$0xff]
        %v1693 = vld [vmem:[%s1661 + $0xf8] sm:$0xff]
        %v1694 = vld [vmem:[%s1661 + $0x100] sm:$0xff]
        %v1695 = vld [vmem:[%s1661 + $0x108] sm:$0xff]
        %v1696 = vld [vmem:[%s1661 + $0x110] sm:$0xff]
        %v1697 = vld [vmem:[%s1661 + $0x118] sm:$0xff]
        %v1698 = vld [vmem:[%s1661 + $0x120] sm:$0xff]
        %v1699 = vld [vmem:[%s1661 + $0x128] sm:$0xff]
        %v1700 = vld [vmem:[%s1661 + $0x130] sm:$0xff]
        %v1701 = vld [vmem:[%s1661 + $0x138] sm:$0xff]
        %v1702 = vld [vmem:[%s1661 + $0x140] sm:$0xff]
        %v1703 = vld [vmem:[%s1661 + $0x148] sm:$0xff]
        %v1704 = vld [vmem:[%s1661 + $0x150] sm:$0xff]
        %v1705 = vld [vmem:[%s1661 + $0x158] sm:$0xff]
        %v1706 = vld [vmem:[%s1661 + $0x160] sm:$0xff]
        %v1707 = vld [vmem:[%s1661 + $0x168] sm:$0xff]
        %v1708 = vld [vmem:[%s1661 + $0x170] sm:$0xff]
        %v1709 = vld [vmem:[%s1661 + $0x178] sm:$0xff]
        %v1710 = vld [vmem:[%s1661 + $0x180] sm:$0xff]
        %v1711 = vld [vmem:[%s1661 + $0x188] sm:$0xff]
        %v1712 = vld [vmem:[%s1661 + $0x190] sm:$0xff]
        %v1713 = vld [vmem:[%s1661 + $0x198] sm:$0xff]
        %v1714 = vld [vmem:[%s1661 + $0x1a0] sm:$0xff]
        %v1715 = vld [vmem:[%s1661 + $0x1a8] sm:$0xff]
        %v1716 = vld [vmem:[%s1661 + $0x1b0] sm:$0xff]
        %v1717 = vld [vmem:[%s1661 + $0x1b8] sm:$0xff]
        %v1718 = vld [vmem:[%s1661 + $0x1c0] sm:$0xff]
        %v1719 = vld [vmem:[%s1661 + $0x1c8] sm:$0xff]
        %v1720 = vld [vmem:[%s1661 + $0x1d0] sm:$0xff]
        %v1721 = vld [vmem:[%s1661 + $0x1d8] sm:$0xff]
        %v1722 = vld [vmem:[%s1661 + $0x1e0] sm:$0xff]
        %v1723 = vld [vmem:[%s1661 + $0x1e8] sm:$0xff]
        %v1724 = vld [vmem:[%s1661 + $0x1f0] sm:$0xff]
        %v1725 = vld [vmem:[%s1661 + $0x1f8] sm:$0xff]
        %1726 = vmatprep.subr.mxu0 %v1663
        %1727 = vmatpush1.msra.mxu0 %v1662
        %1728 = vmatprep.subr.mxu0 %v1665
        %1729 = vmatpush1.msra.mxu0 %v1664
        %1730 = vmatprep.subr.mxu0 %v1667
        %1731 = vmatpush1.msra.mxu0 %v1666
        %1732 = vmatprep.subr.mxu0 %v1669
        %1733 = vmatpush1.msra.mxu0 %v1668
        %1734 = vmatprep.subr.mxu0 %v1671
        %1735 = vmatpush1.msra.mxu0 %v1670
        %1736 = vmatprep.subr.mxu0 %v1673
        %1737 = vmatpush1.msra.mxu0 %v1672
        %1738 = vmatprep.subr.mxu0 %v1675
        %1739 = vmatpush1.msra.mxu0 %v1674
        %1740 = vmatprep.subr.mxu0 %v1677
        %1741 = vmatpush1.msra.mxu0 %v1676
        %1742 = vmatprep.subr.mxu0 %v1679
        %1743 = vmatpush1.msra.mxu0 %v1678
        %1744 = vmatprep.subr.mxu0 %v1681
        %1745 = vmatpush1.msra.mxu0 %v1680
        %1746 = vmatprep.subr.mxu0 %v1683
        %1747 = vmatpush1.msra.mxu0 %v1682
        %1748 = vmatprep.subr.mxu0 %v1685
        %1749 = vmatpush1.msra.mxu0 %v1684
        %1750 = vmatprep.subr.mxu0 %v1687
        %1751 = vmatpush1.msra.mxu0 %v1686
        %1752 = vmatprep.subr.mxu0 %v1689
        %1753 = vmatpush1.msra.mxu0 %v1688
        %1754 = vmatprep.subr.mxu0 %v1691
        %1755 = vmatpush1.msra.mxu0 %v1690
        %1756 = vmatprep.subr.mxu0 %v1693
        %1757 = vmatpush1.msra.mxu0 %v1692
        %1758 = vmatprep.subr.mxu0 %v1695
        %1759 = vmatpush1.msra.mxu0 %v1694
        %1760 = vmatprep.subr.mxu0 %v1697
        %1761 = vmatpush1.msra.mxu0 %v1696
        %1762 = vmatprep.subr.mxu0 %v1699
        %1763 = vmatpush1.msra.mxu0 %v1698
        %1764 = vmatprep.subr.mxu0 %v1701
        %1765 = vmatpush1.msra.mxu0 %v1700
        %1766 = vmatprep.subr.mxu0 %v1703
        %1767 = vmatpush1.msra.mxu0 %v1702
        %1768 = vmatprep.subr.mxu0 %v1705
        %1769 = vmatpush1.msra.mxu0 %v1704
        %1770 = vmatprep.subr.mxu0 %v1707
        %1771 = vmatpush1.msra.mxu0 %v1706
        %1772 = vmatprep.subr.mxu0 %v1709
        %1773 = vmatpush1.msra.mxu0 %v1708
        %1774 = vmatprep.subr.mxu0 %v1711
        %1775 = vmatpush1.msra.mxu0 %v1710
        %1776 = vmatprep.subr.mxu0 %v1713
        %1777 = vmatpush1.msra.mxu0 %v1712
        %1778 = vmatprep.subr.mxu0 %v1715
        %1779 = vmatpush1.msra.mxu0 %v1714
        %1780 = vmatprep.subr.mxu0 %v1717
        %1781 = vmatpush1.msra.mxu0 %v1716
        %1782 = vmatprep.subr.mxu0 %v1719
        %1783 = vmatpush1.msra.mxu0 %v1718
        %1784 = vmatprep.subr.mxu0 %v1721
        %1785 = vmatpush1.msra.mxu0 %v1720
        %1786 = vmatprep.subr.mxu0 %v1723
        %1787 = vmatpush1.msra.mxu0 %v1722
        %1788 = vmatprep.subr.mxu0 %v1725
        %1789 = vmatpush1.msra.mxu0 %v1724
        %1790 = vmatprep.mubr.f32.mxu0 %v1654
        %1791 = vmatmul.mubr.f32.gmra.mrb[0].mxu0 %v1653
        %v1792 = vpop.f32.mrb[0].mxu0
        %v1793 = vadd.f32 0.0, %v1792
        %v1794 = vpop.f32.mrb[0].mxu0
        %v1795 = vadd.f32 0.0, %v1794
        %1796 = vmatprep.mubr.f32.mxu0 %v1656
        %1797 = vmatmul.mubr.f32.gmra.mrb[0].mxu0 %v1655
        %v1798 = vpop.f32.mrb[0].mxu0
        %v1799 = vadd.f32 0.0, %v1798
        %v1800 = vpop.f32.mrb[0].mxu0
        %v1801 = vadd.f32 0.0, %v1800
        %1802 = vmatprep.mubr.f32.mxu0 %v1658
        %1803 = vmatmul.mubr.f32.gmra.mrb[0].mxu0 %v1657
        %v1804 = vpop.f32.mrb[0].mxu0
        %v1805 = vadd.f32 0.0, %v1804
        %v1806 = vpop.f32.mrb[0].mxu0
        %v1807 = vadd.f32 0.0, %v1806
        %1808 = vmatprep.mubr.f32.mxu0 %v1660
        %1809 = vmatmul.mubr.f32.gmra.mrb[0].mxu0 %v1659
        %v1810 = vpop.f32.mrb[0].mxu0
        %v1811 = vadd.f32 0.0, %v1810
        %v1812 = vpop.f32.mrb[0].mxu0
        %v1813 = vadd.f32 0.0, %v1812
        %1814 = vdwg.mxu0
        %v1815 = vadd.f32 %v1645, %v1793
        %v1816 = vadd.f32 %v1646, %v1795
        %v1817 = vadd.f32 %v1647, %v1799
        %v1818 = vadd.f32 %v1648, %v1801
        %v1819 = vadd.f32 %v1649, %v1805
        %v1820 = vadd.f32 %v1650, %v1807
        %v1821 = vadd.f32 %v1651, %v1811
        %v1822 = vadd.f32 %v1652, %v1813
        %v1823 = vld [vmem:[%s848] sm:$0xfe]
        %v1824 = vld [vmem:[%s848 + $0x8] sm:$0xfe]
        %v1825 = vld [vmem:[%s848 + $0x10] sm:$0x1]
        %v1826 = vld [vmem:[%s848 + $0x18] sm:$0x1]
        %v1827 = vld [vmem:[%s848 + $0x20] sm:$0xfe]
        %v1828 = vld [vmem:[%s848 + $0x28] sm:$0xfe]
        %v1829 = vld [vmem:[%s848 + $0x30] sm:$0x1]
        %v1830 = vld [vmem:[%s848 + $0x38] sm:$0x1]
        %v1831 = vld [vmem:[%s848 + $0x40] sm:$0xfe]
        %v1832 = vld [vmem:[%s848 + $0x48] sm:$0xfe]
        %v1833 = vld [vmem:[%s848 + $0x50] sm:$0x1]
        %v1834 = vld [vmem:[%s848 + $0x58] sm:$0x1]
        %v1835 = vld [vmem:[%s848 + $0x60] sm:$0xfe]
        %v1836 = vld [vmem:[%s848 + $0x68] sm:$0xfe]
        %v1837 = vld [vmem:[%s848 + $0x70] sm:$0x1]
        %v1838 = vld [vmem:[%s848 + $0x78] sm:$0x1]
        %v1855 = vrot.slane %v1823, 1
        %v1856 = vrot.slane %v1825, 1
        %v1857 = vsel %vm1150, %v1855, %v1856
        %v1858 = vrot.slane %v1824, 1
        %v1859 = vrot.slane %v1826, 1
        %v1860 = vsel %vm1150, %v1858, %v1859
        %v1861 = vrot.slane %v1827, 1
        %v1862 = vrot.slane %v1829, 1
        %v1863 = vsel %vm1150, %v1861, %v1862
        %v1864 = vrot.slane %v1828, 1
        %v1865 = vrot.slane %v1830, 1
        %v1866 = vsel %vm1150, %v1864, %v1865
        %v1867 = vrot.slane %v1831, 1
        %v1868 = vrot.slane %v1833, 1
        %v1869 = vsel %vm1150, %v1867, %v1868
        %v1870 = vrot.slane %v1832, 1
        %v1871 = vrot.slane %v1834, 1
        %v1872 = vsel %vm1150, %v1870, %v1871
        %v1873 = vrot.slane %v1835, 1
        %v1874 = vrot.slane %v1837, 1
        %v1875 = vsel %vm1150, %v1873, %v1874
        %v1876 = vrot.slane %v1836, 1
        %v1877 = vrot.slane %v1838, 1
        %v1878 = vsel %vm1150, %v1876, %v1877
        %s1887 = scalar_lea.vmem [#allocation11], 2048
        %v1888 = vld [vmem:[%s1887] sm:$0xff]
        %v1889 = vld [vmem:[%s1887 + $0x8] sm:$0xff]
        %v1890 = vld [vmem:[%s1887 + $0x10] sm:$0xff]
        %v1891 = vld [vmem:[%s1887 + $0x18] sm:$0xff]
        %v1892 = vld [vmem:[%s1887 + $0x20] sm:$0xff]
        %v1893 = vld [vmem:[%s1887 + $0x28] sm:$0xff]
        %v1894 = vld [vmem:[%s1887 + $0x30] sm:$0xff]
        %v1895 = vld [vmem:[%s1887 + $0x38] sm:$0xff]
        %v1896 = vld [vmem:[%s1887 + $0x40] sm:$0xff]
        %v1897 = vld [vmem:[%s1887 + $0x48] sm:$0xff]
        %v1898 = vld [vmem:[%s1887 + $0x50] sm:$0xff]
        %v1899 = vld [vmem:[%s1887 + $0x58] sm:$0xff]
        %v1900 = vld [vmem:[%s1887 + $0x60] sm:$0xff]
        %v1901 = vld [vmem:[%s1887 + $0x68] sm:$0xff]
        %v1902 = vld [vmem:[%s1887 + $0x70] sm:$0xff]
        %v1903 = vld [vmem:[%s1887 + $0x78] sm:$0xff]
        %v1904 = vld [vmem:[%s1887 + $0x80] sm:$0xff]
        %v1905 = vld [vmem:[%s1887 + $0x88] sm:$0xff]
        %v1906 = vld [vmem:[%s1887 + $0x90] sm:$0xff]
        %v1907 = vld [vmem:[%s1887 + $0x98] sm:$0xff]
        %v1908 = vld [vmem:[%s1887 + $0xa0] sm:$0xff]
        %v1909 = vld [vmem:[%s1887 + $0xa8] sm:$0xff]
        %v1910 = vld [vmem:[%s1887 + $0xb0] sm:$0xff]
        %v1911 = vld [vmem:[%s1887 + $0xb8] sm:$0xff]
        %v1912 = vld [vmem:[%s1887 + $0xc0] sm:$0xff]
        %v1913 = vld [vmem:[%s1887 + $0xc8] sm:$0xff]
        %v1914 = vld [vmem:[%s1887 + $0xd0] sm:$0xff]
        %v1915 = vld [vmem:[%s1887 + $0xd8] sm:$0xff]
        %v1916 = vld [vmem:[%s1887 + $0xe0] sm:$0xff]
        %v1917 = vld [vmem:[%s1887 + $0xe8] sm:$0xff]
        %v1918 = vld [vmem:[%s1887 + $0xf0] sm:$0xff]
        %v1919 = vld [vmem:[%s1887 + $0xf8] sm:$0xff]
        %v1920 = vld [vmem:[%s1887 + $0x100] sm:$0xff]
        %v1921 = vld [vmem:[%s1887 + $0x108] sm:$0xff]
        %v1922 = vld [vmem:[%s1887 + $0x110] sm:$0xff]
        %v1923 = vld [vmem:[%s1887 + $0x118] sm:$0xff]
        %v1924 = vld [vmem:[%s1887 + $0x120] sm:$0xff]
        %v1925 = vld [vmem:[%s1887 + $0x128] sm:$0xff]
        %v1926 = vld [vmem:[%s1887 + $0x130] sm:$0xff]
        %v1927 = vld [vmem:[%s1887 + $0x138] sm:$0xff]
        %v1928 = vld [vmem:[%s1887 + $0x140] sm:$0xff]
        %v1929 = vld [vmem:[%s1887 + $0x148] sm:$0xff]
        %v1930 = vld [vmem:[%s1887 + $0x150] sm:$0xff]
        %v1931 = vld [vmem:[%s1887 + $0x158] sm:$0xff]
        %v1932 = vld [vmem:[%s1887 + $0x160] sm:$0xff]
        %v1933 = vld [vmem:[%s1887 + $0x168] sm:$0xff]
        %v1934 = vld [vmem:[%s1887 + $0x170] sm:$0xff]
        %v1935 = vld [vmem:[%s1887 + $0x178] sm:$0xff]
        %v1936 = vld [vmem:[%s1887 + $0x180] sm:$0xff]
        %v1937 = vld [vmem:[%s1887 + $0x188] sm:$0xff]
        %v1938 = vld [vmem:[%s1887 + $0x190] sm:$0xff]
        %v1939 = vld [vmem:[%s1887 + $0x198] sm:$0xff]
        %v1940 = vld [vmem:[%s1887 + $0x1a0] sm:$0xff]
        %v1941 = vld [vmem:[%s1887 + $0x1a8] sm:$0xff]
        %v1942 = vld [vmem:[%s1887 + $0x1b0] sm:$0xff]
        %v1943 = vld [vmem:[%s1887 + $0x1b8] sm:$0xff]
        %v1944 = vld [vmem:[%s1887 + $0x1c0] sm:$0xff]
        %v1945 = vld [vmem:[%s1887 + $0x1c8] sm:$0xff]
        %v1946 = vld [vmem:[%s1887 + $0x1d0] sm:$0xff]
        %v1947 = vld [vmem:[%s1887 + $0x1d8] sm:$0xff]
        %v1948 = vld [vmem:[%s1887 + $0x1e0] sm:$0xff]
        %v1949 = vld [vmem:[%s1887 + $0x1e8] sm:$0xff]
        %v1950 = vld [vmem:[%s1887 + $0x1f0] sm:$0xff]
        %v1951 = vld [vmem:[%s1887 + $0x1f8] sm:$0xff]
        %1952 = vmatprep.subr.mxu0 %v1889
        %1953 = vmatpush1.msra.mxu0 %v1888
        %1954 = vmatprep.subr.mxu0 %v1891
        %1955 = vmatpush1.msra.mxu0 %v1890
        %1956 = vmatprep.subr.mxu0 %v1893
        %1957 = vmatpush1.msra.mxu0 %v1892
        %1958 = vmatprep.subr.mxu0 %v1895
        %1959 = vmatpush1.msra.mxu0 %v1894
        %1960 = vmatprep.subr.mxu0 %v1897
        %1961 = vmatpush1.msra.mxu0 %v1896
        %1962 = vmatprep.subr.mxu0 %v1899
        %1963 = vmatpush1.msra.mxu0 %v1898
        %1964 = vmatprep.subr.mxu0 %v1901
        %1965 = vmatpush1.msra.mxu0 %v1900
        %1966 = vmatprep.subr.mxu0 %v1903
        %1967 = vmatpush1.msra.mxu0 %v1902
        %1968 = vmatprep.subr.mxu0 %v1905
        %1969 = vmatpush1.msra.mxu0 %v1904
        %1970 = vmatprep.subr.mxu0 %v1907
        %1971 = vmatpush1.msra.mxu0 %v1906
        %1972 = vmatprep.subr.mxu0 %v1909
        %1973 = vmatpush1.msra.mxu0 %v1908
        %1974 = vmatprep.subr.mxu0 %v1911
        %1975 = vmatpush1.msra.mxu0 %v1910
        %1976 = vmatprep.subr.mxu0 %v1913
        %1977 = vmatpush1.msra.mxu0 %v1912
        %1978 = vmatprep.subr.mxu0 %v1915
        %1979 = vmatpush1.msra.mxu0 %v1914
        %1980 = vmatprep.subr.mxu0 %v1917
        %1981 = vmatpush1.msra.mxu0 %v1916
        %1982 = vmatprep.subr.mxu0 %v1919
        %1983 = vmatpush1.msra.mxu0 %v1918
        %1984 = vmatprep.subr.mxu0 %v1921
        %1985 = vmatpush1.msra.mxu0 %v1920
        %1986 = vmatprep.subr.mxu0 %v1923
        %1987 = vmatpush1.msra.mxu0 %v1922
        %1988 = vmatprep.subr.mxu0 %v1925
        %1989 = vmatpush1.msra.mxu0 %v1924
        %1990 = vmatprep.subr.mxu0 %v1927
        %1991 = vmatpush1.msra.mxu0 %v1926
        %1992 = vmatprep.subr.mxu0 %v1929
        %1993 = vmatpush1.msra.mxu0 %v1928
        %1994 = vmatprep.subr.mxu0 %v1931
        %1995 = vmatpush1.msra.mxu0 %v1930
        %1996 = vmatprep.subr.mxu0 %v1933
        %1997 = vmatpush1.msra.mxu0 %v1932
        %1998 = vmatprep.subr.mxu0 %v1935
        %1999 = vmatpush1.msra.mxu0 %v1934
        %2000 = vmatprep.subr.mxu0 %v1937
        %2001 = vmatpush1.msra.mxu0 %v1936
        %2002 = vmatprep.subr.mxu0 %v1939
        %2003 = vmatpush1.msra.mxu0 %v1938
        %2004 = vmatprep.subr.mxu0 %v1941
        %2005 = vmatpush1.msra.mxu0 %v1940
        %2006 = vmatprep.subr.mxu0 %v1943
        %2007 = vmatpush1.msra.mxu0 %v1942
        %2008 = vmatprep.subr.mxu0 %v1945
        %2009 = vmatpush1.msra.mxu0 %v1944
        %2010 = vmatprep.subr.mxu0 %v1947
        %2011 = vmatpush1.msra.mxu0 %v1946
        %2012 = vmatprep.subr.mxu0 %v1949
        %2013 = vmatpush1.msra.mxu0 %v1948
        %2014 = vmatprep.subr.mxu0 %v1951
        %2015 = vmatpush1.msra.mxu0 %v1950
        %2016 = vmatprep.mubr.f32.mxu0 %v1860
        %2017 = vmatmul.mubr.f32.gmra.mrb[0].mxu0 %v1857
        %v2018 = vpop.f32.mrb[0].mxu0
        %v2019 = vadd.f32 0.0, %v2018
        %v2020 = vpop.f32.mrb[0].mxu0
        %v2021 = vadd.f32 0.0, %v2020
        %2022 = vmatprep.mubr.f32.mxu0 %v1866
        %2023 = vmatmul.mubr.f32.gmra.mrb[0].mxu0 %v1863
        %v2024 = vpop.f32.mrb[0].mxu0
        %v2025 = vadd.f32 0.0, %v2024
        %v2026 = vpop.f32.mrb[0].mxu0
        %v2027 = vadd.f32 0.0, %v2026
        %2028 = vmatprep.mubr.f32.mxu0 %v1872
        %2029 = vmatmul.mubr.f32.gmra.mrb[0].mxu0 %v1869
        %v2030 = vpop.f32.mrb[0].mxu0
        %v2031 = vadd.f32 0.0, %v2030
        %v2032 = vpop.f32.mrb[0].mxu0
        %v2033 = vadd.f32 0.0, %v2032
        %2034 = vmatprep.mubr.f32.mxu0 %v1878
        %2035 = vmatmul.mubr.f32.gmra.mrb[0].mxu0 %v1875
        %v2036 = vpop.f32.mrb[0].mxu0
        %v2037 = vadd.f32 0.0, %v2036
        %v2038 = vpop.f32.mrb[0].mxu0
        %v2039 = vadd.f32 0.0, %v2038
        %2040 = vdwg.mxu0
        %v2041 = vadd.f32 %v1815, %v2019
        %v2042 = vadd.f32 %v1816, %v2021
        %v2043 = vadd.f32 %v1817, %v2025
        %v2044 = vadd.f32 %v1818, %v2027
        %v2045 = vadd.f32 %v1819, %v2031
        %v2046 = vadd.f32 %v1820, %v2033
        %v2047 = vadd.f32 %v1821, %v2037
        %v2048 = vadd.f32 %v1822, %v2039
        %v2049 = vld [vmem:[%s848] sm:$0xfc]
        %v2050 = vld [vmem:[%s848 + $0x8] sm:$0xfc]
        %v2051 = vld [vmem:[%s848 + $0x10] sm:$0x3]
        %v2052 = vld [vmem:[%s848 + $0x18] sm:$0x3]
        %v2053 = vld [vmem:[%s848 + $0x20] sm:$0xfc]
        %v2054 = vld [vmem:[%s848 + $0x28] sm:$0xfc]
        %v2055 = vld [vmem:[%s848 + $0x30] sm:$0x3]
        %v2056 = vld [vmem:[%s848 + $0x38] sm:$0x3]
        %v2057 = vld [vmem:[%s848 + $0x40] sm:$0xfc]
        %v2058 = vld [vmem:[%s848 + $0x48] sm:$0xfc]
        %v2059 = vld [vmem:[%s848 + $0x50] sm:$0x3]
        %v2060 = vld [vmem:[%s848 + $0x58] sm:$0x3]
        %v2061 = vld [vmem:[%s848 + $0x60] sm:$0xfc]
        %v2062 = vld [vmem:[%s848 + $0x68] sm:$0xfc]
        %v2063 = vld [vmem:[%s848 + $0x70] sm:$0x3]
        %v2064 = vld [vmem:[%s848 + $0x78] sm:$0x3]
        %v2081 = vrot.slane %v2049, 2
        %v2082 = vrot.slane %v2051, 2
        %v2083 = vsel %vm1458, %v2081, %v2082
        %v2084 = vrot.slane %v2050, 2
        %v2085 = vrot.slane %v2052, 2
        %v2086 = vsel %vm1458, %v2084, %v2085
        %v2087 = vrot.slane %v2053, 2
        %v2088 = vrot.slane %v2055, 2
        %v2089 = vsel %vm1458, %v2087, %v2088
        %v2090 = vrot.slane %v2054, 2
        %v2091 = vrot.slane %v2056, 2
        %v2092 = vsel %vm1458, %v2090, %v2091
        %v2093 = vrot.slane %v2057, 2
        %v2094 = vrot.slane %v2059, 2
        %v2095 = vsel %vm1458, %v2093, %v2094
        %v2096 = vrot.slane %v2058, 2
        %v2097 = vrot.slane %v2060, 2
        %v2098 = vsel %vm1458, %v2096, %v2097
        %v2099 = vrot.slane %v2061, 2
        %v2100 = vrot.slane %v2063, 2
        %v2101 = vsel %vm1458, %v2099, %v2100
        %v2102 = vrot.slane %v2062, 2
        %v2103 = vrot.slane %v2064, 2
        %v2104 = vsel %vm1458, %v2102, %v2103
        %s2113 = scalar_lea.vmem [#allocation11], 2560
        %v2114 = vld [vmem:[%s2113] sm:$0xff]
        %v2115 = vld [vmem:[%s2113 + $0x8] sm:$0xff]
        %v2116 = vld [vmem:[%s2113 + $0x10] sm:$0xff]
        %v2117 = vld [vmem:[%s2113 + $0x18] sm:$0xff]
        %v2118 = vld [vmem:[%s2113 + $0x20] sm:$0xff]
        %v2119 = vld [vmem:[%s2113 + $0x28] sm:$0xff]
        %v2120 = vld [vmem:[%s2113 + $0x30] sm:$0xff]
        %v2121 = vld [vmem:[%s2113 + $0x38] sm:$0xff]
        %v2122 = vld [vmem:[%s2113 + $0x40] sm:$0xff]
        %v2123 = vld [vmem:[%s2113 + $0x48] sm:$0xff]
        %v2124 = vld [vmem:[%s2113 + $0x50] sm:$0xff]
        %v2125 = vld [vmem:[%s2113 + $0x58] sm:$0xff]
        %v2126 = vld [vmem:[%s2113 + $0x60] sm:$0xff]
        %v2127 = vld [vmem:[%s2113 + $0x68] sm:$0xff]
        %v2128 = vld [vmem:[%s2113 + $0x70] sm:$0xff]
        %v2129 = vld [vmem:[%s2113 + $0x78] sm:$0xff]
        %v2130 = vld [vmem:[%s2113 + $0x80] sm:$0xff]
        %v2131 = vld [vmem:[%s2113 + $0x88] sm:$0xff]
        %v2132 = vld [vmem:[%s2113 + $0x90] sm:$0xff]
        %v2133 = vld [vmem:[%s2113 + $0x98] sm:$0xff]
        %v2134 = vld [vmem:[%s2113 + $0xa0] sm:$0xff]
        %v2135 = vld [vmem:[%s2113 + $0xa8] sm:$0xff]
        %v2136 = vld [vmem:[%s2113 + $0xb0] sm:$0xff]
        %v2137 = vld [vmem:[%s2113 + $0xb8] sm:$0xff]
        %v2138 = vld [vmem:[%s2113 + $0xc0] sm:$0xff]
        %v2139 = vld [vmem:[%s2113 + $0xc8] sm:$0xff]
        %v2140 = vld [vmem:[%s2113 + $0xd0] sm:$0xff]
        %v2141 = vld [vmem:[%s2113 + $0xd8] sm:$0xff]
        %v2142 = vld [vmem:[%s2113 + $0xe0] sm:$0xff]
        %v2143 = vld [vmem:[%s2113 + $0xe8] sm:$0xff]
        %v2144 = vld [vmem:[%s2113 + $0xf0] sm:$0xff]
        %v2145 = vld [vmem:[%s2113 + $0xf8] sm:$0xff]
        %v2146 = vld [vmem:[%s2113 + $0x100] sm:$0xff]
        %v2147 = vld [vmem:[%s2113 + $0x108] sm:$0xff]
        %v2148 = vld [vmem:[%s2113 + $0x110] sm:$0xff]
        %v2149 = vld [vmem:[%s2113 + $0x118] sm:$0xff]
        %v2150 = vld [vmem:[%s2113 + $0x120] sm:$0xff]
        %v2151 = vld [vmem:[%s2113 + $0x128] sm:$0xff]
        %v2152 = vld [vmem:[%s2113 + $0x130] sm:$0xff]
        %v2153 = vld [vmem:[%s2113 + $0x138] sm:$0xff]
        %v2154 = vld [vmem:[%s2113 + $0x140] sm:$0xff]
        %v2155 = vld [vmem:[%s2113 + $0x148] sm:$0xff]
        %v2156 = vld [vmem:[%s2113 + $0x150] sm:$0xff]
        %v2157 = vld [vmem:[%s2113 + $0x158] sm:$0xff]
        %v2158 = vld [vmem:[%s2113 + $0x160] sm:$0xff]
        %v2159 = vld [vmem:[%s2113 + $0x168] sm:$0xff]
        %v2160 = vld [vmem:[%s2113 + $0x170] sm:$0xff]
        %v2161 = vld [vmem:[%s2113 + $0x178] sm:$0xff]
        %v2162 = vld [vmem:[%s2113 + $0x180] sm:$0xff]
        %v2163 = vld [vmem:[%s2113 + $0x188] sm:$0xff]
        %v2164 = vld [vmem:[%s2113 + $0x190] sm:$0xff]
        %v2165 = vld [vmem:[%s2113 + $0x198] sm:$0xff]
        %v2166 = vld [vmem:[%s2113 + $0x1a0] sm:$0xff]
        %v2167 = vld [vmem:[%s2113 + $0x1a8] sm:$0xff]
        %v2168 = vld [vmem:[%s2113 + $0x1b0] sm:$0xff]
        %v2169 = vld [vmem:[%s2113 + $0x1b8] sm:$0xff]
        %v2170 = vld [vmem:[%s2113 + $0x1c0] sm:$0xff]
        %v2171 = vld [vmem:[%s2113 + $0x1c8] sm:$0xff]
        %v2172 = vld [vmem:[%s2113 + $0x1d0] sm:$0xff]
        %v2173 = vld [vmem:[%s2113 + $0x1d8] sm:$0xff]
        %v2174 = vld [vmem:[%s2113 + $0x1e0] sm:$0xff]
        %v2175 = vld [vmem:[%s2113 + $0x1e8] sm:$0xff]
        %v2176 = vld [vmem:[%s2113 + $0x1f0] sm:$0xff]
        %v2177 = vld [vmem:[%s2113 + $0x1f8] sm:$0xff]
        %2178 = vmatprep.subr.mxu0 %v2115
        %2179 = vmatpush1.msra.mxu0 %v2114
        %2180 = vmatprep.subr.mxu0 %v2117
        %2181 = vmatpush1.msra.mxu0 %v2116
        %2182 = vmatprep.subr.mxu0 %v2119
        %2183 = vmatpush1.msra.mxu0 %v2118
        %2184 = vmatprep.subr.mxu0 %v2121
        %2185 = vmatpush1.msra.mxu0 %v2120
        %2186 = vmatprep.subr.mxu0 %v2123
        %2187 = vmatpush1.msra.mxu0 %v2122
        %2188 = vmatprep.subr.mxu0 %v2125
        %2189 = vmatpush1.msra.mxu0 %v2124
        %2190 = vmatprep.subr.mxu0 %v2127
        %2191 = vmatpush1.msra.mxu0 %v2126
        %2192 = vmatprep.subr.mxu0 %v2129
        %2193 = vmatpush1.msra.mxu0 %v2128
        %2194 = vmatprep.subr.mxu0 %v2131
        %2195 = vmatpush1.msra.mxu0 %v2130
        %2196 = vmatprep.subr.mxu0 %v2133
        %2197 = vmatpush1.msra.mxu0 %v2132
        %2198 = vmatprep.subr.mxu0 %v2135
        %2199 = vmatpush1.msra.mxu0 %v2134
        %2200 = vmatprep.subr.mxu0 %v2137
        %2201 = vmatpush1.msra.mxu0 %v2136
        %2202 = vmatprep.subr.mxu0 %v2139
        %2203 = vmatpush1.msra.mxu0 %v2138
        %2204 = vmatprep.subr.mxu0 %v2141
        %2205 = vmatpush1.msra.mxu0 %v2140
        %2206 = vmatprep.subr.mxu0 %v2143
        %2207 = vmatpush1.msra.mxu0 %v2142
        %2208 = vmatprep.subr.mxu0 %v2145
        %2209 = vmatpush1.msra.mxu0 %v2144
        %2210 = vmatprep.subr.mxu0 %v2147
        %2211 = vmatpush1.msra.mxu0 %v2146
        %2212 = vmatprep.subr.mxu0 %v2149
        %2213 = vmatpush1.msra.mxu0 %v2148
        %2214 = vmatprep.subr.mxu0 %v2151
        %2215 = vmatpush1.msra.mxu0 %v2150
        %2216 = vmatprep.subr.mxu0 %v2153
        %2217 = vmatpush1.msra.mxu0 %v2152
        %2218 = vmatprep.subr.mxu0 %v2155
        %2219 = vmatpush1.msra.mxu0 %v2154
        %2220 = vmatprep.subr.mxu0 %v2157
        %2221 = vmatpush1.msra.mxu0 %v2156
        %2222 = vmatprep.subr.mxu0 %v2159
        %2223 = vmatpush1.msra.mxu0 %v2158
        %2224 = vmatprep.subr.mxu0 %v2161
        %2225 = vmatpush1.msra.mxu0 %v2160
        %2226 = vmatprep.subr.mxu0 %v2163
        %2227 = vmatpush1.msra.mxu0 %v2162
        %2228 = vmatprep.subr.mxu0 %v2165
        %2229 = vmatpush1.msra.mxu0 %v2164
        %2230 = vmatprep.subr.mxu0 %v2167
        %2231 = vmatpush1.msra.mxu0 %v2166
        %2232 = vmatprep.subr.mxu0 %v2169
        %2233 = vmatpush1.msra.mxu0 %v2168
        %2234 = vmatprep.subr.mxu0 %v2171
        %2235 = vmatpush1.msra.mxu0 %v2170
        %2236 = vmatprep.subr.mxu0 %v2173
        %2237 = vmatpush1.msra.mxu0 %v2172
        %2238 = vmatprep.subr.mxu0 %v2175
        %2239 = vmatpush1.msra.mxu0 %v2174
        %2240 = vmatprep.subr.mxu0 %v2177
        %2241 = vmatpush1.msra.mxu0 %v2176
        %2242 = vmatprep.mubr.f32.mxu0 %v2086
        %2243 = vmatmul.mubr.f32.gmra.mrb[0].mxu0 %v2083
        %v2244 = vpop.f32.mrb[0].mxu0
        %v2245 = vadd.f32 0.0, %v2244
        %v2246 = vpop.f32.mrb[0].mxu0
        %v2247 = vadd.f32 0.0, %v2246
        %2248 = vmatprep.mubr.f32.mxu0 %v2092
        %2249 = vmatmul.mubr.f32.gmra.mrb[0].mxu0 %v2089
        %v2250 = vpop.f32.mrb[0].mxu0
        %v2251 = vadd.f32 0.0, %v2250
        %v2252 = vpop.f32.mrb[0].mxu0
        %v2253 = vadd.f32 0.0, %v2252
        %2254 = vmatprep.mubr.f32.mxu0 %v2098
        %2255 = vmatmul.mubr.f32.gmra.mrb[0].mxu0 %v2095
        %v2256 = vpop.f32.mrb[0].mxu0
        %v2257 = vadd.f32 0.0, %v2256
        %v2258 = vpop.f32.mrb[0].mxu0
        %v2259 = vadd.f32 0.0, %v2258
        %2260 = vmatprep.mubr.f32.mxu0 %v2104
        %2261 = vmatmul.mubr.f32.gmra.mrb[0].mxu0 %v2101
        %v2262 = vpop.f32.mrb[0].mxu0
        %v2263 = vadd.f32 0.0, %v2262
        %v2264 = vpop.f32.mrb[0].mxu0
        %v2265 = vadd.f32 0.0, %v2264
        %2266 = vdwg.mxu0
        %v2267 = vadd.f32 %v2041, %v2245
        %v2268 = vadd.f32 %v2042, %v2247
        %v2269 = vadd.f32 %v2043, %v2251
        %v2270 = vadd.f32 %v2044, %v2253
        %v2271 = vadd.f32 %v2045, %v2257
        %v2272 = vadd.f32 %v2046, %v2259
        %v2273 = vadd.f32 %v2047, %v2263
        %v2274 = vadd.f32 %v2048, %v2265
        %s2275 = scalar_lea.vmem [#allocation2], 64
        %v2276 = vld [vmem:[%s2275] sm:$0xff]
        %v2277 = vld [vmem:[%s2275 + $0x8] sm:$0xff]
        %v2278 = vld [vmem:[%s2275 + $0x20] sm:$0xff]
        %v2279 = vld [vmem:[%s2275 + $0x28] sm:$0xff]
        %v2280 = vld [vmem:[%s2275 + $0x40] sm:$0xff]
        %v2281 = vld [vmem:[%s2275 + $0x48] sm:$0xff]
        %v2282 = vld [vmem:[%s2275 + $0x60] sm:$0xff]
        %v2283 = vld [vmem:[%s2275 + $0x68] sm:$0xff]
        %s2284 = scalar_lea.vmem [#allocation11], 3072
        %v2285 = vld [vmem:[%s2284] sm:$0xff]
        %v2286 = vld [vmem:[%s2284 + $0x8] sm:$0xff]
        %v2287 = vld [vmem:[%s2284 + $0x10] sm:$0xff]
        %v2288 = vld [vmem:[%s2284 + $0x18] sm:$0xff]
        %v2289 = vld [vmem:[%s2284 + $0x20] sm:$0xff]
        %v2290 = vld [vmem:[%s2284 + $0x28] sm:$0xff]
        %v2291 = vld [vmem:[%s2284 + $0x30] sm:$0xff]
        %v2292 = vld [vmem:[%s2284 + $0x38] sm:$0xff]
        %v2293 = vld [vmem:[%s2284 + $0x40] sm:$0xff]
        %v2294 = vld [vmem:[%s2284 + $0x48] sm:$0xff]
        %v2295 = vld [vmem:[%s2284 + $0x50] sm:$0xff]
        %v2296 = vld [vmem:[%s2284 + $0x58] sm:$0xff]
        %v2297 = vld [vmem:[%s2284 + $0x60] sm:$0xff]
        %v2298 = vld [vmem:[%s2284 + $0x68] sm:$0xff]
        %v2299 = vld [vmem:[%s2284 + $0x70] sm:$0xff]
        %v2300 = vld [vmem:[%s2284 + $0x78] sm:$0xff]
        %v2301 = vld [vmem:[%s2284 + $0x80] sm:$0xff]
        %v2302 = vld [vmem:[%s2284 + $0x88] sm:$0xff]
        %v2303 = vld [vmem:[%s2284 + $0x90] sm:$0xff]
        %v2304 = vld [vmem:[%s2284 + $0x98] sm:$0xff]
        %v2305 = vld [vmem:[%s2284 + $0xa0] sm:$0xff]
        %v2306 = vld [vmem:[%s2284 + $0xa8] sm:$0xff]
        %v2307 = vld [vmem:[%s2284 + $0xb0] sm:$0xff]
        %v2308 = vld [vmem:[%s2284 + $0xb8] sm:$0xff]
        %v2309 = vld [vmem:[%s2284 + $0xc0] sm:$0xff]
        %v2310 = vld [vmem:[%s2284 + $0xc8] sm:$0xff]
        %v2311 = vld [vmem:[%s2284 + $0xd0] sm:$0xff]
        %v2312 = vld [vmem:[%s2284 + $0xd8] sm:$0xff]
        %v2313 = vld [vmem:[%s2284 + $0xe0] sm:$0xff]
        %v2314 = vld [vmem:[%s2284 + $0xe8] sm:$0xff]
        %v2315 = vld [vmem:[%s2284 + $0xf0] sm:$0xff]
        %v2316 = vld [vmem:[%s2284 + $0xf8] sm:$0xff]
        %v2317 = vld [vmem:[%s2284 + $0x100] sm:$0xff]
        %v2318 = vld [vmem:[%s2284 + $0x108] sm:$0xff]
        %v2319 = vld [vmem:[%s2284 + $0x110] sm:$0xff]
        %v2320 = vld [vmem:[%s2284 + $0x118] sm:$0xff]
        %v2321 = vld [vmem:[%s2284 + $0x120] sm:$0xff]
        %v2322 = vld [vmem:[%s2284 + $0x128] sm:$0xff]
        %v2323 = vld [vmem:[%s2284 + $0x130] sm:$0xff]
        %v2324 = vld [vmem:[%s2284 + $0x138] sm:$0xff]
        %v2325 = vld [vmem:[%s2284 + $0x140] sm:$0xff]
        %v2326 = vld [vmem:[%s2284 + $0x148] sm:$0xff]
        %v2327 = vld [vmem:[%s2284 + $0x150] sm:$0xff]
        %v2328 = vld [vmem:[%s2284 + $0x158] sm:$0xff]
        %v2329 = vld [vmem:[%s2284 + $0x160] sm:$0xff]
        %v2330 = vld [vmem:[%s2284 + $0x168] sm:$0xff]
        %v2331 = vld [vmem:[%s2284 + $0x170] sm:$0xff]
        %v2332 = vld [vmem:[%s2284 + $0x178] sm:$0xff]
        %v2333 = vld [vmem:[%s2284 + $0x180] sm:$0xff]
        %v2334 = vld [vmem:[%s2284 + $0x188] sm:$0xff]
        %v2335 = vld [vmem:[%s2284 + $0x190] sm:$0xff]
        %v2336 = vld [vmem:[%s2284 + $0x198] sm:$0xff]
        %v2337 = vld [vmem:[%s2284 + $0x1a0] sm:$0xff]
        %v2338 = vld [vmem:[%s2284 + $0x1a8] sm:$0xff]
        %v2339 = vld [vmem:[%s2284 + $0x1b0] sm:$0xff]
        %v2340 = vld [vmem:[%s2284 + $0x1b8] sm:$0xff]
        %v2341 = vld [vmem:[%s2284 + $0x1c0] sm:$0xff]
        %v2342 = vld [vmem:[%s2284 + $0x1c8] sm:$0xff]
        %v2343 = vld [vmem:[%s2284 + $0x1d0] sm:$0xff]
        %v2344 = vld [vmem:[%s2284 + $0x1d8] sm:$0xff]
        %v2345 = vld [vmem:[%s2284 + $0x1e0] sm:$0xff]
        %v2346 = vld [vmem:[%s2284 + $0x1e8] sm:$0xff]
        %v2347 = vld [vmem:[%s2284 + $0x1f0] sm:$0xff]
        %v2348 = vld [vmem:[%s2284 + $0x1f8] sm:$0xff]
        %2349 = vmatprep.subr.mxu0 %v2286
        %2350 = vmatpush1.msra.mxu0 %v2285
        %2351 = vmatprep.subr.mxu0 %v2288
        %2352 = vmatpush1.msra.mxu0 %v2287
        %2353 = vmatprep.subr.mxu0 %v2290
        %2354 = vmatpush1.msra.mxu0 %v2289
        %2355 = vmatprep.subr.mxu0 %v2292
        %2356 = vmatpush1.msra.mxu0 %v2291
        %2357 = vmatprep.subr.mxu0 %v2294
        %2358 = vmatpush1.msra.mxu0 %v2293
        %2359 = vmatprep.subr.mxu0 %v2296
        %2360 = vmatpush1.msra.mxu0 %v2295
        %2361 = vmatprep.subr.mxu0 %v2298
        %2362 = vmatpush1.msra.mxu0 %v2297
        %2363 = vmatprep.subr.mxu0 %v2300
        %2364 = vmatpush1.msra.mxu0 %v2299
        %2365 = vmatprep.subr.mxu0 %v2302
        %2366 = vmatpush1.msra.mxu0 %v2301
        %2367 = vmatprep.subr.mxu0 %v2304
        %2368 = vmatpush1.msra.mxu0 %v2303
        %2369 = vmatprep.subr.mxu0 %v2306
        %2370 = vmatpush1.msra.mxu0 %v2305
        %2371 = vmatprep.subr.mxu0 %v2308
        %2372 = vmatpush1.msra.mxu0 %v2307
        %2373 = vmatprep.subr.mxu0 %v2310
        %2374 = vmatpush1.msra.mxu0 %v2309
        %2375 = vmatprep.subr.mxu0 %v2312
        %2376 = vmatpush1.msra.mxu0 %v2311
        %2377 = vmatprep.subr.mxu0 %v2314
        %2378 = vmatpush1.msra.mxu0 %v2313
        %2379 = vmatprep.subr.mxu0 %v2316
        %2380 = vmatpush1.msra.mxu0 %v2315
        %2381 = vmatprep.subr.mxu0 %v2318
        %2382 = vmatpush1.msra.mxu0 %v2317
        %2383 = vmatprep.subr.mxu0 %v2320
        %2384 = vmatpush1.msra.mxu0 %v2319
        %2385 = vmatprep.subr.mxu0 %v2322
        %2386 = vmatpush1.msra.mxu0 %v2321
        %2387 = vmatprep.subr.mxu0 %v2324
        %2388 = vmatpush1.msra.mxu0 %v2323
        %2389 = vmatprep.subr.mxu0 %v2326
        %2390 = vmatpush1.msra.mxu0 %v2325
        %2391 = vmatprep.subr.mxu0 %v2328
        %2392 = vmatpush1.msra.mxu0 %v2327
        %2393 = vmatprep.subr.mxu0 %v2330
        %2394 = vmatpush1.msra.mxu0 %v2329
        %2395 = vmatprep.subr.mxu0 %v2332
        %2396 = vmatpush1.msra.mxu0 %v2331
        %2397 = vmatprep.subr.mxu0 %v2334
        %2398 = vmatpush1.msra.mxu0 %v2333
        %2399 = vmatprep.subr.mxu0 %v2336
        %2400 = vmatpush1.msra.mxu0 %v2335
        %2401 = vmatprep.subr.mxu0 %v2338
        %2402 = vmatpush1.msra.mxu0 %v2337
        %2403 = vmatprep.subr.mxu0 %v2340
        %2404 = vmatpush1.msra.mxu0 %v2339
        %2405 = vmatprep.subr.mxu0 %v2342
        %2406 = vmatpush1.msra.mxu0 %v2341
        %2407 = vmatprep.subr.mxu0 %v2344
        %2408 = vmatpush1.msra.mxu0 %v2343
        %2409 = vmatprep.subr.mxu0 %v2346
        %2410 = vmatpush1.msra.mxu0 %v2345
        %2411 = vmatprep.subr.mxu0 %v2348
        %2412 = vmatpush1.msra.mxu0 %v2347
        %2413 = vmatprep.mubr.f32.mxu0 %v2277
        %2414 = vmatmul.mubr.f32.gmra.mrb[0].mxu0 %v2276
        %v2415 = vpop.f32.mrb[0].mxu0
        %v2416 = vadd.f32 0.0, %v2415
        %v2417 = vpop.f32.mrb[0].mxu0
        %v2418 = vadd.f32 0.0, %v2417
        %2419 = vmatprep.mubr.f32.mxu0 %v2279
        %2420 = vmatmul.mubr.f32.gmra.mrb[0].mxu0 %v2278
        %v2421 = vpop.f32.mrb[0].mxu0
        %v2422 = vadd.f32 0.0, %v2421
        %v2423 = vpop.f32.mrb[0].mxu0
        %v2424 = vadd.f32 0.0, %v2423
        %2425 = vmatprep.mubr.f32.mxu0 %v2281
        %2426 = vmatmul.mubr.f32.gmra.mrb[0].mxu0 %v2280
        %v2427 = vpop.f32.mrb[0].mxu0
        %v2428 = vadd.f32 0.0, %v2427
        %v2429 = vpop.f32.mrb[0].mxu0
        %v2430 = vadd.f32 0.0, %v2429
        %2431 = vmatprep.mubr.f32.mxu0 %v2283
        %2432 = vmatmul.mubr.f32.gmra.mrb[0].mxu0 %v2282
        %v2433 = vpop.f32.mrb[0].mxu0
        %v2434 = vadd.f32 0.0, %v2433
        %v2435 = vpop.f32.mrb[0].mxu0
        %v2436 = vadd.f32 0.0, %v2435
        %2437 = vdwg.mxu0
        %v2438 = vadd.f32 %v2267, %v2416
        %v2439 = vadd.f32 %v2268, %v2418
        %v2440 = vadd.f32 %v2269, %v2422
        %v2441 = vadd.f32 %v2270, %v2424
        %v2442 = vadd.f32 %v2271, %v2428
        %v2443 = vadd.f32 %v2272, %v2430
        %v2444 = vadd.f32 %v2273, %v2434
        %v2445 = vadd.f32 %v2274, %v2436
        %v2446 = vld [vmem:[%s2275] sm:$0xfe]
        %v2447 = vld [vmem:[%s2275 + $0x8] sm:$0xfe]
        %v2448 = vld [vmem:[%s2275 + $0x10] sm:$0x1]
        %v2449 = vld [vmem:[%s2275 + $0x18] sm:$0x1]
        %v2450 = vld [vmem:[%s2275 + $0x20] sm:$0xfe]
        %v2451 = vld [vmem:[%s2275 + $0x28] sm:$0xfe]
        %v2452 = vld [vmem:[%s2275 + $0x30] sm:$0x1]
        %v2453 = vld [vmem:[%s2275 + $0x38] sm:$0x1]
        %v2454 = vld [vmem:[%s2275 + $0x40] sm:$0xfe]
        %v2455 = vld [vmem:[%s2275 + $0x48] sm:$0xfe]
        %v2456 = vld [vmem:[%s2275 + $0x50] sm:$0x1]
        %v2457 = vld [vmem:[%s2275 + $0x58] sm:$0x1]
        %v2458 = vld [vmem:[%s2275 + $0x60] sm:$0xfe]
        %v2459 = vld [vmem:[%s2275 + $0x68] sm:$0xfe]
        %v2460 = vld [vmem:[%s2275 + $0x70] sm:$0x1]
        %v2461 = vld [vmem:[%s2275 + $0x78] sm:$0x1]
        %v2478 = vrot.slane %v2446, 1
        %v2479 = vrot.slane %v2448, 1
        %v2480 = vsel %vm1150, %v2478, %v2479
        %v2481 = vrot.slane %v2447, 1
        %v2482 = vrot.slane %v2449, 1
        %v2483 = vsel %vm1150, %v2481, %v2482
        %v2484 = vrot.slane %v2450, 1
        %v2485 = vrot.slane %v2452, 1
        %v2486 = vsel %vm1150, %v2484, %v2485
        %v2487 = vrot.slane %v2451, 1
        %v2488 = vrot.slane %v2453, 1
        %v2489 = vsel %vm1150, %v2487, %v2488
        %v2490 = vrot.slane %v2454, 1
        %v2491 = vrot.slane %v2456, 1
        %v2492 = vsel %vm1150, %v2490, %v2491
        %v2493 = vrot.slane %v2455, 1
        %v2494 = vrot.slane %v2457, 1
        %v2495 = vsel %vm1150, %v2493, %v2494
        %v2496 = vrot.slane %v2458, 1
        %v2497 = vrot.slane %v2460, 1
        %v2498 = vsel %vm1150, %v2496, %v2497
        %v2499 = vrot.slane %v2459, 1
        %v2500 = vrot.slane %v2461, 1
        %v2501 = vsel %vm1150, %v2499, %v2500
        %s2510 = scalar_lea.vmem [#allocation11], 3584
        %v2511 = vld [vmem:[%s2510] sm:$0xff]
        %v2512 = vld [vmem:[%s2510 + $0x8] sm:$0xff]
        %v2513 = vld [vmem:[%s2510 + $0x10] sm:$0xff]
        %v2514 = vld [vmem:[%s2510 + $0x18] sm:$0xff]
        %v2515 = vld [vmem:[%s2510 + $0x20] sm:$0xff]
        %v2516 = vld [vmem:[%s2510 + $0x28] sm:$0xff]
        %v2517 = vld [vmem:[%s2510 + $0x30] sm:$0xff]
        %v2518 = vld [vmem:[%s2510 + $0x38] sm:$0xff]
        %v2519 = vld [vmem:[%s2510 + $0x40] sm:$0xff]
        %v2520 = vld [vmem:[%s2510 + $0x48] sm:$0xff]
        %v2521 = vld [vmem:[%s2510 + $0x50] sm:$0xff]
        %v2522 = vld [vmem:[%s2510 + $0x58] sm:$0xff]
        %v2523 = vld [vmem:[%s2510 + $0x60] sm:$0xff]
        %v2524 = vld [vmem:[%s2510 + $0x68] sm:$0xff]
        %v2525 = vld [vmem:[%s2510 + $0x70] sm:$0xff]
        %v2526 = vld [vmem:[%s2510 + $0x78] sm:$0xff]
        %v2527 = vld [vmem:[%s2510 + $0x80] sm:$0xff]
        %v2528 = vld [vmem:[%s2510 + $0x88] sm:$0xff]
        %v2529 = vld [vmem:[%s2510 + $0x90] sm:$0xff]
        %v2530 = vld [vmem:[%s2510 + $0x98] sm:$0xff]
        %v2531 = vld [vmem:[%s2510 + $0xa0] sm:$0xff]
        %v2532 = vld [vmem:[%s2510 + $0xa8] sm:$0xff]
        %v2533 = vld [vmem:[%s2510 + $0xb0] sm:$0xff]
        %v2534 = vld [vmem:[%s2510 + $0xb8] sm:$0xff]
        %v2535 = vld [vmem:[%s2510 + $0xc0] sm:$0xff]
        %v2536 = vld [vmem:[%s2510 + $0xc8] sm:$0xff]
        %v2537 = vld [vmem:[%s2510 + $0xd0] sm:$0xff]
        %v2538 = vld [vmem:[%s2510 + $0xd8] sm:$0xff]
        %v2539 = vld [vmem:[%s2510 + $0xe0] sm:$0xff]
        %v2540 = vld [vmem:[%s2510 + $0xe8] sm:$0xff]
        %v2541 = vld [vmem:[%s2510 + $0xf0] sm:$0xff]
        %v2542 = vld [vmem:[%s2510 + $0xf8] sm:$0xff]
        %v2543 = vld [vmem:[%s2510 + $0x100] sm:$0xff]
        %v2544 = vld [vmem:[%s2510 + $0x108] sm:$0xff]
        %v2545 = vld [vmem:[%s2510 + $0x110] sm:$0xff]
        %v2546 = vld [vmem:[%s2510 + $0x118] sm:$0xff]
        %v2547 = vld [vmem:[%s2510 + $0x120] sm:$0xff]
        %v2548 = vld [vmem:[%s2510 + $0x128] sm:$0xff]
        %v2549 = vld [vmem:[%s2510 + $0x130] sm:$0xff]
        %v2550 = vld [vmem:[%s2510 + $0x138] sm:$0xff]
        %v2551 = vld [vmem:[%s2510 + $0x140] sm:$0xff]
        %v2552 = vld [vmem:[%s2510 + $0x148] sm:$0xff]
        %v2553 = vld [vmem:[%s2510 + $0x150] sm:$0xff]
        %v2554 = vld [vmem:[%s2510 + $0x158] sm:$0xff]
        %v2555 = vld [vmem:[%s2510 + $0x160] sm:$0xff]
        %v2556 = vld [vmem:[%s2510 + $0x168] sm:$0xff]
        %v2557 = vld [vmem:[%s2510 + $0x170] sm:$0xff]
        %v2558 = vld [vmem:[%s2510 + $0x178] sm:$0xff]
        %v2559 = vld [vmem:[%s2510 + $0x180] sm:$0xff]
        %v2560 = vld [vmem:[%s2510 + $0x188] sm:$0xff]
        %v2561 = vld [vmem:[%s2510 + $0x190] sm:$0xff]
        %v2562 = vld [vmem:[%s2510 + $0x198] sm:$0xff]
        %v2563 = vld [vmem:[%s2510 + $0x1a0] sm:$0xff]
        %v2564 = vld [vmem:[%s2510 + $0x1a8] sm:$0xff]
        %v2565 = vld [vmem:[%s2510 + $0x1b0] sm:$0xff]
        %v2566 = vld [vmem:[%s2510 + $0x1b8] sm:$0xff]
        %v2567 = vld [vmem:[%s2510 + $0x1c0] sm:$0xff]
        %v2568 = vld [vmem:[%s2510 + $0x1c8] sm:$0xff]
        %v2569 = vld [vmem:[%s2510 + $0x1d0] sm:$0xff]
        %v2570 = vld [vmem:[%s2510 + $0x1d8] sm:$0xff]
        %v2571 = vld [vmem:[%s2510 + $0x1e0] sm:$0xff]
        %v2572 = vld [vmem:[%s2510 + $0x1e8] sm:$0xff]
        %v2573 = vld [vmem:[%s2510 + $0x1f0] sm:$0xff]
        %v2574 = vld [vmem:[%s2510 + $0x1f8] sm:$0xff]
        %2575 = vmatprep.subr.mxu0 %v2512
        %2576 = vmatpush1.msra.mxu0 %v2511
        %2577 = vmatprep.subr.mxu0 %v2514
        %2578 = vmatpush1.msra.mxu0 %v2513
        %2579 = vmatprep.subr.mxu0 %v2516
        %2580 = vmatpush1.msra.mxu0 %v2515
        %2581 = vmatprep.subr.mxu0 %v2518
        %2582 = vmatpush1.msra.mxu0 %v2517
        %2583 = vmatprep.subr.mxu0 %v2520
        %2584 = vmatpush1.msra.mxu0 %v2519
        %2585 = vmatprep.subr.mxu0 %v2522
        %2586 = vmatpush1.msra.mxu0 %v2521
        %2587 = vmatprep.subr.mxu0 %v2524
        %2588 = vmatpush1.msra.mxu0 %v2523
        %2589 = vmatprep.subr.mxu0 %v2526
        %2590 = vmatpush1.msra.mxu0 %v2525
        %2591 = vmatprep.subr.mxu0 %v2528
        %2592 = vmatpush1.msra.mxu0 %v2527
        %2593 = vmatprep.subr.mxu0 %v2530
        %2594 = vmatpush1.msra.mxu0 %v2529
        %2595 = vmatprep.subr.mxu0 %v2532
        %2596 = vmatpush1.msra.mxu0 %v2531
        %2597 = vmatprep.subr.mxu0 %v2534
        %2598 = vmatpush1.msra.mxu0 %v2533
        %2599 = vmatprep.subr.mxu0 %v2536
        %2600 = vmatpush1.msra.mxu0 %v2535
        %2601 = vmatprep.subr.mxu0 %v2538
        %2602 = vmatpush1.msra.mxu0 %v2537
        %2603 = vmatprep.subr.mxu0 %v2540
        %2604 = vmatpush1.msra.mxu0 %v2539
        %2605 = vmatprep.subr.mxu0 %v2542
        %2606 = vmatpush1.msra.mxu0 %v2541
        %2607 = vmatprep.subr.mxu0 %v2544
        %2608 = vmatpush1.msra.mxu0 %v2543
        %2609 = vmatprep.subr.mxu0 %v2546
        %2610 = vmatpush1.msra.mxu0 %v2545
        %2611 = vmatprep.subr.mxu0 %v2548
        %2612 = vmatpush1.msra.mxu0 %v2547
        %2613 = vmatprep.subr.mxu0 %v2550
        %2614 = vmatpush1.msra.mxu0 %v2549
        %2615 = vmatprep.subr.mxu0 %v2552
        %2616 = vmatpush1.msra.mxu0 %v2551
        %2617 = vmatprep.subr.mxu0 %v2554
        %2618 = vmatpush1.msra.mxu0 %v2553
        %2619 = vmatprep.subr.mxu0 %v2556
        %2620 = vmatpush1.msra.mxu0 %v2555
        %2621 = vmatprep.subr.mxu0 %v2558
        %2622 = vmatpush1.msra.mxu0 %v2557
        %2623 = vmatprep.subr.mxu0 %v2560
        %2624 = vmatpush1.msra.mxu0 %v2559
        %2625 = vmatprep.subr.mxu0 %v2562
        %2626 = vmatpush1.msra.mxu0 %v2561
        %2627 = vmatprep.subr.mxu0 %v2564
        %2628 = vmatpush1.msra.mxu0 %v2563
        %2629 = vmatprep.subr.mxu0 %v2566
        %2630 = vmatpush1.msra.mxu0 %v2565
        %2631 = vmatprep.subr.mxu0 %v2568
        %2632 = vmatpush1.msra.mxu0 %v2567
        %2633 = vmatprep.subr.mxu0 %v2570
        %2634 = vmatpush1.msra.mxu0 %v2569
        %2635 = vmatprep.subr.mxu0 %v2572
        %2636 = vmatpush1.msra.mxu0 %v2571
        %2637 = vmatprep.subr.mxu0 %v2574
        %2638 = vmatpush1.msra.mxu0 %v2573
        %2639 = vmatprep.mubr.f32.mxu0 %v2483
        %2640 = vmatmul.mubr.f32.gmra.mrb[0].mxu0 %v2480
        %v2641 = vpop.f32.mrb[0].mxu0
        %v2642 = vadd.f32 0.0, %v2641
        %v2643 = vpop.f32.mrb[0].mxu0
        %v2644 = vadd.f32 0.0, %v2643
        %2645 = vmatprep.mubr.f32.mxu0 %v2489
        %2646 = vmatmul.mubr.f32.gmra.mrb[0].mxu0 %v2486
        %v2647 = vpop.f32.mrb[0].mxu0
        %v2648 = vadd.f32 0.0, %v2647
        %v2649 = vpop.f32.mrb[0].mxu0
        %v2650 = vadd.f32 0.0, %v2649
        %2651 = vmatprep.mubr.f32.mxu0 %v2495
        %2652 = vmatmul.mubr.f32.gmra.mrb[0].mxu0 %v2492
        %v2653 = vpop.f32.mrb[0].mxu0
        %v2654 = vadd.f32 0.0, %v2653
        %v2655 = vpop.f32.mrb[0].mxu0
        %v2656 = vadd.f32 0.0, %v2655
        %2657 = vmatprep.mubr.f32.mxu0 %v2501
        %2658 = vmatmul.mubr.f32.gmra.mrb[0].mxu0 %v2498
        %v2659 = vpop.f32.mrb[0].mxu0
        %v2660 = vadd.f32 0.0, %v2659
        %v2661 = vpop.f32.mrb[0].mxu0
        %v2662 = vadd.f32 0.0, %v2661
        %2663 = vdwg.mxu0
        %v2664 = vadd.f32 %v2438, %v2642
        %v2665 = vadd.f32 %v2439, %v2644
        %v2666 = vadd.f32 %v2440, %v2648
        %v2667 = vadd.f32 %v2441, %v2650
        %v2668 = vadd.f32 %v2442, %v2654
        %v2669 = vadd.f32 %v2443, %v2656
        %v2670 = vadd.f32 %v2444, %v2660
        %v2671 = vadd.f32 %v2445, %v2662
        %v2672 = vld [vmem:[%s2275] sm:$0xfc]
        %v2673 = vld [vmem:[%s2275 + $0x8] sm:$0xfc]
        %v2674 = vld [vmem:[%s2275 + $0x10] sm:$0x3]
        %v2675 = vld [vmem:[%s2275 + $0x18] sm:$0x3]
        %v2676 = vld [vmem:[%s2275 + $0x20] sm:$0xfc]
        %v2677 = vld [vmem:[%s2275 + $0x28] sm:$0xfc]
        %v2678 = vld [vmem:[%s2275 + $0x30] sm:$0x3]
        %v2679 = vld [vmem:[%s2275 + $0x38] sm:$0x3]
        %v2680 = vld [vmem:[%s2275 + $0x40] sm:$0xfc]
        %v2681 = vld [vmem:[%s2275 + $0x48] sm:$0xfc]
        %v2682 = vld [vmem:[%s2275 + $0x50] sm:$0x3]
        %v2683 = vld [vmem:[%s2275 + $0x58] sm:$0x3]
        %v2684 = vld [vmem:[%s2275 + $0x60] sm:$0xfc]
        %v2685 = vld [vmem:[%s2275 + $0x68] sm:$0xfc]
        %v2686 = vld [vmem:[%s2275 + $0x70] sm:$0x3]
        %v2687 = vld [vmem:[%s2275 + $0x78] sm:$0x3]
        %v2704 = vrot.slane %v2672, 2
        %v2705 = vrot.slane %v2674, 2
        %v2706 = vsel %vm1458, %v2704, %v2705
        %v2707 = vrot.slane %v2673, 2
        %v2708 = vrot.slane %v2675, 2
        %v2709 = vsel %vm1458, %v2707, %v2708
        %v2710 = vrot.slane %v2676, 2
        %v2711 = vrot.slane %v2678, 2
        %v2712 = vsel %vm1458, %v2710, %v2711
        %v2713 = vrot.slane %v2677, 2
        %v2714 = vrot.slane %v2679, 2
        %v2715 = vsel %vm1458, %v2713, %v2714
        %v2716 = vrot.slane %v2680, 2
        %v2717 = vrot.slane %v2682, 2
        %v2718 = vsel %vm1458, %v2716, %v2717
        %v2719 = vrot.slane %v2681, 2
        %v2720 = vrot.slane %v2683, 2
        %v2721 = vsel %vm1458, %v2719, %v2720
        %v2722 = vrot.slane %v2684, 2
        %v2723 = vrot.slane %v2686, 2
        %v2724 = vsel %vm1458, %v2722, %v2723
        %v2725 = vrot.slane %v2685, 2
        %v2726 = vrot.slane %v2687, 2
        %v2727 = vsel %vm1458, %v2725, %v2726
        %s2736 = scalar_lea.vmem [#allocation11], 4096
        %v2737 = vld [vmem:[%s2736] sm:$0xff]
        %v2738 = vld [vmem:[%s2736 + $0x8] sm:$0xff]
        %v2739 = vld [vmem:[%s2736 + $0x10] sm:$0xff]
        %v2740 = vld [vmem:[%s2736 + $0x18] sm:$0xff]
        %v2741 = vld [vmem:[%s2736 + $0x20] sm:$0xff]
        %v2742 = vld [vmem:[%s2736 + $0x28] sm:$0xff]
        %v2743 = vld [vmem:[%s2736 + $0x30] sm:$0xff]
        %v2744 = vld [vmem:[%s2736 + $0x38] sm:$0xff]
        %v2745 = vld [vmem:[%s2736 + $0x40] sm:$0xff]
        %v2746 = vld [vmem:[%s2736 + $0x48] sm:$0xff]
        %v2747 = vld [vmem:[%s2736 + $0x50] sm:$0xff]
        %v2748 = vld [vmem:[%s2736 + $0x58] sm:$0xff]
        %v2749 = vld [vmem:[%s2736 + $0x60] sm:$0xff]
        %v2750 = vld [vmem:[%s2736 + $0x68] sm:$0xff]
        %v2751 = vld [vmem:[%s2736 + $0x70] sm:$0xff]
        %v2752 = vld [vmem:[%s2736 + $0x78] sm:$0xff]
        %v2753 = vld [vmem:[%s2736 + $0x80] sm:$0xff]
        %v2754 = vld [vmem:[%s2736 + $0x88] sm:$0xff]
        %v2755 = vld [vmem:[%s2736 + $0x90] sm:$0xff]
        %v2756 = vld [vmem:[%s2736 + $0x98] sm:$0xff]
        %v2757 = vld [vmem:[%s2736 + $0xa0] sm:$0xff]
        %v2758 = vld [vmem:[%s2736 + $0xa8] sm:$0xff]
        %v2759 = vld [vmem:[%s2736 + $0xb0] sm:$0xff]
        %v2760 = vld [vmem:[%s2736 + $0xb8] sm:$0xff]
        %v2761 = vld [vmem:[%s2736 + $0xc0] sm:$0xff]
        %v2762 = vld [vmem:[%s2736 + $0xc8] sm:$0xff]
        %v2763 = vld [vmem:[%s2736 + $0xd0] sm:$0xff]
        %v2764 = vld [vmem:[%s2736 + $0xd8] sm:$0xff]
        %v2765 = vld [vmem:[%s2736 + $0xe0] sm:$0xff]
        %v2766 = vld [vmem:[%s2736 + $0xe8] sm:$0xff]
        %v2767 = vld [vmem:[%s2736 + $0xf0] sm:$0xff]
        %v2768 = vld [vmem:[%s2736 + $0xf8] sm:$0xff]
        %v2769 = vld [vmem:[%s2736 + $0x100] sm:$0xff]
        %v2770 = vld [vmem:[%s2736 + $0x108] sm:$0xff]
        %v2771 = vld [vmem:[%s2736 + $0x110] sm:$0xff]
        %v2772 = vld [vmem:[%s2736 + $0x118] sm:$0xff]
        %v2773 = vld [vmem:[%s2736 + $0x120] sm:$0xff]
        %v2774 = vld [vmem:[%s2736 + $0x128] sm:$0xff]
        %v2775 = vld [vmem:[%s2736 + $0x130] sm:$0xff]
        %v2776 = vld [vmem:[%s2736 + $0x138] sm:$0xff]
        %v2777 = vld [vmem:[%s2736 + $0x140] sm:$0xff]
        %v2778 = vld [vmem:[%s2736 + $0x148] sm:$0xff]
        %v2779 = vld [vmem:[%s2736 + $0x150] sm:$0xff]
        %v2780 = vld [vmem:[%s2736 + $0x158] sm:$0xff]
        %v2781 = vld [vmem:[%s2736 + $0x160] sm:$0xff]
        %v2782 = vld [vmem:[%s2736 + $0x168] sm:$0xff]
        %v2783 = vld [vmem:[%s2736 + $0x170] sm:$0xff]
        %v2784 = vld [vmem:[%s2736 + $0x178] sm:$0xff]
        %v2785 = vld [vmem:[%s2736 + $0x180] sm:$0xff]
        %v2786 = vld [vmem:[%s2736 + $0x188] sm:$0xff]
        %v2787 = vld [vmem:[%s2736 + $0x190] sm:$0xff]
        %v2788 = vld [vmem:[%s2736 + $0x198] sm:$0xff]
        %v2789 = vld [vmem:[%s2736 + $0x1a0] sm:$0xff]
        %v2790 = vld [vmem:[%s2736 + $0x1a8] sm:$0xff]
        %v2791 = vld [vmem:[%s2736 + $0x1b0] sm:$0xff]
        %v2792 = vld [vmem:[%s2736 + $0x1b8] sm:$0xff]
        %v2793 = vld [vmem:[%s2736 + $0x1c0] sm:$0xff]
        %v2794 = vld [vmem:[%s2736 + $0x1c8] sm:$0xff]
        %v2795 = vld [vmem:[%s2736 + $0x1d0] sm:$0xff]
        %v2796 = vld [vmem:[%s2736 + $0x1d8] sm:$0xff]
        %v2797 = vld [vmem:[%s2736 + $0x1e0] sm:$0xff]
        %v2798 = vld [vmem:[%s2736 + $0x1e8] sm:$0xff]
        %v2799 = vld [vmem:[%s2736 + $0x1f0] sm:$0xff]
        %v2800 = vld [vmem:[%s2736 + $0x1f8] sm:$0xff]
        %2801 = vmatprep.subr.mxu0 %v2738
        %2802 = vmatpush1.msra.mxu0 %v2737
        %2803 = vmatprep.subr.mxu0 %v2740
        %2804 = vmatpush1.msra.mxu0 %v2739
        %2805 = vmatprep.subr.mxu0 %v2742
        %2806 = vmatpush1.msra.mxu0 %v2741
        %2807 = vmatprep.subr.mxu0 %v2744
        %2808 = vmatpush1.msra.mxu0 %v2743
        %2809 = vmatprep.subr.mxu0 %v2746
        %2810 = vmatpush1.msra.mxu0 %v2745
        %2811 = vmatprep.subr.mxu0 %v2748
        %2812 = vmatpush1.msra.mxu0 %v2747
        %2813 = vmatprep.subr.mxu0 %v2750
        %2814 = vmatpush1.msra.mxu0 %v2749
        %2815 = vmatprep.subr.mxu0 %v2752
        %2816 = vmatpush1.msra.mxu0 %v2751
        %2817 = vmatprep.subr.mxu0 %v2754
        %2818 = vmatpush1.msra.mxu0 %v2753
        %2819 = vmatprep.subr.mxu0 %v2756
        %2820 = vmatpush1.msra.mxu0 %v2755
        %2821 = vmatprep.subr.mxu0 %v2758
        %2822 = vmatpush1.msra.mxu0 %v2757
        %2823 = vmatprep.subr.mxu0 %v2760
        %2824 = vmatpush1.msra.mxu0 %v2759
        %2825 = vmatprep.subr.mxu0 %v2762
        %2826 = vmatpush1.msra.mxu0 %v2761
        %2827 = vmatprep.subr.mxu0 %v2764
        %2828 = vmatpush1.msra.mxu0 %v2763
        %2829 = vmatprep.subr.mxu0 %v2766
        %2830 = vmatpush1.msra.mxu0 %v2765
        %2831 = vmatprep.subr.mxu0 %v2768
        %2832 = vmatpush1.msra.mxu0 %v2767
        %2833 = vmatprep.subr.mxu0 %v2770
        %2834 = vmatpush1.msra.mxu0 %v2769
        %2835 = vmatprep.subr.mxu0 %v2772
        %2836 = vmatpush1.msra.mxu0 %v2771
        %2837 = vmatprep.subr.mxu0 %v2774
        %2838 = vmatpush1.msra.mxu0 %v2773
        %2839 = vmatprep.subr.mxu0 %v2776
        %2840 = vmatpush1.msra.mxu0 %v2775
        %2841 = vmatprep.subr.mxu0 %v2778
        %2842 = vmatpush1.msra.mxu0 %v2777
        %2843 = vmatprep.subr.mxu0 %v2780
        %2844 = vmatpush1.msra.mxu0 %v2779
        %2845 = vmatprep.subr.mxu0 %v2782
        %2846 = vmatpush1.msra.mxu0 %v2781
        %2847 = vmatprep.subr.mxu0 %v2784
        %2848 = vmatpush1.msra.mxu0 %v2783
        %2849 = vmatprep.subr.mxu0 %v2786
        %2850 = vmatpush1.msra.mxu0 %v2785
        %2851 = vmatprep.subr.mxu0 %v2788
        %2852 = vmatpush1.msra.mxu0 %v2787
        %2853 = vmatprep.subr.mxu0 %v2790
        %2854 = vmatpush1.msra.mxu0 %v2789
        %2855 = vmatprep.subr.mxu0 %v2792
        %2856 = vmatpush1.msra.mxu0 %v2791
        %2857 = vmatprep.subr.mxu0 %v2794
        %2858 = vmatpush1.msra.mxu0 %v2793
        %2859 = vmatprep.subr.mxu0 %v2796
        %2860 = vmatpush1.msra.mxu0 %v2795
        %2861 = vmatprep.subr.mxu0 %v2798
        %2862 = vmatpush1.msra.mxu0 %v2797
        %2863 = vmatprep.subr.mxu0 %v2800
        %2864 = vmatpush1.msra.mxu0 %v2799
        %2865 = vmatprep.mubr.f32.mxu0 %v2709
        %2866 = vmatmul.mubr.f32.gmra.mrb[0].mxu0 %v2706
        %v2867 = vpop.f32.mrb[0].mxu0
        %v2868 = vadd.f32 0.0, %v2867
        %v2869 = vpop.f32.mrb[0].mxu0
        %v2870 = vadd.f32 0.0, %v2869
        %2871 = vmatprep.mubr.f32.mxu0 %v2715
        %2872 = vmatmul.mubr.f32.gmra.mrb[0].mxu0 %v2712
        %v2873 = vpop.f32.mrb[0].mxu0
        %v2874 = vadd.f32 0.0, %v2873
        %v2875 = vpop.f32.mrb[0].mxu0
        %v2876 = vadd.f32 0.0, %v2875
        %2877 = vmatprep.mubr.f32.mxu0 %v2721
        %2878 = vmatmul.mubr.f32.gmra.mrb[0].mxu0 %v2718
        %v2879 = vpop.f32.mrb[0].mxu0
        %v2880 = vadd.f32 0.0, %v2879
        %v2881 = vpop.f32.mrb[0].mxu0
        %v2882 = vadd.f32 0.0, %v2881
        %2883 = vmatprep.mubr.f32.mxu0 %v2727
        %2884 = vmatmul.mubr.f32.gmra.mrb[0].mxu0 %v2724
        %v2885 = vpop.f32.mrb[0].mxu0
        %v2886 = vadd.f32 0.0, %v2885
        %v2887 = vpop.f32.mrb[0].mxu0
        %v2888 = vadd.f32 0.0, %v2887
        %2889 = vdwg.mxu0
        %v2890 = vadd.f32 %v2664, %v2868
        %v2891 = vadd.f32 %v2665, %v2870
        %v2892 = vadd.f32 %v2666, %v2874
        %v2893 = vadd.f32 %v2667, %v2876
        %v2894 = vadd.f32 %v2668, %v2880
        %v2895 = vadd.f32 %v2669, %v2882
        %v2896 = vadd.f32 %v2670, %v2886
        %v2897 = vadd.f32 %v2671, %v2888
        %v2899 = vlaneseq
        %v2900 = vshrl.u32 %v2899, 7
        %v2901 = vsub.s32 0, %v2900
        %v2902 = vrot.slane %v823, %v2901
        %v2903 = vlaneseq
        %v2904 = vshrl.u32 %v2903, 7
        %v2905 = vsub.s32 1, %v2904
        %v2906 = vrot.slane %v823, %v2905
        %v2909 = vadd.f32 %v2890, %v2902
        %v2910 = vadd.f32 %v2891, %v2906
        %v2911 = vadd.f32 %v2892, %v2902
        %v2912 = vadd.f32 %v2893, %v2906
        %v2913 = vadd.f32 %v2894, %v2902
        %v2914 = vadd.f32 %v2895, %v2906
        %v2915 = vadd.f32 %v2896, %v2902
        %v2916 = vadd.f32 %v2897, %v2906
        %v2917 = vld [vmem:[#allocation14] sm:$0x3]
        %v2918 = vld [vmem:[#allocation15] sm:$0x3]
        %v2919 = vadd.f32 %v2909, %v2911
        %v2920 = vadd.f32 %v2919, %v2913
        %v2921 = vadd.f32 %v2920, %v2915
        %v2922 = vrot.slane %v2921, 4
        %v2923 = vadd.f32 %v2921, %v2922
        %v2924 = vrot.slane %v2923, 2
        %v2925 = vadd.f32 %v2923, %v2924
        %v2926 = vrot.slane %v2925, 1
        %v2927 = vadd.f32 %v2925, %v2926
        %v2928 = vadd.f32 %v2910, %v2912
        %v2929 = vadd.f32 %v2928, %v2914
        %v2930 = vadd.f32 %v2929, %v2916
        %v2931 = vrot.slane %v2930, 4
        %v2932 = vadd.f32 %v2930, %v2931
        %v2933 = vrot.slane %v2932, 2
        %v2934 = vadd.f32 %v2932, %v2933
        %v2935 = vrot.slane %v2934, 1
        %v2936 = vadd.f32 %v2934, %v2935
        %v2937 = vmul.f32 %v2909, %v2909
        %v2938 = vmul.f32 %v2910, %v2910
        %v2939 = vmul.f32 %v2911, %v2911
        %v2940 = vmul.f32 %v2912, %v2912
        %v2941 = vmul.f32 %v2913, %v2913
        %v2942 = vmul.f32 %v2914, %v2914
        %v2943 = vmul.f32 %v2915, %v2915
        %v2944 = vmul.f32 %v2916, %v2916
        %v2945 = vadd.f32 %v2937, %v2939
        %v2946 = vadd.f32 %v2945, %v2941
        %v2947 = vadd.f32 %v2946, %v2943
        %v2948 = vrot.slane %v2947, 4
        %v2949 = vadd.f32 %v2947, %v2948
        %v2950 = vrot.slane %v2949, 2
        %v2951 = vadd.f32 %v2949, %v2950
        %v2952 = vrot.slane %v2951, 1
        %v2953 = vadd.f32 %v2951, %v2952
        %v2954 = vadd.f32 %v2938, %v2940
        %v2955 = vadd.f32 %v2954, %v2942
        %v2956 = vadd.f32 %v2955, %v2944
        %v2957 = vrot.slane %v2956, 4
        %v2958 = vadd.f32 %v2956, %v2957
        %v2959 = vrot.slane %v2958, 2
        %v2960 = vadd.f32 %v2958, %v2959
        %v2961 = vrot.slane %v2960, 1
        %v2962 = vadd.f32 %v2960, %v2961
        %v2963 = vsel %vm615, %v2927, %v2953
        %v2964 = vsel %vm615, %v2936, %v2962
        %2965 = vmatprep.subr.mxu0 %v498
        %2966 = vmatpush1.msra.mxu0 %v497
        %2967 = vmatprep.subr.mxu0 %v500
        %2968 = vmatpush1.msra.mxu0 %v499
        %2969 = vmatprep.subr.mxu0 %v502
        %2970 = vmatpush1.msra.mxu0 %v501
        %2971 = vmatprep.subr.mxu0 %v504
        %2972 = vmatpush1.msra.mxu0 %v503
        %2973 = vmatprep.subr.mxu0 %v506
        %2974 = vmatpush1.msra.mxu0 %v505
        %2975 = vmatprep.subr.mxu0 %v508
        %2976 = vmatpush1.msra.mxu0 %v507
        %2977 = vmatprep.subr.mxu0 %v510
        %2978 = vmatpush1.msra.mxu0 %v509
        %2979 = vmatprep.subr.mxu0 %v512
        %2980 = vmatpush1.msra.mxu0 %v511
        %2981 = vmatprep.subr.mxu0 %v514
        %2982 = vmatpush1.msra.mxu0 %v513
        %2983 = vmatprep.subr.mxu0 %v516
        %2984 = vmatpush1.msra.mxu0 %v515
        %2985 = vmatprep.subr.mxu0 %v518
        %2986 = vmatpush1.msra.mxu0 %v517
        %2987 = vmatprep.subr.mxu0 %v520
        %2988 = vmatpush1.msra.mxu0 %v519
        %2989 = vmatprep.subr.mxu0 %v522
        %2990 = vmatpush1.msra.mxu0 %v521
        %2991 = vmatprep.subr.mxu0 %v524
        %2992 = vmatpush1.msra.mxu0 %v523
        %2993 = vmatprep.subr.mxu0 %v526
        %2994 = vmatpush1.msra.mxu0 %v525
        %2995 = vmatprep.subr.mxu0 %v528
        %2996 = vmatpush1.msra.mxu0 %v527
        %2997 = vmatprep.subr.mxu0 %v530
        %2998 = vmatpush1.msra.mxu0 %v529
        %2999 = vmatprep.subr.mxu0 %v532
        %3000 = vmatpush1.msra.mxu0 %v531
        %3001 = vmatprep.subr.mxu0 %v534
        %3002 = vmatpush1.msra.mxu0 %v533
        %3003 = vmatprep.subr.mxu0 %v536
        %3004 = vmatpush1.msra.mxu0 %v535
        %3005 = vmatprep.subr.mxu0 %v538
        %3006 = vmatpush1.msra.mxu0 %v537
        %3007 = vmatprep.subr.mxu0 %v540
        %3008 = vmatpush1.msra.mxu0 %v539
        %3009 = vmatprep.subr.mxu0 %v542
        %3010 = vmatpush1.msra.mxu0 %v541
        %3011 = vmatprep.subr.mxu0 %v544
        %3012 = vmatpush1.msra.mxu0 %v543
        %3013 = vmatprep.subr.mxu0 %v546
        %3014 = vmatpush1.msra.mxu0 %v545
        %3015 = vmatprep.subr.mxu0 %v548
        %3016 = vmatpush1.msra.mxu0 %v547
        %3017 = vmatprep.subr.mxu0 %v550
        %3018 = vmatpush1.msra.mxu0 %v549
        %3019 = vmatprep.subr.mxu0 %v552
        %3020 = vmatpush1.msra.mxu0 %v551
        %3021 = vmatprep.subr.mxu0 %v554
        %3022 = vmatpush1.msra.mxu0 %v553
        %3023 = vmatprep.subr.mxu0 %v556
        %3024 = vmatpush1.msra.mxu0 %v555
        %3025 = vmatprep.subr.mxu0 %v558
        %3026 = vmatpush1.msra.mxu0 %v557
        %3027 = vmatprep.subr.mxu0 %v560
        %3028 = vmatpush1.msra.mxu0 %v559
        %3029 = vmatprep.mubr.f32.mxu0 %v2964
        %3030 = vmatmul.mubr.f32.gmra.mrb[0].mxu0 %v2963
        %v3031 = vpop.f32.mrb[0].mxu0
        %v3032 = vadd.f32 0.0, %v3031
        %v3033 = vpop.f32.mrb[0].mxu0
        %v3034 = vadd.f32 0.0, %v3033
        %3035 = vdwg.mxu0
        %v3036 = vmul.f32 %v3032, %v3032
        %v3037 = vmul.f32 %v3034, %v3034
        %v3040 = vrot.slane %v3036, 7
        %v3041 = vrot.slane %v3037, 7
        %v3044 = vsub.f32 %v3032, %v3040
        %v3045 = vsub.f32 %v3034, %v3041
        %v3046 = vadd.f32 %v3044, 1e-06
        %v3047 = vadd.f32 %v3045, 1e-06
        %v3048 = vrsqrt.pop %v3046
        %v3049 = vrsqrt.pop %v3047
        %v3051 = vlaneseq
        %v3052 = vshrl.u32 %v3051, 7
        %v3053 = vsub.s32 0, %v3052
        %v3054 = vrot.slane %v2917, %v3053
        %v3055 = vlaneseq
        %v3056 = vshrl.u32 %v3055, 7
        %v3057 = vsub.s32 1, %v3056
        %v3058 = vrot.slane %v2917, %v3057
        %v3061 = vmul.f32 %v3048, %v3054
        %v3062 = vmul.f32 %v3049, %v3058
        %v3063 = vlaneseq
        %v3064 = vshrl.u32 %v3063, 7
        %v3065 = vsub.s32 0, %v3064
        %v3066 = vrot.slane %v3032, %v3065
        %v3067 = vlaneseq
        %v3068 = vshrl.u32 %v3067, 7
        %v3069 = vsub.s32 0, %v3068
        %v3070 = vrot.slane %v3034, %v3069
        %v3071 = vsub.f32 %v2909, %v3066
        %v3072 = vsub.f32 %v2910, %v3070
        %v3073 = vsub.f32 %v2911, %v3066
        %v3074 = vsub.f32 %v2912, %v3070
        %v3075 = vsub.f32 %v2913, %v3066
        %v3076 = vsub.f32 %v2914, %v3070
        %v3077 = vsub.f32 %v2915, %v3066
        %v3078 = vsub.f32 %v2916, %v3070
        %v3079 = vlaneseq
        %v3080 = vshrl.u32 %v3079, 7
        %v3081 = vsub.s32 1, %v3080
        %v3082 = vrot.slane %v3061, %v3081
        %v3083 = vlaneseq
        %v3084 = vshrl.u32 %v3083, 7
        %v3085 = vsub.s32 1, %v3084
        %v3086 = vrot.slane %v3062, %v3085
        %v3087 = vmul.f32 %v3071, %v3082
        %v3088 = vmul.f32 %v3072, %v3086
        %v3089 = vmul.f32 %v3073, %v3082
        %v3090 = vmul.f32 %v3074, %v3086
        %v3091 = vmul.f32 %v3075, %v3082
        %v3092 = vmul.f32 %v3076, %v3086
        %v3093 = vmul.f32 %v3077, %v3082
        %v3094 = vmul.f32 %v3078, %v3086
        %v3096 = vlaneseq
        %v3097 = vshrl.u32 %v3096, 7
        %v3098 = vsub.s32 0, %v3097
        %v3099 = vrot.slane %v2918, %v3098
        %v3100 = vlaneseq
        %v3101 = vshrl.u32 %v3100, 7
        %v3102 = vsub.s32 1, %v3101
        %v3103 = vrot.slane %v2918, %v3102
        %v3106 = vadd.f32 %v3087, %v3099
        %v3107 = vadd.f32 %v3088, %v3103
        %v3108 = vadd.f32 %v3089, %v3099
        %v3109 = vadd.f32 %v3090, %v3103
        %v3110 = vadd.f32 %v3091, %v3099
        %v3111 = vadd.f32 %v3092, %v3103
        %v3112 = vadd.f32 %v3093, %v3099
        %v3113 = vadd.f32 %v3094, %v3103
        %v3114 = vxor.u32 %v3106, 2147483648
        %v3115 = vxor.u32 %v3107, 2147483648
        %v3116 = vxor.u32 %v3108, 2147483648
        %v3117 = vxor.u32 %v3109, 2147483648
        %v3118 = vxor.u32 %v3110, 2147483648
        %v3119 = vxor.u32 %v3111, 2147483648
        %v3120 = vxor.u32 %v3112, 2147483648
        %v3121 = vxor.u32 %v3113, 2147483648
        %v3122 = vmul.f32 %v3114, 1.442695
        %v3123 = vpow.pop %v3122
        %v3124 = vmul.f32 %v3115, 1.442695
        %v3125 = vpow.pop %v3124
        %v3126 = vmul.f32 %v3116, 1.442695
        %v3127 = vpow.pop %v3126
        %v3128 = vmul.f32 %v3117, 1.442695
        %v3129 = vpow.pop %v3128
        %v3130 = vmul.f32 %v3118, 1.442695
        %v3131 = vpow.pop %v3130
        %v3132 = vmul.f32 %v3119, 1.442695
        %v3133 = vpow.pop %v3132
        %v3134 = vmul.f32 %v3120, 1.442695
        %v3135 = vpow.pop %v3134
        %v3136 = vmul.f32 %v3121, 1.442695
        %v3137 = vpow.pop %v3136
        %v3138 = vadd.f32 %v3123, 1.0
        %v3139 = vadd.f32 %v3125, 1.0
        %v3140 = vadd.f32 %v3127, 1.0
        %v3141 = vadd.f32 %v3129, 1.0
        %v3142 = vadd.f32 %v3131, 1.0
        %v3143 = vadd.f32 %v3133, 1.0
        %v3144 = vadd.f32 %v3135, 1.0
        %v3145 = vadd.f32 %v3137, 1.0
        %v3146 = vrcp.pop %v3138
        %v3147 = vmul.f32 1.0, %v3146
        %v3148 = vrcp.pop %v3139
        %v3149 = vmul.f32 1.0, %v3148
        %v3150 = vrcp.pop %v3140
        %v3151 = vmul.f32 1.0, %v3150
        %v3152 = vrcp.pop %v3141
        %v3153 = vmul.f32 1.0, %v3152
        %v3154 = vrcp.pop %v3142
        %v3155 = vmul.f32 1.0, %v3154
        %v3156 = vrcp.pop %v3143
        %v3157 = vmul.f32 1.0, %v3156
        %v3158 = vrcp.pop %v3144
        %v3159 = vmul.f32 1.0, %v3158
        %v3160 = vrcp.pop %v3145
        %v3161 = vmul.f32 1.0, %v3160
        %v3162 = vmul.f32 %v3106, %v3147
        %v3163 = vmul.f32 %v3107, %v3149
        %v3164 = vmul.f32 %v3108, %v3151
        %v3165 = vmul.f32 %v3109, %v3153
        %v3166 = vmul.f32 %v3110, %v3155
        %v3167 = vmul.f32 %v3111, %v3157
        %v3168 = vmul.f32 %v3112, %v3159
        %v3169 = vmul.f32 %v3113, %v3161
        %v3170 = vld [vmem:[#allocation18] sm:$0x3]
        %v3179 = vrot.slane %v3162, 7
        %v3180 = vrot.slane %v3163, 7
        %v3181 = vrot.slane %v3164, 7
        %v3182 = vrot.slane %v3165, 7
        %v3183 = vrot.slane %v3166, 7
        %v3184 = vrot.slane %v3167, 7
        %v3185 = vrot.slane %v3168, 7
        %v3186 = vrot.slane %v3169, 7
        %3195 = vst [vmem:[%s848] sm:$0xfe] %v3179
        %3196 = vst [vmem:[%s848 + $0x8] sm:$0xfe] %v3180
        %3197 = vst [vmem:[%s848 + $0x10] sm:$0x1] %v3179
        %3198 = vst [vmem:[%s848 + $0x18] sm:$0x1] %v3180
        %3199 = vst [vmem:[%s848 + $0x20] sm:$0xfe] %v3181
        %3200 = vst [vmem:[%s848 + $0x28] sm:$0xfe] %v3182
        %3201 = vst [vmem:[%s848 + $0x30] sm:$0x1] %v3181
        %3202 = vst [vmem:[%s848 + $0x38] sm:$0x1] %v3182
        %3203 = vst [vmem:[%s848 + $0x40] sm:$0xfe] %v3183
        %3204 = vst [vmem:[%s848 + $0x48] sm:$0xfe] %v3184
        %3205 = vst [vmem:[%s848 + $0x50] sm:$0x1] %v3183
        %3206 = vst [vmem:[%s848 + $0x58] sm:$0x1] %v3184
        %3207 = vst [vmem:[%s848 + $0x60] sm:$0xfe] %v3185
        %3208 = vst [vmem:[%s848 + $0x68] sm:$0xfe] %v3186
        %3209 = vst [vmem:[%s848 + $0x70] sm:$0x1] %v3185
        %3210 = vst [vmem:[%s848 + $0x78] sm:$0x1] %v3186
        %v3211 = vcombine.low %v3162, %v3163
        %v3213 = vunpack.c.l.s4 1966171168
        %v3214 = vunpack.c.0.s8 %v3213
        %v3215 = vlaneseq
        %v3216 = vshrl.u32 %v3215, 7
        %v3217 = vsub.s32 %v3214, %v3216
        %v3218 = vrot.slane %v3211, %v3217
        %v3220 = vunpack.c.l.s4 1966171168
        %v3221 = vunpack.c.0.s8 %v3220
        %v3222 = vlaneseq
        %v3223 = vshrl.u32 %v3222, 7
        %v3224 = vsub.s32 %v3221, %v3223
        %v3225 = vrot.slane %v3218, %v3224
        %v3226 = vcombine.low %v3164, %v3165
        %v3228 = vunpack.c.l.s4 1966171168
        %v3229 = vunpack.c.0.s8 %v3228
        %v3230 = vlaneseq
        %v3231 = vshrl.u32 %v3230, 7
        %v3232 = vsub.s32 %v3229, %v3231
        %v3233 = vrot.slane %v3226, %v3232
        %v3235 = vunpack.c.l.s4 1966171168
        %v3236 = vunpack.c.0.s8 %v3235
        %v3237 = vlaneseq
        %v3238 = vshrl.u32 %v3237, 7
        %v3239 = vsub.s32 %v3236, %v3238
        %v3240 = vrot.slane %v3233, %v3239
        %v3241 = vcombine.low %v3166, %v3167
        %v3243 = vunpack.c.l.s4 1966171168
        %v3244 = vunpack.c.0.s8 %v3243
        %v3245 = vlaneseq
        %v3246 = vshrl.u32 %v3245, 7
        %v3247 = vsub.s32 %v3244, %v3246
        %v3248 = vrot.slane %v3241, %v3247
        %v3250 = vunpack.c.l.s4 1966171168
        %v3251 = vunpack.c.0.s8 %v3250
        %v3252 = vlaneseq
        %v3253 = vshrl.u32 %v3252, 7
        %v3254 = vsub.s32 %v3251, %v3253
        %v3255 = vrot.slane %v3248, %v3254
        %v3256 = vcombine.low %v3168, %v3169
        %v3258 = vunpack.c.l.s4 1966171168
        %v3259 = vunpack.c.0.s8 %v3258
        %v3260 = vlaneseq
        %v3261 = vshrl.u32 %v3260, 7
        %v3262 = vsub.s32 %v3259, %v3261
        %v3263 = vrot.slane %v3256, %v3262
        %v3265 = vunpack.c.l.s4 1966171168
        %v3266 = vunpack.c.0.s8 %v3265
        %v3267 = vlaneseq
        %v3268 = vshrl.u32 %v3267, 7
        %v3269 = vsub.s32 %v3266, %v3268
        %v3270 = vrot.slane %v3263, %v3269
        %3275 = vst.msk [vmem:[%s848] ss:$8 sm:$0x3] %vm932, %v3225
        %3276 = vst.msk [vmem:[%s848] ss:$8 sm:$0x0] %vm932, %v3225
        %3277 = vst.msk [vmem:[%s935] ss:$8 sm:$0x3] %vm932, %v3240
        %3278 = vst.msk [vmem:[%s935] ss:$8 sm:$0x0] %vm932, %v3240
        %3279 = vst.msk [vmem:[%s938] ss:$8 sm:$0x3] %vm932, %v3255
        %3280 = vst.msk [vmem:[%s938] ss:$8 sm:$0x0] %vm932, %v3255
        %3281 = vst.msk [vmem:[%s941] ss:$8 sm:$0x3] %vm932, %v3270
        %3282 = vst.msk [vmem:[%s941] ss:$8 sm:$0x0] %vm932, %v3270
        %v3283 = vcombine.high %v3162, %v3163
        %v3285 = vunpack.c.l.s4 1966171168
        %v3286 = vunpack.c.0.s8 %v3285
        %v3287 = vlaneseq
        %v3288 = vshrl.u32 %v3287, 7
        %v3289 = vsub.s32 %v3286, %v3288
        %v3290 = vrot.slane %v3283, %v3289
        %v3291 = vcombine.high %v3290, %v3290
        %v3293 = vunpack.c.l.s4 1966171168
        %v3294 = vunpack.c.0.s8 %v3293
        %v3295 = vlaneseq
        %v3296 = vshrl.u32 %v3295, 7
        %v3297 = vsub.s32 %v3294, %v3296
        %v3298 = vrot.slane %v3291, %v3297
        %v3299 = vcombine.high %v3298, %v3298
        %v3300 = vcombine.high %v3164, %v3165
        %v3302 = vunpack.c.l.s4 1966171168
        %v3303 = vunpack.c.0.s8 %v3302
        %v3304 = vlaneseq
        %v3305 = vshrl.u32 %v3304, 7
        %v3306 = vsub.s32 %v3303, %v3305
        %v3307 = vrot.slane %v3300, %v3306
        %v3308 = vcombine.high %v3307, %v3307
        %v3310 = vunpack.c.l.s4 1966171168
        %v3311 = vunpack.c.0.s8 %v3310
        %v3312 = vlaneseq
        %v3313 = vshrl.u32 %v3312, 7
        %v3314 = vsub.s32 %v3311, %v3313
        %v3315 = vrot.slane %v3308, %v3314
        %v3316 = vcombine.high %v3315, %v3315
        %v3317 = vcombine.high %v3166, %v3167
        %v3319 = vunpack.c.l.s4 1966171168
        %v3320 = vunpack.c.0.s8 %v3319
        %v3321 = vlaneseq
        %v3322 = vshrl.u32 %v3321, 7
        %v3323 = vsub.s32 %v3320, %v3322
        %v3324 = vrot.slane %v3317, %v3323
        %v3325 = vcombine.high %v3324, %v3324
        %v3327 = vunpack.c.l.s4 1966171168
        %v3328 = vunpack.c.0.s8 %v3327
        %v3329 = vlaneseq
        %v3330 = vshrl.u32 %v3329, 7
        %v3331 = vsub.s32 %v3328, %v3330
        %v3332 = vrot.slane %v3325, %v3331
        %v3333 = vcombine.high %v3332, %v3332
        %v3334 = vcombine.high %v3168, %v3169
        %v3336 = vunpack.c.l.s4 1966171168
        %v3337 = vunpack.c.0.s8 %v3336
        %v3338 = vlaneseq
        %v3339 = vshrl.u32 %v3338, 7
        %v3340 = vsub.s32 %v3337, %v3339
        %v3341 = vrot.slane %v3334, %v3340
        %v3342 = vcombine.high %v3341, %v3341
        %v3344 = vunpack.c.l.s4 1966171168
        %v3345 = vunpack.c.0.s8 %v3344
        %v3346 = vlaneseq
        %v3347 = vshrl.u32 %v3346, 7
        %v3348 = vsub.s32 %v3345, %v3347
        %v3349 = vrot.slane %v3342, %v3348
        %v3350 = vcombine.high %v3349, %v3349
        %3355 = vst.msk [vmem:[%s1016] ss:$8 sm:$0x3] %vm932, %v3299
        %3356 = vst.msk [vmem:[%s1016] ss:$8 sm:$0x0] %vm932, %v3299
        %3357 = vst.msk [vmem:[%s1019] ss:$8 sm:$0x3] %vm932, %v3316
        %3358 = vst.msk [vmem:[%s1019] ss:$8 sm:$0x0] %vm932, %v3316
        %3359 = vst.msk [vmem:[%s1022] ss:$8 sm:$0x3] %vm932, %v3333
        %3360 = vst.msk [vmem:[%s1022] ss:$8 sm:$0x0] %vm932, %v3333
        %3361 = vst.msk [vmem:[%s1025] ss:$8 sm:$0x3] %vm932, %v3350
        %3362 = vst.msk [vmem:[%s1025] ss:$8 sm:$0x0] %vm932, %v3350
        %v3363 = vld [vmem:[%s848] sm:$0xff]
        %v3364 = vld [vmem:[%s848 + $0x8] sm:$0xff]
        %v3365 = vld [vmem:[%s848 + $0x10] sm:$0x3]
        %v3366 = vld [vmem:[%s848 + $0x18] sm:$0x3]
        %3367 = vst [vmem:[#allocation2] sm:$0xff] %v3363
        %3368 = vst [vmem:[#allocation2 + $0x8] sm:$0xff] %v3364
        %3369 = vst [vmem:[#allocation2 + $0x10] sm:$0x3] %v3365
        %3370 = vst [vmem:[#allocation2 + $0x18] sm:$0x3] %v3366
        %v3371 = vld [vmem:[%s1036] sm:$0xff]
        %v3372 = vld [vmem:[%s1036 + $0x8] sm:$0xff]
        %v3373 = vld [vmem:[%s1036 + $0x10] sm:$0x3]
        %v3374 = vld [vmem:[%s1036 + $0x18] sm:$0x3]
        %3375 = vst [vmem:[%s1041] sm:$0xff] %v3371
        %3376 = vst [vmem:[%s1041 + $0x8] sm:$0xff] %v3372
        %3377 = vst [vmem:[%s1041 + $0x10] sm:$0x3] %v3373
        %3378 = vst [vmem:[%s1041 + $0x18] sm:$0x3] %v3374
        %v3379 = vld [vmem:[#allocation2] sm:$0xff]
        %v3380 = vld [vmem:[#allocation2 + $0x8] sm:$0xff]
        %v3381 = vld [vmem:[#allocation2 + $0x20] sm:$0xff]
        %v3382 = vld [vmem:[#allocation2 + $0x28] sm:$0xff]
        %v3383 = vld [vmem:[#allocation2 + $0x40] sm:$0xff]
        %v3384 = vld [vmem:[#allocation2 + $0x48] sm:$0xff]
        %v3385 = vld [vmem:[#allocation2 + $0x60] sm:$0xff]
        %v3386 = vld [vmem:[#allocation2 + $0x68] sm:$0xff]
        %v3387 = vld [vmem:[#allocation17] sm:$0xff]
        %v3388 = vld [vmem:[#allocation17 + $0x8] sm:$0xff]
        %v3389 = vld [vmem:[#allocation17 + $0x10] sm:$0xff]
        %v3390 = vld [vmem:[#allocation17 + $0x18] sm:$0xff]
        %v3391 = vld [vmem:[#allocation17 + $0x20] sm:$0xff]
        %v3392 = vld [vmem:[#allocation17 + $0x28] sm:$0xff]
        %v3393 = vld [vmem:[#allocation17 + $0x30] sm:$0xff]
        %v3394 = vld [vmem:[#allocation17 + $0x38] sm:$0xff]
        %v3395 = vld [vmem:[#allocation17 + $0x40] sm:$0xff]
        %v3396 = vld [vmem:[#allocation17 + $0x48] sm:$0xff]
        %v3397 = vld [vmem:[#allocation17 + $0x50] sm:$0xff]
        %v3398 = vld [vmem:[#allocation17 + $0x58] sm:$0xff]
        %v3399 = vld [vmem:[#allocation17 + $0x60] sm:$0xff]
        %v3400 = vld [vmem:[#allocation17 + $0x68] sm:$0xff]
        %v3401 = vld [vmem:[#allocation17 + $0x70] sm:$0xff]
        %v3402 = vld [vmem:[#allocation17 + $0x78] sm:$0xff]
        %v3403 = vld [vmem:[#allocation17 + $0x80] sm:$0xff]
        %v3404 = vld [vmem:[#allocation17 + $0x88] sm:$0xff]
        %v3405 = vld [vmem:[#allocation17 + $0x90] sm:$0xff]
        %v3406 = vld [vmem:[#allocation17 + $0x98] sm:$0xff]
        %v3407 = vld [vmem:[#allocation17 + $0xa0] sm:$0xff]
        %v3408 = vld [vmem:[#allocation17 + $0xa8] sm:$0xff]
        %v3409 = vld [vmem:[#allocation17 + $0xb0] sm:$0xff]
        %v3410 = vld [vmem:[#allocation17 + $0xb8] sm:$0xff]
        %v3411 = vld [vmem:[#allocation17 + $0xc0] sm:$0xff]
        %v3412 = vld [vmem:[#allocation17 + $0xc8] sm:$0xff]
        %v3413 = vld [vmem:[#allocation17 + $0xd0] sm:$0xff]
        %v3414 = vld [vmem:[#allocation17 + $0xd8] sm:$0xff]
        %v3415 = vld [vmem:[#allocation17 + $0xe0] sm:$0xff]
        %v3416 = vld [vmem:[#allocation17 + $0xe8] sm:$0xff]
        %v3417 = vld [vmem:[#allocation17 + $0xf0] sm:$0xff]
        %v3418 = vld [vmem:[#allocation17 + $0xf8] sm:$0xff]
        %v3419 = vld [vmem:[#allocation17 + $0x100] sm:$0xff]
        %v3420 = vld [vmem:[#allocation17 + $0x108] sm:$0xff]
        %v3421 = vld [vmem:[#allocation17 + $0x110] sm:$0xff]
        %v3422 = vld [vmem:[#allocation17 + $0x118] sm:$0xff]
        %v3423 = vld [vmem:[#allocation17 + $0x120] sm:$0xff]
        %v3424 = vld [vmem:[#allocation17 + $0x128] sm:$0xff]
        %v3425 = vld [vmem:[#allocation17 + $0x130] sm:$0xff]
        %v3426 = vld [vmem:[#allocation17 + $0x138] sm:$0xff]
        %v3427 = vld [vmem:[#allocation17 + $0x140] sm:$0xff]
        %v3428 = vld [vmem:[#allocation17 + $0x148] sm:$0xff]
        %v3429 = vld [vmem:[#allocation17 + $0x150] sm:$0xff]
        %v3430 = vld [vmem:[#allocation17 + $0x158] sm:$0xff]
        %v3431 = vld [vmem:[#allocation17 + $0x160] sm:$0xff]
        %v3432 = vld [vmem:[#allocation17 + $0x168] sm:$0xff]
        %v3433 = vld [vmem:[#allocation17 + $0x170] sm:$0xff]
        %v3434 = vld [vmem:[#allocation17 + $0x178] sm:$0xff]
        %v3435 = vld [vmem:[#allocation17 + $0x180] sm:$0xff]
        %v3436 = vld [vmem:[#allocation17 + $0x188] sm:$0xff]
        %v3437 = vld [vmem:[#allocation17 + $0x190] sm:$0xff]
        %v3438 = vld [vmem:[#allocation17 + $0x198] sm:$0xff]
        %v3439 = vld [vmem:[#allocation17 + $0x1a0] sm:$0xff]
        %v3440 = vld [vmem:[#allocation17 + $0x1a8] sm:$0xff]
        %v3441 = vld [vmem:[#allocation17 + $0x1b0] sm:$0xff]
        %v3442 = vld [vmem:[#allocation17 + $0x1b8] sm:$0xff]
        %v3443 = vld [vmem:[#allocation17 + $0x1c0] sm:$0xff]
        %v3444 = vld [vmem:[#allocation17 + $0x1c8] sm:$0xff]
        %v3445 = vld [vmem:[#allocation17 + $0x1d0] sm:$0xff]
        %v3446 = vld [vmem:[#allocation17 + $0x1d8] sm:$0xff]
        %v3447 = vld [vmem:[#allocation17 + $0x1e0] sm:$0xff]
        %v3448 = vld [vmem:[#allocation17 + $0x1e8] sm:$0xff]
        %v3449 = vld [vmem:[#allocation17 + $0x1f0] sm:$0xff]
        %v3450 = vld [vmem:[#allocation17 + $0x1f8] sm:$0xff]
        %v3451 = vld [vmem:[#allocation2] sm:$0xfe]
        %v3452 = vld [vmem:[#allocation2 + $0x8] sm:$0xfe]
        %v3453 = vld [vmem:[#allocation2 + $0x10] sm:$0x1]
        %v3454 = vld [vmem:[#allocation2 + $0x18] sm:$0x1]
        %v3455 = vld [vmem:[#allocation2 + $0x20] sm:$0xfe]
        %v3456 = vld [vmem:[#allocation2 + $0x28] sm:$0xfe]
        %v3457 = vld [vmem:[#allocation2 + $0x30] sm:$0x1]
        %v3458 = vld [vmem:[#allocation2 + $0x38] sm:$0x1]
        %v3459 = vld [vmem:[#allocation2 + $0x40] sm:$0xfe]
        %v3460 = vld [vmem:[#allocation2 + $0x48] sm:$0xfe]
        %v3461 = vld [vmem:[#allocation2 + $0x50] sm:$0x1]
        %v3462 = vld [vmem:[#allocation2 + $0x58] sm:$0x1]
        %v3463 = vld [vmem:[#allocation2 + $0x60] sm:$0xfe]
        %v3464 = vld [vmem:[#allocation2 + $0x68] sm:$0xfe]
        %v3465 = vld [vmem:[#allocation2 + $0x70] sm:$0x1]
        %v3466 = vld [vmem:[#allocation2 + $0x78] sm:$0x1]
        %v3483 = vrot.slane %v3451, 1
        %v3484 = vrot.slane %v3453, 1
        %v3485 = vsel %vm1150, %v3483, %v3484
        %v3486 = vrot.slane %v3452, 1
        %v3487 = vrot.slane %v3454, 1
        %v3488 = vsel %vm1150, %v3486, %v3487
        %v3489 = vrot.slane %v3455, 1
        %v3490 = vrot.slane %v3457, 1
        %v3491 = vsel %vm1150, %v3489, %v3490
        %v3492 = vrot.slane %v3456, 1
        %v3493 = vrot.slane %v3458, 1
        %v3494 = vsel %vm1150, %v3492, %v3493
        %v3495 = vrot.slane %v3459, 1
        %v3496 = vrot.slane %v3461, 1
        %v3497 = vsel %vm1150, %v3495, %v3496
        %v3498 = vrot.slane %v3460, 1
        %v3499 = vrot.slane %v3462, 1
        %v3500 = vsel %vm1150, %v3498, %v3499
        %v3501 = vrot.slane %v3463, 1
        %v3502 = vrot.slane %v3465, 1
        %v3503 = vsel %vm1150, %v3501, %v3502
        %v3504 = vrot.slane %v3464, 1
        %v3505 = vrot.slane %v3466, 1
        %v3506 = vsel %vm1150, %v3504, %v3505
        %s3515 = scalar_lea.vmem [#allocation17], 512
        %v3516 = vld [vmem:[%s3515] sm:$0xff]
        %v3517 = vld [vmem:[%s3515 + $0x8] sm:$0xff]
        %v3518 = vld [vmem:[%s3515 + $0x10] sm:$0xff]
        %v3519 = vld [vmem:[%s3515 + $0x18] sm:$0xff]
        %v3520 = vld [vmem:[%s3515 + $0x20] sm:$0xff]
        %v3521 = vld [vmem:[%s3515 + $0x28] sm:$0xff]
        %v3522 = vld [vmem:[%s3515 + $0x30] sm:$0xff]
        %v3523 = vld [vmem:[%s3515 + $0x38] sm:$0xff]
        %v3524 = vld [vmem:[%s3515 + $0x40] sm:$0xff]
        %v3525 = vld [vmem:[%s3515 + $0x48] sm:$0xff]
        %v3526 = vld [vmem:[%s3515 + $0x50] sm:$0xff]
        %v3527 = vld [vmem:[%s3515 + $0x58] sm:$0xff]
        %v3528 = vld [vmem:[%s3515 + $0x60] sm:$0xff]
        %v3529 = vld [vmem:[%s3515 + $0x68] sm:$0xff]
        %v3530 = vld [vmem:[%s3515 + $0x70] sm:$0xff]
        %v3531 = vld [vmem:[%s3515 + $0x78] sm:$0xff]
        %v3532 = vld [vmem:[%s3515 + $0x80] sm:$0xff]
        %v3533 = vld [vmem:[%s3515 + $0x88] sm:$0xff]
        %v3534 = vld [vmem:[%s3515 + $0x90] sm:$0xff]
        %v3535 = vld [vmem:[%s3515 + $0x98] sm:$0xff]
        %v3536 = vld [vmem:[%s3515 + $0xa0] sm:$0xff]
        %v3537 = vld [vmem:[%s3515 + $0xa8] sm:$0xff]
        %v3538 = vld [vmem:[%s3515 + $0xb0] sm:$0xff]
        %v3539 = vld [vmem:[%s3515 + $0xb8] sm:$0xff]
        %v3540 = vld [vmem:[%s3515 + $0xc0] sm:$0xff]
        %v3541 = vld [vmem:[%s3515 + $0xc8] sm:$0xff]
        %v3542 = vld [vmem:[%s3515 + $0xd0] sm:$0xff]
        %v3543 = vld [vmem:[%s3515 + $0xd8] sm:$0xff]
        %v3544 = vld [vmem:[%s3515 + $0xe0] sm:$0xff]
        %v3545 = vld [vmem:[%s3515 + $0xe8] sm:$0xff]
        %v3546 = vld [vmem:[%s3515 + $0xf0] sm:$0xff]
        %v3547 = vld [vmem:[%s3515 + $0xf8] sm:$0xff]
        %v3548 = vld [vmem:[%s3515 + $0x100] sm:$0xff]
        %v3549 = vld [vmem:[%s3515 + $0x108] sm:$0xff]
        %v3550 = vld [vmem:[%s3515 + $0x110] sm:$0xff]
        %v3551 = vld [vmem:[%s3515 + $0x118] sm:$0xff]
        %v3552 = vld [vmem:[%s3515 + $0x120] sm:$0xff]
        %v3553 = vld [vmem:[%s3515 + $0x128] sm:$0xff]
        %v3554 = vld [vmem:[%s3515 + $0x130] sm:$0xff]
        %v3555 = vld [vmem:[%s3515 + $0x138] sm:$0xff]
        %v3556 = vld [vmem:[%s3515 + $0x140] sm:$0xff]
        %v3557 = vld [vmem:[%s3515 + $0x148] sm:$0xff]
        %v3558 = vld [vmem:[%s3515 + $0x150] sm:$0xff]
        %v3559 = vld [vmem:[%s3515 + $0x158] sm:$0xff]
        %v3560 = vld [vmem:[%s3515 + $0x160] sm:$0xff]
        %v3561 = vld [vmem:[%s3515 + $0x168] sm:$0xff]
        %v3562 = vld [vmem:[%s3515 + $0x170] sm:$0xff]
        %v3563 = vld [vmem:[%s3515 + $0x178] sm:$0xff]
        %v3564 = vld [vmem:[%s3515 + $0x180] sm:$0xff]
        %v3565 = vld [vmem:[%s3515 + $0x188] sm:$0xff]
        %v3566 = vld [vmem:[%s3515 + $0x190] sm:$0xff]
        %v3567 = vld [vmem:[%s3515 + $0x198] sm:$0xff]
        %v3568 = vld [vmem:[%s3515 + $0x1a0] sm:$0xff]
        %v3569 = vld [vmem:[%s3515 + $0x1a8] sm:$0xff]
        %v3570 = vld [vmem:[%s3515 + $0x1b0] sm:$0xff]
        %v3571 = vld [vmem:[%s3515 + $0x1b8] sm:$0xff]
        %v3572 = vld [vmem:[%s3515 + $0x1c0] sm:$0xff]
        %v3573 = vld [vmem:[%s3515 + $0x1c8] sm:$0xff]
        %v3574 = vld [vmem:[%s3515 + $0x1d0] sm:$0xff]
        %v3575 = vld [vmem:[%s3515 + $0x1d8] sm:$0xff]
        %v3576 = vld [vmem:[%s3515 + $0x1e0] sm:$0xff]
        %v3577 = vld [vmem:[%s3515 + $0x1e8] sm:$0xff]
        %v3578 = vld [vmem:[%s3515 + $0x1f0] sm:$0xff]
        %v3579 = vld [vmem:[%s3515 + $0x1f8] sm:$0xff]
        %3580 = vmatprep.subr.mxu0 %v3517
        %3581 = vmatpush1.msra.mxu0 %v3516
        %3582 = vmatprep.subr.mxu0 %v3519
        %3583 = vmatpush1.msra.mxu0 %v3518
        %3584 = vmatprep.subr.mxu0 %v3521
        %3585 = vmatpush1.msra.mxu0 %v3520
        %3586 = vmatprep.subr.mxu0 %v3523
        %3587 = vmatpush1.msra.mxu0 %v3522
        %3588 = vmatprep.subr.mxu0 %v3525
        %3589 = vmatpush1.msra.mxu0 %v3524
        %3590 = vmatprep.subr.mxu0 %v3527
        %3591 = vmatpush1.msra.mxu0 %v3526
        %3592 = vmatprep.subr.mxu0 %v3529
        %3593 = vmatpush1.msra.mxu0 %v3528
        %3594 = vmatprep.subr.mxu0 %v3531
        %3595 = vmatpush1.msra.mxu0 %v3530
        %3596 = vmatprep.subr.mxu0 %v3533
        %3597 = vmatpush1.msra.mxu0 %v3532
        %3598 = vmatprep.subr.mxu0 %v3535
        %3599 = vmatpush1.msra.mxu0 %v3534
        %3600 = vmatprep.subr.mxu0 %v3537
        %3601 = vmatpush1.msra.mxu0 %v3536
        %3602 = vmatprep.subr.mxu0 %v3539
        %3603 = vmatpush1.msra.mxu0 %v3538
        %3604 = vmatprep.subr.mxu0 %v3541
        %3605 = vmatpush1.msra.mxu0 %v3540
        %3606 = vmatprep.subr.mxu0 %v3543
        %3607 = vmatpush1.msra.mxu0 %v3542
        %3608 = vmatprep.subr.mxu0 %v3545
        %3609 = vmatpush1.msra.mxu0 %v3544
        %3610 = vmatprep.subr.mxu0 %v3547
        %3611 = vmatpush1.msra.mxu0 %v3546
        %3612 = vmatprep.subr.mxu0 %v3549
        %3613 = vmatpush1.msra.mxu0 %v3548
        %3614 = vmatprep.subr.mxu0 %v3551
        %3615 = vmatpush1.msra.mxu0 %v3550
        %3616 = vmatprep.subr.mxu0 %v3553
        %3617 = vmatpush1.msra.mxu0 %v3552
        %3618 = vmatprep.subr.mxu0 %v3555
        %3619 = vmatpush1.msra.mxu0 %v3554
        %3620 = vmatprep.subr.mxu0 %v3557
        %3621 = vmatpush1.msra.mxu0 %v3556
        %3622 = vmatprep.subr.mxu0 %v3559
        %3623 = vmatpush1.msra.mxu0 %v3558
        %3624 = vmatprep.subr.mxu0 %v3561
        %3625 = vmatpush1.msra.mxu0 %v3560
        %3626 = vmatprep.subr.mxu0 %v3563
        %3627 = vmatpush1.msra.mxu0 %v3562
        %3628 = vmatprep.subr.mxu0 %v3565
        %3629 = vmatpush1.msra.mxu0 %v3564
        %3630 = vmatprep.subr.mxu0 %v3567
        %3631 = vmatpush1.msra.mxu0 %v3566
        %3632 = vmatprep.subr.mxu0 %v3569
        %3633 = vmatpush1.msra.mxu0 %v3568
        %3634 = vmatprep.subr.mxu0 %v3571
        %3635 = vmatpush1.msra.mxu0 %v3570
        %3636 = vmatprep.subr.mxu0 %v3573
        %3637 = vmatpush1.msra.mxu0 %v3572
        %3638 = vmatprep.subr.mxu0 %v3575
        %3639 = vmatpush1.msra.mxu0 %v3574
        %3640 = vmatprep.subr.mxu0 %v3577
        %3641 = vmatpush1.msra.mxu0 %v3576
        %3642 = vmatprep.subr.mxu0 %v3579
        %3643 = vmatpush1.msra.mxu0 %v3578
        %3644 = vmatprep.mubr.f32.mxu0 %v3488
        %3645 = vmatmul.mubr.f32.gmra.mrb[0].mxu0 %v3485
        %v3646 = vpop.f32.mrb[0].mxu0
        %v3647 = vadd.f32 0.0, %v3646
        %v3648 = vpop.f32.mrb[0].mxu0
        %v3649 = vadd.f32 0.0, %v3648
        %3650 = vmatprep.mubr.f32.mxu0 %v3494
        %3651 = vmatmul.mubr.f32.gmra.mrb[0].mxu0 %v3491
        %v3652 = vpop.f32.mrb[0].mxu0
        %v3653 = vadd.f32 0.0, %v3652
        %v3654 = vpop.f32.mrb[0].mxu0
        %v3655 = vadd.f32 0.0, %v3654
        %3656 = vmatprep.mubr.f32.mxu0 %v3500
        %3657 = vmatmul.mubr.f32.gmra.mrb[0].mxu0 %v3497
        %v3658 = vpop.f32.mrb[0].mxu0
        %v3659 = vadd.f32 0.0, %v3658
        %v3660 = vpop.f32.mrb[0].mxu0
        %v3661 = vadd.f32 0.0, %v3660
        %3662 = vmatprep.mubr.f32.mxu0 %v3506
        %3663 = vmatmul.mubr.f32.gmra.mrb[0].mxu0 %v3503
        %v3664 = vpop.f32.mrb[0].mxu0
        %v3665 = vadd.f32 0.0, %v3664
        %v3666 = vpop.f32.mrb[0].mxu0
        %v3667 = vadd.f32 0.0, %v3666
        %3668 = vdwg.mxu0
        %3669 = vmatprep.subr.mxu0 %v3388
        %3670 = vmatpush1.msra.mxu0 %v3387
        %3671 = vmatprep.subr.mxu0 %v3390
        %3672 = vmatpush1.msra.mxu0 %v3389
        %3673 = vmatprep.subr.mxu0 %v3392
        %3674 = vmatpush1.msra.mxu0 %v3391
        %3675 = vmatprep.subr.mxu0 %v3394
        %3676 = vmatpush1.msra.mxu0 %v3393
        %3677 = vmatprep.subr.mxu0 %v3396
        %3678 = vmatpush1.msra.mxu0 %v3395
        %3679 = vmatprep.subr.mxu0 %v3398
        %3680 = vmatpush1.msra.mxu0 %v3397
        %3681 = vmatprep.subr.mxu0 %v3400
        %3682 = vmatpush1.msra.mxu0 %v3399
        %3683 = vmatprep.subr.mxu0 %v3402
        %3684 = vmatpush1.msra.mxu0 %v3401
        %3685 = vmatprep.subr.mxu0 %v3404
        %3686 = vmatpush1.msra.mxu0 %v3403
        %3687 = vmatprep.subr.mxu0 %v3406
        %3688 = vmatpush1.msra.mxu0 %v3405
        %3689 = vmatprep.subr.mxu0 %v3408
        %3690 = vmatpush1.msra.mxu0 %v3407
        %3691 = vmatprep.subr.mxu0 %v3410
        %3692 = vmatpush1.msra.mxu0 %v3409
        %3693 = vmatprep.subr.mxu0 %v3412
        %3694 = vmatpush1.msra.mxu0 %v3411
        %3695 = vmatprep.subr.mxu0 %v3414
        %3696 = vmatpush1.msra.mxu0 %v3413
        %3697 = vmatprep.subr.mxu0 %v3416
        %3698 = vmatpush1.msra.mxu0 %v3415
        %3699 = vmatprep.subr.mxu0 %v3418
        %3700 = vmatpush1.msra.mxu0 %v3417
        %3701 = vmatprep.subr.mxu0 %v3420
        %3702 = vmatpush1.msra.mxu0 %v3419
        %3703 = vmatprep.subr.mxu0 %v3422
        %3704 = vmatpush1.msra.mxu0 %v3421
        %3705 = vmatprep.subr.mxu0 %v3424
        %3706 = vmatpush1.msra.mxu0 %v3423
        %3707 = vmatprep.subr.mxu0 %v3426
        %3708 = vmatpush1.msra.mxu0 %v3425
        %3709 = vmatprep.subr.mxu0 %v3428
        %3710 = vmatpush1.msra.mxu0 %v3427
        %3711 = vmatprep.subr.mxu0 %v3430
        %3712 = vmatpush1.msra.mxu0 %v3429
        %3713 = vmatprep.subr.mxu0 %v3432
        %3714 = vmatpush1.msra.mxu0 %v3431
        %3715 = vmatprep.subr.mxu0 %v3434
        %3716 = vmatpush1.msra.mxu0 %v3433
        %3717 = vmatprep.subr.mxu0 %v3436
        %3718 = vmatpush1.msra.mxu0 %v3435
        %3719 = vmatprep.subr.mxu0 %v3438
        %3720 = vmatpush1.msra.mxu0 %v3437
        %3721 = vmatprep.subr.mxu0 %v3440
        %3722 = vmatpush1.msra.mxu0 %v3439
        %3723 = vmatprep.subr.mxu0 %v3442
        %3724 = vmatpush1.msra.mxu0 %v3441
        %3725 = vmatprep.subr.mxu0 %v3444
        %3726 = vmatpush1.msra.mxu0 %v3443
        %3727 = vmatprep.subr.mxu0 %v3446
        %3728 = vmatpush1.msra.mxu0 %v3445
        %3729 = vmatprep.subr.mxu0 %v3448
        %3730 = vmatpush1.msra.mxu0 %v3447
        %3731 = vmatprep.subr.mxu0 %v3450
        %3732 = vmatpush1.msra.mxu0 %v3449
        %3733 = vmatprep.mubr.f32.mxu0 %v3380
        %3734 = vmatmul.mubr.f32.gmra.mrb[0].mxu0 %v3379
        %v3735 = vpop.f32.mrb[0].mxu0
        %v3736 = vadd.f32 %v3647, %v3735
        %v3737 = vpop.f32.mrb[0].mxu0
        %v3738 = vadd.f32 %v3649, %v3737
        %3739 = vmatprep.mubr.f32.mxu0 %v3382
        %3740 = vmatmul.mubr.f32.gmra.mrb[0].mxu0 %v3381
        %v3741 = vpop.f32.mrb[0].mxu0
        %v3742 = vadd.f32 %v3653, %v3741
        %v3743 = vpop.f32.mrb[0].mxu0
        %v3744 = vadd.f32 %v3655, %v3743
        %3745 = vmatprep.mubr.f32.mxu0 %v3384
        %3746 = vmatmul.mubr.f32.gmra.mrb[0].mxu0 %v3383
        %v3747 = vpop.f32.mrb[0].mxu0
        %v3748 = vadd.f32 %v3659, %v3747
        %v3749 = vpop.f32.mrb[0].mxu0
        %v3750 = vadd.f32 %v3661, %v3749
        %3751 = vmatprep.mubr.f32.mxu0 %v3386
        %3752 = vmatmul.mubr.f32.gmra.mrb[0].mxu0 %v3385
        %v3753 = vpop.f32.mrb[0].mxu0
        %v3754 = vadd.f32 %v3665, %v3753
        %v3755 = vpop.f32.mrb[0].mxu0
        %v3756 = vadd.f32 %v3667, %v3755
        %3757 = vdwg.mxu0
        %v3758 = vld [vmem:[#allocation2] sm:$0xfc]
        %v3759 = vld [vmem:[#allocation2 + $0x8] sm:$0xfc]
        %v3760 = vld [vmem:[#allocation2 + $0x10] sm:$0x3]
        %v3761 = vld [vmem:[#allocation2 + $0x18] sm:$0x3]
        %v3762 = vld [vmem:[#allocation2 + $0x20] sm:$0xfc]
        %v3763 = vld [vmem:[#allocation2 + $0x28] sm:$0xfc]
        %v3764 = vld [vmem:[#allocation2 + $0x30] sm:$0x3]
        %v3765 = vld [vmem:[#allocation2 + $0x38] sm:$0x3]
        %v3766 = vld [vmem:[#allocation2 + $0x40] sm:$0xfc]
        %v3767 = vld [vmem:[#allocation2 + $0x48] sm:$0xfc]
        %v3768 = vld [vmem:[#allocation2 + $0x50] sm:$0x3]
        %v3769 = vld [vmem:[#allocation2 + $0x58] sm:$0x3]
        %v3770 = vld [vmem:[#allocation2 + $0x60] sm:$0xfc]
        %v3771 = vld [vmem:[#allocation2 + $0x68] sm:$0xfc]
        %v3772 = vld [vmem:[#allocation2 + $0x70] sm:$0x3]
        %v3773 = vld [vmem:[#allocation2 + $0x78] sm:$0x3]
        %v3790 = vrot.slane %v3758, 2
        %v3791 = vrot.slane %v3760, 2
        %v3792 = vsel %vm1458, %v3790, %v3791
        %v3793 = vrot.slane %v3759, 2
        %v3794 = vrot.slane %v3761, 2
        %v3795 = vsel %vm1458, %v3793, %v3794
        %v3796 = vrot.slane %v3762, 2
        %v3797 = vrot.slane %v3764, 2
        %v3798 = vsel %vm1458, %v3796, %v3797
        %v3799 = vrot.slane %v3763, 2
        %v3800 = vrot.slane %v3765, 2
        %v3801 = vsel %vm1458, %v3799, %v3800
        %v3802 = vrot.slane %v3766, 2
        %v3803 = vrot.slane %v3768, 2
        %v3804 = vsel %vm1458, %v3802, %v3803
        %v3805 = vrot.slane %v3767, 2
        %v3806 = vrot.slane %v3769, 2
        %v3807 = vsel %vm1458, %v3805, %v3806
        %v3808 = vrot.slane %v3770, 2
        %v3809 = vrot.slane %v3772, 2
        %v3810 = vsel %vm1458, %v3808, %v3809
        %v3811 = vrot.slane %v3771, 2
        %v3812 = vrot.slane %v3773, 2
        %v3813 = vsel %vm1458, %v3811, %v3812
        %s3822 = scalar_lea.vmem [#allocation17], 1024
        %v3823 = vld [vmem:[%s3822] sm:$0xff]
        %v3824 = vld [vmem:[%s3822 + $0x8] sm:$0xff]
        %v3825 = vld [vmem:[%s3822 + $0x10] sm:$0xff]
        %v3826 = vld [vmem:[%s3822 + $0x18] sm:$0xff]
        %v3827 = vld [vmem:[%s3822 + $0x20] sm:$0xff]
        %v3828 = vld [vmem:[%s3822 + $0x28] sm:$0xff]
        %v3829 = vld [vmem:[%s3822 + $0x30] sm:$0xff]
        %v3830 = vld [vmem:[%s3822 + $0x38] sm:$0xff]
        %v3831 = vld [vmem:[%s3822 + $0x40] sm:$0xff]
        %v3832 = vld [vmem:[%s3822 + $0x48] sm:$0xff]
        %v3833 = vld [vmem:[%s3822 + $0x50] sm:$0xff]
        %v3834 = vld [vmem:[%s3822 + $0x58] sm:$0xff]
        %v3835 = vld [vmem:[%s3822 + $0x60] sm:$0xff]
        %v3836 = vld [vmem:[%s3822 + $0x68] sm:$0xff]
        %v3837 = vld [vmem:[%s3822 + $0x70] sm:$0xff]
        %v3838 = vld [vmem:[%s3822 + $0x78] sm:$0xff]
        %v3839 = vld [vmem:[%s3822 + $0x80] sm:$0xff]
        %v3840 = vld [vmem:[%s3822 + $0x88] sm:$0xff]
        %v3841 = vld [vmem:[%s3822 + $0x90] sm:$0xff]
        %v3842 = vld [vmem:[%s3822 + $0x98] sm:$0xff]
        %v3843 = vld [vmem:[%s3822 + $0xa0] sm:$0xff]
        %v3844 = vld [vmem:[%s3822 + $0xa8] sm:$0xff]
        %v3845 = vld [vmem:[%s3822 + $0xb0] sm:$0xff]
        %v3846 = vld [vmem:[%s3822 + $0xb8] sm:$0xff]
        %v3847 = vld [vmem:[%s3822 + $0xc0] sm:$0xff]
        %v3848 = vld [vmem:[%s3822 + $0xc8] sm:$0xff]
        %v3849 = vld [vmem:[%s3822 + $0xd0] sm:$0xff]
        %v3850 = vld [vmem:[%s3822 + $0xd8] sm:$0xff]
        %v3851 = vld [vmem:[%s3822 + $0xe0] sm:$0xff]
        %v3852 = vld [vmem:[%s3822 + $0xe8] sm:$0xff]
        %v3853 = vld [vmem:[%s3822 + $0xf0] sm:$0xff]
        %v3854 = vld [vmem:[%s3822 + $0xf8] sm:$0xff]
        %v3855 = vld [vmem:[%s3822 + $0x100] sm:$0xff]
        %v3856 = vld [vmem:[%s3822 + $0x108] sm:$0xff]
        %v3857 = vld [vmem:[%s3822 + $0x110] sm:$0xff]
        %v3858 = vld [vmem:[%s3822 + $0x118] sm:$0xff]
        %v3859 = vld [vmem:[%s3822 + $0x120] sm:$0xff]
        %v3860 = vld [vmem:[%s3822 + $0x128] sm:$0xff]
        %v3861 = vld [vmem:[%s3822 + $0x130] sm:$0xff]
        %v3862 = vld [vmem:[%s3822 + $0x138] sm:$0xff]
        %v3863 = vld [vmem:[%s3822 + $0x140] sm:$0xff]
        %v3864 = vld [vmem:[%s3822 + $0x148] sm:$0xff]
        %v3865 = vld [vmem:[%s3822 + $0x150] sm:$0xff]
        %v3866 = vld [vmem:[%s3822 + $0x158] sm:$0xff]
        %v3867 = vld [vmem:[%s3822 + $0x160] sm:$0xff]
        %v3868 = vld [vmem:[%s3822 + $0x168] sm:$0xff]
        %v3869 = vld [vmem:[%s3822 + $0x170] sm:$0xff]
        %v3870 = vld [vmem:[%s3822 + $0x178] sm:$0xff]
        %v3871 = vld [vmem:[%s3822 + $0x180] sm:$0xff]
        %v3872 = vld [vmem:[%s3822 + $0x188] sm:$0xff]
        %v3873 = vld [vmem:[%s3822 + $0x190] sm:$0xff]
        %v3874 = vld [vmem:[%s3822 + $0x198] sm:$0xff]
        %v3875 = vld [vmem:[%s3822 + $0x1a0] sm:$0xff]
        %v3876 = vld [vmem:[%s3822 + $0x1a8] sm:$0xff]
        %v3877 = vld [vmem:[%s3822 + $0x1b0] sm:$0xff]
        %v3878 = vld [vmem:[%s3822 + $0x1b8] sm:$0xff]
        %v3879 = vld [vmem:[%s3822 + $0x1c0] sm:$0xff]
        %v3880 = vld [vmem:[%s3822 + $0x1c8] sm:$0xff]
        %v3881 = vld [vmem:[%s3822 + $0x1d0] sm:$0xff]
        %v3882 = vld [vmem:[%s3822 + $0x1d8] sm:$0xff]
        %v3883 = vld [vmem:[%s3822 + $0x1e0] sm:$0xff]
        %v3884 = vld [vmem:[%s3822 + $0x1e8] sm:$0xff]
        %v3885 = vld [vmem:[%s3822 + $0x1f0] sm:$0xff]
        %v3886 = vld [vmem:[%s3822 + $0x1f8] sm:$0xff]
        %3887 = vmatprep.subr.mxu0 %v3824
        %3888 = vmatpush1.msra.mxu0 %v3823
        %3889 = vmatprep.subr.mxu0 %v3826
        %3890 = vmatpush1.msra.mxu0 %v3825
        %3891 = vmatprep.subr.mxu0 %v3828
        %3892 = vmatpush1.msra.mxu0 %v3827
        %3893 = vmatprep.subr.mxu0 %v3830
        %3894 = vmatpush1.msra.mxu0 %v3829
        %3895 = vmatprep.subr.mxu0 %v3832
        %3896 = vmatpush1.msra.mxu0 %v3831
        %3897 = vmatprep.subr.mxu0 %v3834
        %3898 = vmatpush1.msra.mxu0 %v3833
        %3899 = vmatprep.subr.mxu0 %v3836
        %3900 = vmatpush1.msra.mxu0 %v3835
        %3901 = vmatprep.subr.mxu0 %v3838
        %3902 = vmatpush1.msra.mxu0 %v3837
        %3903 = vmatprep.subr.mxu0 %v3840
        %3904 = vmatpush1.msra.mxu0 %v3839
        %3905 = vmatprep.subr.mxu0 %v3842
        %3906 = vmatpush1.msra.mxu0 %v3841
        %3907 = vmatprep.subr.mxu0 %v3844
        %3908 = vmatpush1.msra.mxu0 %v3843
        %3909 = vmatprep.subr.mxu0 %v3846
        %3910 = vmatpush1.msra.mxu0 %v3845
        %3911 = vmatprep.subr.mxu0 %v3848
        %3912 = vmatpush1.msra.mxu0 %v3847
        %3913 = vmatprep.subr.mxu0 %v3850
        %3914 = vmatpush1.msra.mxu0 %v3849
        %3915 = vmatprep.subr.mxu0 %v3852
        %3916 = vmatpush1.msra.mxu0 %v3851
        %3917 = vmatprep.subr.mxu0 %v3854
        %3918 = vmatpush1.msra.mxu0 %v3853
        %3919 = vmatprep.subr.mxu0 %v3856
        %3920 = vmatpush1.msra.mxu0 %v3855
        %3921 = vmatprep.subr.mxu0 %v3858
        %3922 = vmatpush1.msra.mxu0 %v3857
        %3923 = vmatprep.subr.mxu0 %v3860
        %3924 = vmatpush1.msra.mxu0 %v3859
        %3925 = vmatprep.subr.mxu0 %v3862
        %3926 = vmatpush1.msra.mxu0 %v3861
        %3927 = vmatprep.subr.mxu0 %v3864
        %3928 = vmatpush1.msra.mxu0 %v3863
        %3929 = vmatprep.subr.mxu0 %v3866
        %3930 = vmatpush1.msra.mxu0 %v3865
        %3931 = vmatprep.subr.mxu0 %v3868
        %3932 = vmatpush1.msra.mxu0 %v3867
        %3933 = vmatprep.subr.mxu0 %v3870
        %3934 = vmatpush1.msra.mxu0 %v3869
        %3935 = vmatprep.subr.mxu0 %v3872
        %3936 = vmatpush1.msra.mxu0 %v3871
        %3937 = vmatprep.subr.mxu0 %v3874
        %3938 = vmatpush1.msra.mxu0 %v3873
        %3939 = vmatprep.subr.mxu0 %v3876
        %3940 = vmatpush1.msra.mxu0 %v3875
        %3941 = vmatprep.subr.mxu0 %v3878
        %3942 = vmatpush1.msra.mxu0 %v3877
        %3943 = vmatprep.subr.mxu0 %v3880
        %3944 = vmatpush1.msra.mxu0 %v3879
        %3945 = vmatprep.subr.mxu0 %v3882
        %3946 = vmatpush1.msra.mxu0 %v3881
        %3947 = vmatprep.subr.mxu0 %v3884
        %3948 = vmatpush1.msra.mxu0 %v3883
        %3949 = vmatprep.subr.mxu0 %v3886
        %3950 = vmatpush1.msra.mxu0 %v3885
        %3951 = vmatprep.mubr.f32.mxu0 %v3795
        %3952 = vmatmul.mubr.f32.gmra.mrb[0].mxu0 %v3792
        %v3953 = vpop.f32.mrb[0].mxu0
        %v3954 = vadd.f32 0.0, %v3953
        %v3955 = vpop.f32.mrb[0].mxu0
        %v3956 = vadd.f32 0.0, %v3955
        %3957 = vmatprep.mubr.f32.mxu0 %v3801
        %3958 = vmatmul.mubr.f32.gmra.mrb[0].mxu0 %v3798
        %v3959 = vpop.f32.mrb[0].mxu0
        %v3960 = vadd.f32 0.0, %v3959
        %v3961 = vpop.f32.mrb[0].mxu0
        %v3962 = vadd.f32 0.0, %v3961
        %3963 = vmatprep.mubr.f32.mxu0 %v3807
        %3964 = vmatmul.mubr.f32.gmra.mrb[0].mxu0 %v3804
        %v3965 = vpop.f32.mrb[0].mxu0
        %v3966 = vadd.f32 0.0, %v3965
        %v3967 = vpop.f32.mrb[0].mxu0
        %v3968 = vadd.f32 0.0, %v3967
        %3969 = vmatprep.mubr.f32.mxu0 %v3813
        %3970 = vmatmul.mubr.f32.gmra.mrb[0].mxu0 %v3810
        %v3971 = vpop.f32.mrb[0].mxu0
        %v3972 = vadd.f32 0.0, %v3971
        %v3973 = vpop.f32.mrb[0].mxu0
        %v3974 = vadd.f32 0.0, %v3973
        %3975 = vdwg.mxu0
        %v3976 = vadd.f32 %v3736, %v3954
        %v3977 = vadd.f32 %v3738, %v3956
        %v3978 = vadd.f32 %v3742, %v3960
        %v3979 = vadd.f32 %v3744, %v3962
        %v3980 = vadd.f32 %v3748, %v3966
        %v3981 = vadd.f32 %v3750, %v3968
        %v3982 = vadd.f32 %v3754, %v3972
        %v3983 = vadd.f32 %v3756, %v3974
        %v3984 = vld [vmem:[%s848] sm:$0xff]
        %v3985 = vld [vmem:[%s848 + $0x8] sm:$0xff]
        %v3986 = vld [vmem:[%s848 + $0x20] sm:$0xff]
        %v3987 = vld [vmem:[%s848 + $0x28] sm:$0xff]
        %v3988 = vld [vmem:[%s848 + $0x40] sm:$0xff]
        %v3989 = vld [vmem:[%s848 + $0x48] sm:$0xff]
        %v3990 = vld [vmem:[%s848 + $0x60] sm:$0xff]
        %v3991 = vld [vmem:[%s848 + $0x68] sm:$0xff]
        %s3992 = scalar_lea.vmem [#allocation17], 1536
        %v3993 = vld [vmem:[%s3992] sm:$0xff]
        %v3994 = vld [vmem:[%s3992 + $0x8] sm:$0xff]
        %v3995 = vld [vmem:[%s3992 + $0x10] sm:$0xff]
        %v3996 = vld [vmem:[%s3992 + $0x18] sm:$0xff]
        %v3997 = vld [vmem:[%s3992 + $0x20] sm:$0xff]
        %v3998 = vld [vmem:[%s3992 + $0x28] sm:$0xff]
        %v3999 = vld [vmem:[%s3992 + $0x30] sm:$0xff]
        %v4000 = vld [vmem:[%s3992 + $0x38] sm:$0xff]
        %v4001 = vld [vmem:[%s3992 + $0x40] sm:$0xff]
        %v4002 = vld [vmem:[%s3992 + $0x48] sm:$0xff]
        %v4003 = vld [vmem:[%s3992 + $0x50] sm:$0xff]
        %v4004 = vld [vmem:[%s3992 + $0x58] sm:$0xff]
        %v4005 = vld [vmem:[%s3992 + $0x60] sm:$0xff]
        %v4006 = vld [vmem:[%s3992 + $0x68] sm:$0xff]
        %v4007 = vld [vmem:[%s3992 + $0x70] sm:$0xff]
        %v4008 = vld [vmem:[%s3992 + $0x78] sm:$0xff]
        %v4009 = vld [vmem:[%s3992 + $0x80] sm:$0xff]
        %v4010 = vld [vmem:[%s3992 + $0x88] sm:$0xff]
        %v4011 = vld [vmem:[%s3992 + $0x90] sm:$0xff]
        %v4012 = vld [vmem:[%s3992 + $0x98] sm:$0xff]
        %v4013 = vld [vmem:[%s3992 + $0xa0] sm:$0xff]
        %v4014 = vld [vmem:[%s3992 + $0xa8] sm:$0xff]
        %v4015 = vld [vmem:[%s3992 + $0xb0] sm:$0xff]
        %v4016 = vld [vmem:[%s3992 + $0xb8] sm:$0xff]
        %v4017 = vld [vmem:[%s3992 + $0xc0] sm:$0xff]
        %v4018 = vld [vmem:[%s3992 + $0xc8] sm:$0xff]
        %v4019 = vld [vmem:[%s3992 + $0xd0] sm:$0xff]
        %v4020 = vld [vmem:[%s3992 + $0xd8] sm:$0xff]
        %v4021 = vld [vmem:[%s3992 + $0xe0] sm:$0xff]
        %v4022 = vld [vmem:[%s3992 + $0xe8] sm:$0xff]
        %v4023 = vld [vmem:[%s3992 + $0xf0] sm:$0xff]
        %v4024 = vld [vmem:[%s3992 + $0xf8] sm:$0xff]
        %v4025 = vld [vmem:[%s3992 + $0x100] sm:$0xff]
        %v4026 = vld [vmem:[%s3992 + $0x108] sm:$0xff]
        %v4027 = vld [vmem:[%s3992 + $0x110] sm:$0xff]
        %v4028 = vld [vmem:[%s3992 + $0x118] sm:$0xff]
        %v4029 = vld [vmem:[%s3992 + $0x120] sm:$0xff]
        %v4030 = vld [vmem:[%s3992 + $0x128] sm:$0xff]
        %v4031 = vld [vmem:[%s3992 + $0x130] sm:$0xff]
        %v4032 = vld [vmem:[%s3992 + $0x138] sm:$0xff]
        %v4033 = vld [vmem:[%s3992 + $0x140] sm:$0xff]
        %v4034 = vld [vmem:[%s3992 + $0x148] sm:$0xff]
        %v4035 = vld [vmem:[%s3992 + $0x150] sm:$0xff]
        %v4036 = vld [vmem:[%s3992 + $0x158] sm:$0xff]
        %v4037 = vld [vmem:[%s3992 + $0x160] sm:$0xff]
        %v4038 = vld [vmem:[%s3992 + $0x168] sm:$0xff]
        %v4039 = vld [vmem:[%s3992 + $0x170] sm:$0xff]
        %v4040 = vld [vmem:[%s3992 + $0x178] sm:$0xff]
        %v4041 = vld [vmem:[%s3992 + $0x180] sm:$0xff]
        %v4042 = vld [vmem:[%s3992 + $0x188] sm:$0xff]
        %v4043 = vld [vmem:[%s3992 + $0x190] sm:$0xff]
        %v4044 = vld [vmem:[%s3992 + $0x198] sm:$0xff]
        %v4045 = vld [vmem:[%s3992 + $0x1a0] sm:$0xff]
        %v4046 = vld [vmem:[%s3992 + $0x1a8] sm:$0xff]
        %v4047 = vld [vmem:[%s3992 + $0x1b0] sm:$0xff]
        %v4048 = vld [vmem:[%s3992 + $0x1b8] sm:$0xff]
        %v4049 = vld [vmem:[%s3992 + $0x1c0] sm:$0xff]
        %v4050 = vld [vmem:[%s3992 + $0x1c8] sm:$0xff]
        %v4051 = vld [vmem:[%s3992 + $0x1d0] sm:$0xff]
        %v4052 = vld [vmem:[%s3992 + $0x1d8] sm:$0xff]
        %v4053 = vld [vmem:[%s3992 + $0x1e0] sm:$0xff]
        %v4054 = vld [vmem:[%s3992 + $0x1e8] sm:$0xff]
        %v4055 = vld [vmem:[%s3992 + $0x1f0] sm:$0xff]
        %v4056 = vld [vmem:[%s3992 + $0x1f8] sm:$0xff]
        %4057 = vmatprep.subr.mxu0 %v3994
        %4058 = vmatpush1.msra.mxu0 %v3993
        %4059 = vmatprep.subr.mxu0 %v3996
        %4060 = vmatpush1.msra.mxu0 %v3995
        %4061 = vmatprep.subr.mxu0 %v3998
        %4062 = vmatpush1.msra.mxu0 %v3997
        %4063 = vmatprep.subr.mxu0 %v4000
        %4064 = vmatpush1.msra.mxu0 %v3999
        %4065 = vmatprep.subr.mxu0 %v4002
        %4066 = vmatpush1.msra.mxu0 %v4001
        %4067 = vmatprep.subr.mxu0 %v4004
        %4068 = vmatpush1.msra.mxu0 %v4003
        %4069 = vmatprep.subr.mxu0 %v4006
        %4070 = vmatpush1.msra.mxu0 %v4005
        %4071 = vmatprep.subr.mxu0 %v4008
        %4072 = vmatpush1.msra.mxu0 %v4007
        %4073 = vmatprep.subr.mxu0 %v4010
        %4074 = vmatpush1.msra.mxu0 %v4009
        %4075 = vmatprep.subr.mxu0 %v4012
        %4076 = vmatpush1.msra.mxu0 %v4011
        %4077 = vmatprep.subr.mxu0 %v4014
        %4078 = vmatpush1.msra.mxu0 %v4013
        %4079 = vmatprep.subr.mxu0 %v4016
        %4080 = vmatpush1.msra.mxu0 %v4015
        %4081 = vmatprep.subr.mxu0 %v4018
        %4082 = vmatpush1.msra.mxu0 %v4017
        %4083 = vmatprep.subr.mxu0 %v4020
        %4084 = vmatpush1.msra.mxu0 %v4019
        %4085 = vmatprep.subr.mxu0 %v4022
        %4086 = vmatpush1.msra.mxu0 %v4021
        %4087 = vmatprep.subr.mxu0 %v4024
        %4088 = vmatpush1.msra.mxu0 %v4023
        %4089 = vmatprep.subr.mxu0 %v4026
        %4090 = vmatpush1.msra.mxu0 %v4025
        %4091 = vmatprep.subr.mxu0 %v4028
        %4092 = vmatpush1.msra.mxu0 %v4027
        %4093 = vmatprep.subr.mxu0 %v4030
        %4094 = vmatpush1.msra.mxu0 %v4029
        %4095 = vmatprep.subr.mxu0 %v4032
        %4096 = vmatpush1.msra.mxu0 %v4031
        %4097 = vmatprep.subr.mxu0 %v4034
        %4098 = vmatpush1.msra.mxu0 %v4033
        %4099 = vmatprep.subr.mxu0 %v4036
        %4100 = vmatpush1.msra.mxu0 %v4035
        %4101 = vmatprep.subr.mxu0 %v4038
        %4102 = vmatpush1.msra.mxu0 %v4037
        %4103 = vmatprep.subr.mxu0 %v4040
        %4104 = vmatpush1.msra.mxu0 %v4039
        %4105 = vmatprep.subr.mxu0 %v4042
        %4106 = vmatpush1.msra.mxu0 %v4041
        %4107 = vmatprep.subr.mxu0 %v4044
        %4108 = vmatpush1.msra.mxu0 %v4043
        %4109 = vmatprep.subr.mxu0 %v4046
        %4110 = vmatpush1.msra.mxu0 %v4045
        %4111 = vmatprep.subr.mxu0 %v4048
        %4112 = vmatpush1.msra.mxu0 %v4047
        %4113 = vmatprep.subr.mxu0 %v4050
        %4114 = vmatpush1.msra.mxu0 %v4049
        %4115 = vmatprep.subr.mxu0 %v4052
        %4116 = vmatpush1.msra.mxu0 %v4051
        %4117 = vmatprep.subr.mxu0 %v4054
        %4118 = vmatpush1.msra.mxu0 %v4053
        %4119 = vmatprep.subr.mxu0 %v4056
        %4120 = vmatpush1.msra.mxu0 %v4055
        %4121 = vmatprep.mubr.f32.mxu0 %v3985
        %4122 = vmatmul.mubr.f32.gmra.mrb[0].mxu0 %v3984
        %v4123 = vpop.f32.mrb[0].mxu0
        %v4124 = vadd.f32 0.0, %v4123
        %v4125 = vpop.f32.mrb[0].mxu0
        %v4126 = vadd.f32 0.0, %v4125
        %4127 = vmatprep.mubr.f32.mxu0 %v3987
        %4128 = vmatmul.mubr.f32.gmra.mrb[0].mxu0 %v3986
        %v4129 = vpop.f32.mrb[0].mxu0
        %v4130 = vadd.f32 0.0, %v4129
        %v4131 = vpop.f32.mrb[0].mxu0
        %v4132 = vadd.f32 0.0, %v4131
        %4133 = vmatprep.mubr.f32.mxu0 %v3989
        %4134 = vmatmul.mubr.f32.gmra.mrb[0].mxu0 %v3988
        %v4135 = vpop.f32.mrb[0].mxu0
        %v4136 = vadd.f32 0.0, %v4135
        %v4137 = vpop.f32.mrb[0].mxu0
        %v4138 = vadd.f32 0.0, %v4137
        %4139 = vmatprep.mubr.f32.mxu0 %v3991
        %4140 = vmatmul.mubr.f32.gmra.mrb[0].mxu0 %v3990
        %v4141 = vpop.f32.mrb[0].mxu0
        %v4142 = vadd.f32 0.0, %v4141
        %v4143 = vpop.f32.mrb[0].mxu0
        %v4144 = vadd.f32 0.0, %v4143
        %4145 = vdwg.mxu0
        %v4146 = vadd.f32 %v3976, %v4124
        %v4147 = vadd.f32 %v3977, %v4126
        %v4148 = vadd.f32 %v3978, %v4130
        %v4149 = vadd.f32 %v3979, %v4132
        %v4150 = vadd.f32 %v3980, %v4136
        %v4151 = vadd.f32 %v3981, %v4138
        %v4152 = vadd.f32 %v3982, %v4142
        %v4153 = vadd.f32 %v3983, %v4144
        %v4154 = vld [vmem:[%s848] sm:$0xfe]
        %v4155 = vld [vmem:[%s848 + $0x8] sm:$0xfe]
        %v4156 = vld [vmem:[%s848 + $0x10] sm:$0x1]
        %v4157 = vld [vmem:[%s848 + $0x18] sm:$0x1]
        %v4158 = vld [vmem:[%s848 + $0x20] sm:$0xfe]
        %v4159 = vld [vmem:[%s848 + $0x28] sm:$0xfe]
        %v4160 = vld [vmem:[%s848 + $0x30] sm:$0x1]
        %v4161 = vld [vmem:[%s848 + $0x38] sm:$0x1]
        %v4162 = vld [vmem:[%s848 + $0x40] sm:$0xfe]
        %v4163 = vld [vmem:[%s848 + $0x48] sm:$0xfe]
        %v4164 = vld [vmem:[%s848 + $0x50] sm:$0x1]
        %v4165 = vld [vmem:[%s848 + $0x58] sm:$0x1]
        %v4166 = vld [vmem:[%s848 + $0x60] sm:$0xfe]
        %v4167 = vld [vmem:[%s848 + $0x68] sm:$0xfe]
        %v4168 = vld [vmem:[%s848 + $0x70] sm:$0x1]
        %v4169 = vld [vmem:[%s848 + $0x78] sm:$0x1]
        %v4186 = vrot.slane %v4154, 1
        %v4187 = vrot.slane %v4156, 1
        %v4188 = vsel %vm1150, %v4186, %v4187
        %v4189 = vrot.slane %v4155, 1
        %v4190 = vrot.slane %v4157, 1
        %v4191 = vsel %vm1150, %v4189, %v4190
        %v4192 = vrot.slane %v4158, 1
        %v4193 = vrot.slane %v4160, 1
        %v4194 = vsel %vm1150, %v4192, %v4193
        %v4195 = vrot.slane %v4159, 1
        %v4196 = vrot.slane %v4161, 1
        %v4197 = vsel %vm1150, %v4195, %v4196
        %v4198 = vrot.slane %v4162, 1
        %v4199 = vrot.slane %v4164, 1
        %v4200 = vsel %vm1150, %v4198, %v4199
        %v4201 = vrot.slane %v4163, 1
        %v4202 = vrot.slane %v4165, 1
        %v4203 = vsel %vm1150, %v4201, %v4202
        %v4204 = vrot.slane %v4166, 1
        %v4205 = vrot.slane %v4168, 1
        %v4206 = vsel %vm1150, %v4204, %v4205
        %v4207 = vrot.slane %v4167, 1
        %v4208 = vrot.slane %v4169, 1
        %v4209 = vsel %vm1150, %v4207, %v4208
        %s4218 = scalar_lea.vmem [#allocation17], 2048
        %v4219 = vld [vmem:[%s4218] sm:$0xff]
        %v4220 = vld [vmem:[%s4218 + $0x8] sm:$0xff]
        %v4221 = vld [vmem:[%s4218 + $0x10] sm:$0xff]
        %v4222 = vld [vmem:[%s4218 + $0x18] sm:$0xff]
        %v4223 = vld [vmem:[%s4218 + $0x20] sm:$0xff]
        %v4224 = vld [vmem:[%s4218 + $0x28] sm:$0xff]
        %v4225 = vld [vmem:[%s4218 + $0x30] sm:$0xff]
        %v4226 = vld [vmem:[%s4218 + $0x38] sm:$0xff]
        %v4227 = vld [vmem:[%s4218 + $0x40] sm:$0xff]
        %v4228 = vld [vmem:[%s4218 + $0x48] sm:$0xff]
        %v4229 = vld [vmem:[%s4218 + $0x50] sm:$0xff]
        %v4230 = vld [vmem:[%s4218 + $0x58] sm:$0xff]
        %v4231 = vld [vmem:[%s4218 + $0x60] sm:$0xff]
        %v4232 = vld [vmem:[%s4218 + $0x68] sm:$0xff]
        %v4233 = vld [vmem:[%s4218 + $0x70] sm:$0xff]
        %v4234 = vld [vmem:[%s4218 + $0x78] sm:$0xff]
        %v4235 = vld [vmem:[%s4218 + $0x80] sm:$0xff]
        %v4236 = vld [vmem:[%s4218 + $0x88] sm:$0xff]
        %v4237 = vld [vmem:[%s4218 + $0x90] sm:$0xff]
        %v4238 = vld [vmem:[%s4218 + $0x98] sm:$0xff]
        %v4239 = vld [vmem:[%s4218 + $0xa0] sm:$0xff]
        %v4240 = vld [vmem:[%s4218 + $0xa8] sm:$0xff]
        %v4241 = vld [vmem:[%s4218 + $0xb0] sm:$0xff]
        %v4242 = vld [vmem:[%s4218 + $0xb8] sm:$0xff]
        %v4243 = vld [vmem:[%s4218 + $0xc0] sm:$0xff]
        %v4244 = vld [vmem:[%s4218 + $0xc8] sm:$0xff]
        %v4245 = vld [vmem:[%s4218 + $0xd0] sm:$0xff]
        %v4246 = vld [vmem:[%s4218 + $0xd8] sm:$0xff]
        %v4247 = vld [vmem:[%s4218 + $0xe0] sm:$0xff]
        %v4248 = vld [vmem:[%s4218 + $0xe8] sm:$0xff]
        %v4249 = vld [vmem:[%s4218 + $0xf0] sm:$0xff]
        %v4250 = vld [vmem:[%s4218 + $0xf8] sm:$0xff]
        %v4251 = vld [vmem:[%s4218 + $0x100] sm:$0xff]
        %v4252 = vld [vmem:[%s4218 + $0x108] sm:$0xff]
        %v4253 = vld [vmem:[%s4218 + $0x110] sm:$0xff]
        %v4254 = vld [vmem:[%s4218 + $0x118] sm:$0xff]
        %v4255 = vld [vmem:[%s4218 + $0x120] sm:$0xff]
        %v4256 = vld [vmem:[%s4218 + $0x128] sm:$0xff]
        %v4257 = vld [vmem:[%s4218 + $0x130] sm:$0xff]
        %v4258 = vld [vmem:[%s4218 + $0x138] sm:$0xff]
        %v4259 = vld [vmem:[%s4218 + $0x140] sm:$0xff]
        %v4260 = vld [vmem:[%s4218 + $0x148] sm:$0xff]
        %v4261 = vld [vmem:[%s4218 + $0x150] sm:$0xff]
        %v4262 = vld [vmem:[%s4218 + $0x158] sm:$0xff]
        %v4263 = vld [vmem:[%s4218 + $0x160] sm:$0xff]
        %v4264 = vld [vmem:[%s4218 + $0x168] sm:$0xff]
        %v4265 = vld [vmem:[%s4218 + $0x170] sm:$0xff]
        %v4266 = vld [vmem:[%s4218 + $0x178] sm:$0xff]
        %v4267 = vld [vmem:[%s4218 + $0x180] sm:$0xff]
        %v4268 = vld [vmem:[%s4218 + $0x188] sm:$0xff]
        %v4269 = vld [vmem:[%s4218 + $0x190] sm:$0xff]
        %v4270 = vld [vmem:[%s4218 + $0x198] sm:$0xff]
        %v4271 = vld [vmem:[%s4218 + $0x1a0] sm:$0xff]
        %v4272 = vld [vmem:[%s4218 + $0x1a8] sm:$0xff]
        %v4273 = vld [vmem:[%s4218 + $0x1b0] sm:$0xff]
        %v4274 = vld [vmem:[%s4218 + $0x1b8] sm:$0xff]
        %v4275 = vld [vmem:[%s4218 + $0x1c0] sm:$0xff]
        %v4276 = vld [vmem:[%s4218 + $0x1c8] sm:$0xff]
        %v4277 = vld [vmem:[%s4218 + $0x1d0] sm:$0xff]
        %v4278 = vld [vmem:[%s4218 + $0x1d8] sm:$0xff]
        %v4279 = vld [vmem:[%s4218 + $0x1e0] sm:$0xff]
        %v4280 = vld [vmem:[%s4218 + $0x1e8] sm:$0xff]
        %v4281 = vld [vmem:[%s4218 + $0x1f0] sm:$0xff]
        %v4282 = vld [vmem:[%s4218 + $0x1f8] sm:$0xff]
        %4283 = vmatprep.subr.mxu0 %v4220
        %4284 = vmatpush1.msra.mxu0 %v4219
        %4285 = vmatprep.subr.mxu0 %v4222
        %4286 = vmatpush1.msra.mxu0 %v4221
        %4287 = vmatprep.subr.mxu0 %v4224
        %4288 = vmatpush1.msra.mxu0 %v4223
        %4289 = vmatprep.subr.mxu0 %v4226
        %4290 = vmatpush1.msra.mxu0 %v4225
        %4291 = vmatprep.subr.mxu0 %v4228
        %4292 = vmatpush1.msra.mxu0 %v4227
        %4293 = vmatprep.subr.mxu0 %v4230
        %4294 = vmatpush1.msra.mxu0 %v4229
        %4295 = vmatprep.subr.mxu0 %v4232
        %4296 = vmatpush1.msra.mxu0 %v4231
        %4297 = vmatprep.subr.mxu0 %v4234
        %4298 = vmatpush1.msra.mxu0 %v4233
        %4299 = vmatprep.subr.mxu0 %v4236
        %4300 = vmatpush1.msra.mxu0 %v4235
        %4301 = vmatprep.subr.mxu0 %v4238
        %4302 = vmatpush1.msra.mxu0 %v4237
        %4303 = vmatprep.subr.mxu0 %v4240
        %4304 = vmatpush1.msra.mxu0 %v4239
        %4305 = vmatprep.subr.mxu0 %v4242
        %4306 = vmatpush1.msra.mxu0 %v4241
        %4307 = vmatprep.subr.mxu0 %v4244
        %4308 = vmatpush1.msra.mxu0 %v4243
        %4309 = vmatprep.subr.mxu0 %v4246
        %4310 = vmatpush1.msra.mxu0 %v4245
        %4311 = vmatprep.subr.mxu0 %v4248
        %4312 = vmatpush1.msra.mxu0 %v4247
        %4313 = vmatprep.subr.mxu0 %v4250
        %4314 = vmatpush1.msra.mxu0 %v4249
        %4315 = vmatprep.subr.mxu0 %v4252
        %4316 = vmatpush1.msra.mxu0 %v4251
        %4317 = vmatprep.subr.mxu0 %v4254
        %4318 = vmatpush1.msra.mxu0 %v4253
        %4319 = vmatprep.subr.mxu0 %v4256
        %4320 = vmatpush1.msra.mxu0 %v4255
        %4321 = vmatprep.subr.mxu0 %v4258
        %4322 = vmatpush1.msra.mxu0 %v4257
        %4323 = vmatprep.subr.mxu0 %v4260
        %4324 = vmatpush1.msra.mxu0 %v4259
        %4325 = vmatprep.subr.mxu0 %v4262
        %4326 = vmatpush1.msra.mxu0 %v4261
        %4327 = vmatprep.subr.mxu0 %v4264
        %4328 = vmatpush1.msra.mxu0 %v4263
        %4329 = vmatprep.subr.mxu0 %v4266
        %4330 = vmatpush1.msra.mxu0 %v4265
        %4331 = vmatprep.subr.mxu0 %v4268
        %4332 = vmatpush1.msra.mxu0 %v4267
        %4333 = vmatprep.subr.mxu0 %v4270
        %4334 = vmatpush1.msra.mxu0 %v4269
        %4335 = vmatprep.subr.mxu0 %v4272
        %4336 = vmatpush1.msra.mxu0 %v4271
        %4337 = vmatprep.subr.mxu0 %v4274
        %4338 = vmatpush1.msra.mxu0 %v4273
        %4339 = vmatprep.subr.mxu0 %v4276
        %4340 = vmatpush1.msra.mxu0 %v4275
        %4341 = vmatprep.subr.mxu0 %v4278
        %4342 = vmatpush1.msra.mxu0 %v4277
        %4343 = vmatprep.subr.mxu0 %v4280
        %4344 = vmatpush1.msra.mxu0 %v4279
        %4345 = vmatprep.subr.mxu0 %v4282
        %4346 = vmatpush1.msra.mxu0 %v4281
        %4347 = vmatprep.mubr.f32.mxu0 %v4191
        %4348 = vmatmul.mubr.f32.gmra.mrb[0].mxu0 %v4188
        %v4349 = vpop.f32.mrb[0].mxu0
        %v4350 = vadd.f32 0.0, %v4349
        %v4351 = vpop.f32.mrb[0].mxu0
        %v4352 = vadd.f32 0.0, %v4351
        %4353 = vmatprep.mubr.f32.mxu0 %v4197
        %4354 = vmatmul.mubr.f32.gmra.mrb[0].mxu0 %v4194
        %v4355 = vpop.f32.mrb[0].mxu0
        %v4356 = vadd.f32 0.0, %v4355
        %v4357 = vpop.f32.mrb[0].mxu0
        %v4358 = vadd.f32 0.0, %v4357
        %4359 = vmatprep.mubr.f32.mxu0 %v4203
        %4360 = vmatmul.mubr.f32.gmra.mrb[0].mxu0 %v4200
        %v4361 = vpop.f32.mrb[0].mxu0
        %v4362 = vadd.f32 0.0, %v4361
        %v4363 = vpop.f32.mrb[0].mxu0
        %v4364 = vadd.f32 0.0, %v4363
        %4365 = vmatprep.mubr.f32.mxu0 %v4209
        %4366 = vmatmul.mubr.f32.gmra.mrb[0].mxu0 %v4206
        %v4367 = vpop.f32.mrb[0].mxu0
        %v4368 = vadd.f32 0.0, %v4367
        %v4369 = vpop.f32.mrb[0].mxu0
        %v4370 = vadd.f32 0.0, %v4369
        %4371 = vdwg.mxu0
        %v4372 = vadd.f32 %v4146, %v4350
        %v4373 = vadd.f32 %v4147, %v4352
        %v4374 = vadd.f32 %v4148, %v4356
        %v4375 = vadd.f32 %v4149, %v4358
        %v4376 = vadd.f32 %v4150, %v4362
        %v4377 = vadd.f32 %v4151, %v4364
        %v4378 = vadd.f32 %v4152, %v4368
        %v4379 = vadd.f32 %v4153, %v4370
        %v4380 = vld [vmem:[%s848] sm:$0xfc]
        %v4381 = vld [vmem:[%s848 + $0x8] sm:$0xfc]
        %v4382 = vld [vmem:[%s848 + $0x10] sm:$0x3]
        %v4383 = vld [vmem:[%s848 + $0x18] sm:$0x3]
        %v4384 = vld [vmem:[%s848 + $0x20] sm:$0xfc]
        %v4385 = vld [vmem:[%s848 + $0x28] sm:$0xfc]
        %v4386 = vld [vmem:[%s848 + $0x30] sm:$0x3]
        %v4387 = vld [vmem:[%s848 + $0x38] sm:$0x3]
        %v4388 = vld [vmem:[%s848 + $0x40] sm:$0xfc]
        %v4389 = vld [vmem:[%s848 + $0x48] sm:$0xfc]
        %v4390 = vld [vmem:[%s848 + $0x50] sm:$0x3]
        %v4391 = vld [vmem:[%s848 + $0x58] sm:$0x3]
        %v4392 = vld [vmem:[%s848 + $0x60] sm:$0xfc]
        %v4393 = vld [vmem:[%s848 + $0x68] sm:$0xfc]
        %v4394 = vld [vmem:[%s848 + $0x70] sm:$0x3]
        %v4395 = vld [vmem:[%s848 + $0x78] sm:$0x3]
        %v4412 = vrot.slane %v4380, 2
        %v4413 = vrot.slane %v4382, 2
        %v4414 = vsel %vm1458, %v4412, %v4413
        %v4415 = vrot.slane %v4381, 2
        %v4416 = vrot.slane %v4383, 2
        %v4417 = vsel %vm1458, %v4415, %v4416
        %v4418 = vrot.slane %v4384, 2
        %v4419 = vrot.slane %v4386, 2
        %v4420 = vsel %vm1458, %v4418, %v4419
        %v4421 = vrot.slane %v4385, 2
        %v4422 = vrot.slane %v4387, 2
        %v4423 = vsel %vm1458, %v4421, %v4422
        %v4424 = vrot.slane %v4388, 2
        %v4425 = vrot.slane %v4390, 2
        %v4426 = vsel %vm1458, %v4424, %v4425
        %v4427 = vrot.slane %v4389, 2
        %v4428 = vrot.slane %v4391, 2
        %v4429 = vsel %vm1458, %v4427, %v4428
        %v4430 = vrot.slane %v4392, 2
        %v4431 = vrot.slane %v4394, 2
        %v4432 = vsel %vm1458, %v4430, %v4431
        %v4433 = vrot.slane %v4393, 2
        %v4434 = vrot.slane %v4395, 2
        %v4435 = vsel %vm1458, %v4433, %v4434
        %s4444 = scalar_lea.vmem [#allocation17], 2560
        %v4445 = vld [vmem:[%s4444] sm:$0xff]
        %v4446 = vld [vmem:[%s4444 + $0x8] sm:$0xff]
        %v4447 = vld [vmem:[%s4444 + $0x10] sm:$0xff]
        %v4448 = vld [vmem:[%s4444 + $0x18] sm:$0xff]
        %v4449 = vld [vmem:[%s4444 + $0x20] sm:$0xff]
        %v4450 = vld [vmem:[%s4444 + $0x28] sm:$0xff]
        %v4451 = vld [vmem:[%s4444 + $0x30] sm:$0xff]
        %v4452 = vld [vmem:[%s4444 + $0x38] sm:$0xff]
        %v4453 = vld [vmem:[%s4444 + $0x40] sm:$0xff]
        %v4454 = vld [vmem:[%s4444 + $0x48] sm:$0xff]
        %v4455 = vld [vmem:[%s4444 + $0x50] sm:$0xff]
        %v4456 = vld [vmem:[%s4444 + $0x58] sm:$0xff]
        %v4457 = vld [vmem:[%s4444 + $0x60] sm:$0xff]
        %v4458 = vld [vmem:[%s4444 + $0x68] sm:$0xff]
        %v4459 = vld [vmem:[%s4444 + $0x70] sm:$0xff]
        %v4460 = vld [vmem:[%s4444 + $0x78] sm:$0xff]
        %v4461 = vld [vmem:[%s4444 + $0x80] sm:$0xff]
        %v4462 = vld [vmem:[%s4444 + $0x88] sm:$0xff]
        %v4463 = vld [vmem:[%s4444 + $0x90] sm:$0xff]
        %v4464 = vld [vmem:[%s4444 + $0x98] sm:$0xff]
        %v4465 = vld [vmem:[%s4444 + $0xa0] sm:$0xff]
        %v4466 = vld [vmem:[%s4444 + $0xa8] sm:$0xff]
        %v4467 = vld [vmem:[%s4444 + $0xb0] sm:$0xff]
        %v4468 = vld [vmem:[%s4444 + $0xb8] sm:$0xff]
        %v4469 = vld [vmem:[%s4444 + $0xc0] sm:$0xff]
        %v4470 = vld [vmem:[%s4444 + $0xc8] sm:$0xff]
        %v4471 = vld [vmem:[%s4444 + $0xd0] sm:$0xff]
        %v4472 = vld [vmem:[%s4444 + $0xd8] sm:$0xff]
        %v4473 = vld [vmem:[%s4444 + $0xe0] sm:$0xff]
        %v4474 = vld [vmem:[%s4444 + $0xe8] sm:$0xff]
        %v4475 = vld [vmem:[%s4444 + $0xf0] sm:$0xff]
        %v4476 = vld [vmem:[%s4444 + $0xf8] sm:$0xff]
        %v4477 = vld [vmem:[%s4444 + $0x100] sm:$0xff]
        %v4478 = vld [vmem:[%s4444 + $0x108] sm:$0xff]
        %v4479 = vld [vmem:[%s4444 + $0x110] sm:$0xff]
        %v4480 = vld [vmem:[%s4444 + $0x118] sm:$0xff]
        %v4481 = vld [vmem:[%s4444 + $0x120] sm:$0xff]
        %v4482 = vld [vmem:[%s4444 + $0x128] sm:$0xff]
        %v4483 = vld [vmem:[%s4444 + $0x130] sm:$0xff]
        %v4484 = vld [vmem:[%s4444 + $0x138] sm:$0xff]
        %v4485 = vld [vmem:[%s4444 + $0x140] sm:$0xff]
        %v4486 = vld [vmem:[%s4444 + $0x148] sm:$0xff]
        %v4487 = vld [vmem:[%s4444 + $0x150] sm:$0xff]
        %v4488 = vld [vmem:[%s4444 + $0x158] sm:$0xff]
        %v4489 = vld [vmem:[%s4444 + $0x160] sm:$0xff]
        %v4490 = vld [vmem:[%s4444 + $0x168] sm:$0xff]
        %v4491 = vld [vmem:[%s4444 + $0x170] sm:$0xff]
        %v4492 = vld [vmem:[%s4444 + $0x178] sm:$0xff]
        %v4493 = vld [vmem:[%s4444 + $0x180] sm:$0xff]
        %v4494 = vld [vmem:[%s4444 + $0x188] sm:$0xff]
        %v4495 = vld [vmem:[%s4444 + $0x190] sm:$0xff]
        %v4496 = vld [vmem:[%s4444 + $0x198] sm:$0xff]
        %v4497 = vld [vmem:[%s4444 + $0x1a0] sm:$0xff]
        %v4498 = vld [vmem:[%s4444 + $0x1a8] sm:$0xff]
        %v4499 = vld [vmem:[%s4444 + $0x1b0] sm:$0xff]
        %v4500 = vld [vmem:[%s4444 + $0x1b8] sm:$0xff]
        %v4501 = vld [vmem:[%s4444 + $0x1c0] sm:$0xff]
        %v4502 = vld [vmem:[%s4444 + $0x1c8] sm:$0xff]
        %v4503 = vld [vmem:[%s4444 + $0x1d0] sm:$0xff]
        %v4504 = vld [vmem:[%s4444 + $0x1d8] sm:$0xff]
        %v4505 = vld [vmem:[%s4444 + $0x1e0] sm:$0xff]
        %v4506 = vld [vmem:[%s4444 + $0x1e8] sm:$0xff]
        %v4507 = vld [vmem:[%s4444 + $0x1f0] sm:$0xff]
        %v4508 = vld [vmem:[%s4444 + $0x1f8] sm:$0xff]
        %4509 = vmatprep.subr.mxu0 %v4446
        %4510 = vmatpush1.msra.mxu0 %v4445
        %4511 = vmatprep.subr.mxu0 %v4448
        %4512 = vmatpush1.msra.mxu0 %v4447
        %4513 = vmatprep.subr.mxu0 %v4450
        %4514 = vmatpush1.msra.mxu0 %v4449
        %4515 = vmatprep.subr.mxu0 %v4452
        %4516 = vmatpush1.msra.mxu0 %v4451
        %4517 = vmatprep.subr.mxu0 %v4454
        %4518 = vmatpush1.msra.mxu0 %v4453
        %4519 = vmatprep.subr.mxu0 %v4456
        %4520 = vmatpush1.msra.mxu0 %v4455
        %4521 = vmatprep.subr.mxu0 %v4458
        %4522 = vmatpush1.msra.mxu0 %v4457
        %4523 = vmatprep.subr.mxu0 %v4460
        %4524 = vmatpush1.msra.mxu0 %v4459
        %4525 = vmatprep.subr.mxu0 %v4462
        %4526 = vmatpush1.msra.mxu0 %v4461
        %4527 = vmatprep.subr.mxu0 %v4464
        %4528 = vmatpush1.msra.mxu0 %v4463
        %4529 = vmatprep.subr.mxu0 %v4466
        %4530 = vmatpush1.msra.mxu0 %v4465
        %4531 = vmatprep.subr.mxu0 %v4468
        %4532 = vmatpush1.msra.mxu0 %v4467
        %4533 = vmatprep.subr.mxu0 %v4470
        %4534 = vmatpush1.msra.mxu0 %v4469
        %4535 = vmatprep.subr.mxu0 %v4472
        %4536 = vmatpush1.msra.mxu0 %v4471
        %4537 = vmatprep.subr.mxu0 %v4474
        %4538 = vmatpush1.msra.mxu0 %v4473
        %4539 = vmatprep.subr.mxu0 %v4476
        %4540 = vmatpush1.msra.mxu0 %v4475
        %4541 = vmatprep.subr.mxu0 %v4478
        %4542 = vmatpush1.msra.mxu0 %v4477
        %4543 = vmatprep.subr.mxu0 %v4480
        %4544 = vmatpush1.msra.mxu0 %v4479
        %4545 = vmatprep.subr.mxu0 %v4482
        %4546 = vmatpush1.msra.mxu0 %v4481
        %4547 = vmatprep.subr.mxu0 %v4484
        %4548 = vmatpush1.msra.mxu0 %v4483
        %4549 = vmatprep.subr.mxu0 %v4486
        %4550 = vmatpush1.msra.mxu0 %v4485
        %4551 = vmatprep.subr.mxu0 %v4488
        %4552 = vmatpush1.msra.mxu0 %v4487
        %4553 = vmatprep.subr.mxu0 %v4490
        %4554 = vmatpush1.msra.mxu0 %v4489
        %4555 = vmatprep.subr.mxu0 %v4492
        %4556 = vmatpush1.msra.mxu0 %v4491
        %4557 = vmatprep.subr.mxu0 %v4494
        %4558 = vmatpush1.msra.mxu0 %v4493
        %4559 = vmatprep.subr.mxu0 %v4496
        %4560 = vmatpush1.msra.mxu0 %v4495
        %4561 = vmatprep.subr.mxu0 %v4498
        %4562 = vmatpush1.msra.mxu0 %v4497
        %4563 = vmatprep.subr.mxu0 %v4500
        %4564 = vmatpush1.msra.mxu0 %v4499
        %4565 = vmatprep.subr.mxu0 %v4502
        %4566 = vmatpush1.msra.mxu0 %v4501
        %4567 = vmatprep.subr.mxu0 %v4504
        %4568 = vmatpush1.msra.mxu0 %v4503
        %4569 = vmatprep.subr.mxu0 %v4506
        %4570 = vmatpush1.msra.mxu0 %v4505
        %4571 = vmatprep.subr.mxu0 %v4508
        %4572 = vmatpush1.msra.mxu0 %v4507
        %4573 = vmatprep.mubr.f32.mxu0 %v4417
        %4574 = vmatmul.mubr.f32.gmra.mrb[0].mxu0 %v4414
        %v4575 = vpop.f32.mrb[0].mxu0
        %v4576 = vadd.f32 0.0, %v4575
        %v4577 = vpop.f32.mrb[0].mxu0
        %v4578 = vadd.f32 0.0, %v4577
        %4579 = vmatprep.mubr.f32.mxu0 %v4423
        %4580 = vmatmul.mubr.f32.gmra.mrb[0].mxu0 %v4420
        %v4581 = vpop.f32.mrb[0].mxu0
        %v4582 = vadd.f32 0.0, %v4581
        %v4583 = vpop.f32.mrb[0].mxu0
        %v4584 = vadd.f32 0.0, %v4583
        %4585 = vmatprep.mubr.f32.mxu0 %v4429
        %4586 = vmatmul.mubr.f32.gmra.mrb[0].mxu0 %v4426
        %v4587 = vpop.f32.mrb[0].mxu0
        %v4588 = vadd.f32 0.0, %v4587
        %v4589 = vpop.f32.mrb[0].mxu0
        %v4590 = vadd.f32 0.0, %v4589
        %4591 = vmatprep.mubr.f32.mxu0 %v4435
        %4592 = vmatmul.mubr.f32.gmra.mrb[0].mxu0 %v4432
        %v4593 = vpop.f32.mrb[0].mxu0
        %v4594 = vadd.f32 0.0, %v4593
        %v4595 = vpop.f32.mrb[0].mxu0
        %v4596 = vadd.f32 0.0, %v4595
        %4597 = vdwg.mxu0
        %v4598 = vadd.f32 %v4372, %v4576
        %v4599 = vadd.f32 %v4373, %v4578
        %v4600 = vadd.f32 %v4374, %v4582
        %v4601 = vadd.f32 %v4375, %v4584
        %v4602 = vadd.f32 %v4376, %v4588
        %v4603 = vadd.f32 %v4377, %v4590
        %v4604 = vadd.f32 %v4378, %v4594
        %v4605 = vadd.f32 %v4379, %v4596
        %v4606 = vld [vmem:[%s2275] sm:$0xff]
        %v4607 = vld [vmem:[%s2275 + $0x8] sm:$0xff]
        %v4608 = vld [vmem:[%s2275 + $0x20] sm:$0xff]
        %v4609 = vld [vmem:[%s2275 + $0x28] sm:$0xff]
        %v4610 = vld [vmem:[%s2275 + $0x40] sm:$0xff]
        %v4611 = vld [vmem:[%s2275 + $0x48] sm:$0xff]
        %v4612 = vld [vmem:[%s2275 + $0x60] sm:$0xff]
        %v4613 = vld [vmem:[%s2275 + $0x68] sm:$0xff]
        %s4614 = scalar_lea.vmem [#allocation17], 3072
        %v4615 = vld [vmem:[%s4614] sm:$0xff]
        %v4616 = vld [vmem:[%s4614 + $0x8] sm:$0xff]
        %v4617 = vld [vmem:[%s4614 + $0x10] sm:$0xff]
        %v4618 = vld [vmem:[%s4614 + $0x18] sm:$0xff]
        %v4619 = vld [vmem:[%s4614 + $0x20] sm:$0xff]
        %v4620 = vld [vmem:[%s4614 + $0x28] sm:$0xff]
        %v4621 = vld [vmem:[%s4614 + $0x30] sm:$0xff]
        %v4622 = vld [vmem:[%s4614 + $0x38] sm:$0xff]
        %v4623 = vld [vmem:[%s4614 + $0x40] sm:$0xff]
        %v4624 = vld [vmem:[%s4614 + $0x48] sm:$0xff]
        %v4625 = vld [vmem:[%s4614 + $0x50] sm:$0xff]
        %v4626 = vld [vmem:[%s4614 + $0x58] sm:$0xff]
        %v4627 = vld [vmem:[%s4614 + $0x60] sm:$0xff]
        %v4628 = vld [vmem:[%s4614 + $0x68] sm:$0xff]
        %v4629 = vld [vmem:[%s4614 + $0x70] sm:$0xff]
        %v4630 = vld [vmem:[%s4614 + $0x78] sm:$0xff]
        %v4631 = vld [vmem:[%s4614 + $0x80] sm:$0xff]
        %v4632 = vld [vmem:[%s4614 + $0x88] sm:$0xff]
        %v4633 = vld [vmem:[%s4614 + $0x90] sm:$0xff]
        %v4634 = vld [vmem:[%s4614 + $0x98] sm:$0xff]
        %v4635 = vld [vmem:[%s4614 + $0xa0] sm:$0xff]
        %v4636 = vld [vmem:[%s4614 + $0xa8] sm:$0xff]
        %v4637 = vld [vmem:[%s4614 + $0xb0] sm:$0xff]
        %v4638 = vld [vmem:[%s4614 + $0xb8] sm:$0xff]
        %v4639 = vld [vmem:[%s4614 + $0xc0] sm:$0xff]
        %v4640 = vld [vmem:[%s4614 + $0xc8] sm:$0xff]
        %v4641 = vld [vmem:[%s4614 + $0xd0] sm:$0xff]
        %v4642 = vld [vmem:[%s4614 + $0xd8] sm:$0xff]
        %v4643 = vld [vmem:[%s4614 + $0xe0] sm:$0xff]
        %v4644 = vld [vmem:[%s4614 + $0xe8] sm:$0xff]
        %v4645 = vld [vmem:[%s4614 + $0xf0] sm:$0xff]
        %v4646 = vld [vmem:[%s4614 + $0xf8] sm:$0xff]
        %v4647 = vld [vmem:[%s4614 + $0x100] sm:$0xff]
        %v4648 = vld [vmem:[%s4614 + $0x108] sm:$0xff]
        %v4649 = vld [vmem:[%s4614 + $0x110] sm:$0xff]
        %v4650 = vld [vmem:[%s4614 + $0x118] sm:$0xff]
        %v4651 = vld [vmem:[%s4614 + $0x120] sm:$0xff]
        %v4652 = vld [vmem:[%s4614 + $0x128] sm:$0xff]
        %v4653 = vld [vmem:[%s4614 + $0x130] sm:$0xff]
        %v4654 = vld [vmem:[%s4614 + $0x138] sm:$0xff]
        %v4655 = vld [vmem:[%s4614 + $0x140] sm:$0xff]
        %v4656 = vld [vmem:[%s4614 + $0x148] sm:$0xff]
        %v4657 = vld [vmem:[%s4614 + $0x150] sm:$0xff]
        %v4658 = vld [vmem:[%s4614 + $0x158] sm:$0xff]
        %v4659 = vld [vmem:[%s4614 + $0x160] sm:$0xff]
        %v4660 = vld [vmem:[%s4614 + $0x168] sm:$0xff]
        %v4661 = vld [vmem:[%s4614 + $0x170] sm:$0xff]
        %v4662 = vld [vmem:[%s4614 + $0x178] sm:$0xff]
        %v4663 = vld [vmem:[%s4614 + $0x180] sm:$0xff]
        %v4664 = vld [vmem:[%s4614 + $0x188] sm:$0xff]
        %v4665 = vld [vmem:[%s4614 + $0x190] sm:$0xff]
        %v4666 = vld [vmem:[%s4614 + $0x198] sm:$0xff]
        %v4667 = vld [vmem:[%s4614 + $0x1a0] sm:$0xff]
        %v4668 = vld [vmem:[%s4614 + $0x1a8] sm:$0xff]
        %v4669 = vld [vmem:[%s4614 + $0x1b0] sm:$0xff]
        %v4670 = vld [vmem:[%s4614 + $0x1b8] sm:$0xff]
        %v4671 = vld [vmem:[%s4614 + $0x1c0] sm:$0xff]
        %v4672 = vld [vmem:[%s4614 + $0x1c8] sm:$0xff]
        %v4673 = vld [vmem:[%s4614 + $0x1d0] sm:$0xff]
        %v4674 = vld [vmem:[%s4614 + $0x1d8] sm:$0xff]
        %v4675 = vld [vmem:[%s4614 + $0x1e0] sm:$0xff]
        %v4676 = vld [vmem:[%s4614 + $0x1e8] sm:$0xff]
        %v4677 = vld [vmem:[%s4614 + $0x1f0] sm:$0xff]
        %v4678 = vld [vmem:[%s4614 + $0x1f8] sm:$0xff]
        %4679 = vmatprep.subr.mxu0 %v4616
        %4680 = vmatpush1.msra.mxu0 %v4615
        %4681 = vmatprep.subr.mxu0 %v4618
        %4682 = vmatpush1.msra.mxu0 %v4617
        %4683 = vmatprep.subr.mxu0 %v4620
        %4684 = vmatpush1.msra.mxu0 %v4619
        %4685 = vmatprep.subr.mxu0 %v4622
        %4686 = vmatpush1.msra.mxu0 %v4621
        %4687 = vmatprep.subr.mxu0 %v4624
        %4688 = vmatpush1.msra.mxu0 %v4623
        %4689 = vmatprep.subr.mxu0 %v4626
        %4690 = vmatpush1.msra.mxu0 %v4625
        %4691 = vmatprep.subr.mxu0 %v4628
        %4692 = vmatpush1.msra.mxu0 %v4627
        %4693 = vmatprep.subr.mxu0 %v4630
        %4694 = vmatpush1.msra.mxu0 %v4629
        %4695 = vmatprep.subr.mxu0 %v4632
        %4696 = vmatpush1.msra.mxu0 %v4631
        %4697 = vmatprep.subr.mxu0 %v4634
        %4698 = vmatpush1.msra.mxu0 %v4633
        %4699 = vmatprep.subr.mxu0 %v4636
        %4700 = vmatpush1.msra.mxu0 %v4635
        %4701 = vmatprep.subr.mxu0 %v4638
        %4702 = vmatpush1.msra.mxu0 %v4637
        %4703 = vmatprep.subr.mxu0 %v4640
        %4704 = vmatpush1.msra.mxu0 %v4639
        %4705 = vmatprep.subr.mxu0 %v4642
        %4706 = vmatpush1.msra.mxu0 %v4641
        %4707 = vmatprep.subr.mxu0 %v4644
        %4708 = vmatpush1.msra.mxu0 %v4643
        %4709 = vmatprep.subr.mxu0 %v4646
        %4710 = vmatpush1.msra.mxu0 %v4645
        %4711 = vmatprep.subr.mxu0 %v4648
        %4712 = vmatpush1.msra.mxu0 %v4647
        %4713 = vmatprep.subr.mxu0 %v4650
        %4714 = vmatpush1.msra.mxu0 %v4649
        %4715 = vmatprep.subr.mxu0 %v4652
        %4716 = vmatpush1.msra.mxu0 %v4651
        %4717 = vmatprep.subr.mxu0 %v4654
        %4718 = vmatpush1.msra.mxu0 %v4653
        %4719 = vmatprep.subr.mxu0 %v4656
        %4720 = vmatpush1.msra.mxu0 %v4655
        %4721 = vmatprep.subr.mxu0 %v4658
        %4722 = vmatpush1.msra.mxu0 %v4657
        %4723 = vmatprep.subr.mxu0 %v4660
        %4724 = vmatpush1.msra.mxu0 %v4659
        %4725 = vmatprep.subr.mxu0 %v4662
        %4726 = vmatpush1.msra.mxu0 %v4661
        %4727 = vmatprep.subr.mxu0 %v4664
        %4728 = vmatpush1.msra.mxu0 %v4663
        %4729 = vmatprep.subr.mxu0 %v4666
        %4730 = vmatpush1.msra.mxu0 %v4665
        %4731 = vmatprep.subr.mxu0 %v4668
        %4732 = vmatpush1.msra.mxu0 %v4667
        %4733 = vmatprep.subr.mxu0 %v4670
        %4734 = vmatpush1.msra.mxu0 %v4669
        %4735 = vmatprep.subr.mxu0 %v4672
        %4736 = vmatpush1.msra.mxu0 %v4671
        %4737 = vmatprep.subr.mxu0 %v4674
        %4738 = vmatpush1.msra.mxu0 %v4673
        %4739 = vmatprep.subr.mxu0 %v4676
        %4740 = vmatpush1.msra.mxu0 %v4675
        %4741 = vmatprep.subr.mxu0 %v4678
        %4742 = vmatpush1.msra.mxu0 %v4677
        %4743 = vmatprep.mubr.f32.mxu0 %v4607
        %4744 = vmatmul.mubr.f32.gmra.mrb[0].mxu0 %v4606
        %v4745 = vpop.f32.mrb[0].mxu0
        %v4746 = vadd.f32 0.0, %v4745
        %v4747 = vpop.f32.mrb[0].mxu0
        %v4748 = vadd.f32 0.0, %v4747
        %4749 = vmatprep.mubr.f32.mxu0 %v4609
        %4750 = vmatmul.mubr.f32.gmra.mrb[0].mxu0 %v4608
        %v4751 = vpop.f32.mrb[0].mxu0
        %v4752 = vadd.f32 0.0, %v4751
        %v4753 = vpop.f32.mrb[0].mxu0
        %v4754 = vadd.f32 0.0, %v4753
        %4755 = vmatprep.mubr.f32.mxu0 %v4611
        %4756 = vmatmul.mubr.f32.gmra.mrb[0].mxu0 %v4610
        %v4757 = vpop.f32.mrb[0].mxu0
        %v4758 = vadd.f32 0.0, %v4757
        %v4759 = vpop.f32.mrb[0].mxu0
        %v4760 = vadd.f32 0.0, %v4759
        %4761 = vmatprep.mubr.f32.mxu0 %v4613
        %4762 = vmatmul.mubr.f32.gmra.mrb[0].mxu0 %v4612
        %v4763 = vpop.f32.mrb[0].mxu0
        %v4764 = vadd.f32 0.0, %v4763
        %v4765 = vpop.f32.mrb[0].mxu0
        %v4766 = vadd.f32 0.0, %v4765
        %4767 = vdwg.mxu0
        %v4768 = vadd.f32 %v4598, %v4746
        %v4769 = vadd.f32 %v4599, %v4748
        %v4770 = vadd.f32 %v4600, %v4752
        %v4771 = vadd.f32 %v4601, %v4754
        %v4772 = vadd.f32 %v4602, %v4758
        %v4773 = vadd.f32 %v4603, %v4760
        %v4774 = vadd.f32 %v4604, %v4764
        %v4775 = vadd.f32 %v4605, %v4766
        %v4776 = vld [vmem:[%s2275] sm:$0xfe]
        %v4777 = vld [vmem:[%s2275 + $0x8] sm:$0xfe]
        %v4778 = vld [vmem:[%s2275 + $0x10] sm:$0x1]
        %v4779 = vld [vmem:[%s2275 + $0x18] sm:$0x1]
        %v4780 = vld [vmem:[%s2275 + $0x20] sm:$0xfe]
        %v4781 = vld [vmem:[%s2275 + $0x28] sm:$0xfe]
        %v4782 = vld [vmem:[%s2275 + $0x30] sm:$0x1]
        %v4783 = vld [vmem:[%s2275 + $0x38] sm:$0x1]
        %v4784 = vld [vmem:[%s2275 + $0x40] sm:$0xfe]
        %v4785 = vld [vmem:[%s2275 + $0x48] sm:$0xfe]
        %v4786 = vld [vmem:[%s2275 + $0x50] sm:$0x1]
        %v4787 = vld [vmem:[%s2275 + $0x58] sm:$0x1]
        %v4788 = vld [vmem:[%s2275 + $0x60] sm:$0xfe]
        %v4789 = vld [vmem:[%s2275 + $0x68] sm:$0xfe]
        %v4790 = vld [vmem:[%s2275 + $0x70] sm:$0x1]
        %v4791 = vld [vmem:[%s2275 + $0x78] sm:$0x1]
        %v4808 = vrot.slane %v4776, 1
        %v4809 = vrot.slane %v4778, 1
        %v4810 = vsel %vm1150, %v4808, %v4809
        %v4811 = vrot.slane %v4777, 1
        %v4812 = vrot.slane %v4779, 1
        %v4813 = vsel %vm1150, %v4811, %v4812
        %v4814 = vrot.slane %v4780, 1
        %v4815 = vrot.slane %v4782, 1
        %v4816 = vsel %vm1150, %v4814, %v4815
        %v4817 = vrot.slane %v4781, 1
        %v4818 = vrot.slane %v4783, 1
        %v4819 = vsel %vm1150, %v4817, %v4818
        %v4820 = vrot.slane %v4784, 1
        %v4821 = vrot.slane %v4786, 1
        %v4822 = vsel %vm1150, %v4820, %v4821
        %v4823 = vrot.slane %v4785, 1
        %v4824 = vrot.slane %v4787, 1
        %v4825 = vsel %vm1150, %v4823, %v4824
        %v4826 = vrot.slane %v4788, 1
        %v4827 = vrot.slane %v4790, 1
        %v4828 = vsel %vm1150, %v4826, %v4827
        %v4829 = vrot.slane %v4789, 1
        %v4830 = vrot.slane %v4791, 1
        %v4831 = vsel %vm1150, %v4829, %v4830
        %s4840 = scalar_lea.vmem [#allocation17], 3584
        %v4841 = vld [vmem:[%s4840] sm:$0xff]
        %v4842 = vld [vmem:[%s4840 + $0x8] sm:$0xff]
        %v4843 = vld [vmem:[%s4840 + $0x10] sm:$0xff]
        %v4844 = vld [vmem:[%s4840 + $0x18] sm:$0xff]
        %v4845 = vld [vmem:[%s4840 + $0x20] sm:$0xff]
        %v4846 = vld [vmem:[%s4840 + $0x28] sm:$0xff]
        %v4847 = vld [vmem:[%s4840 + $0x30] sm:$0xff]
        %v4848 = vld [vmem:[%s4840 + $0x38] sm:$0xff]
        %v4849 = vld [vmem:[%s4840 + $0x40] sm:$0xff]
        %v4850 = vld [vmem:[%s4840 + $0x48] sm:$0xff]
        %v4851 = vld [vmem:[%s4840 + $0x50] sm:$0xff]
        %v4852 = vld [vmem:[%s4840 + $0x58] sm:$0xff]
        %v4853 = vld [vmem:[%s4840 + $0x60] sm:$0xff]
        %v4854 = vld [vmem:[%s4840 + $0x68] sm:$0xff]
        %v4855 = vld [vmem:[%s4840 + $0x70] sm:$0xff]
        %v4856 = vld [vmem:[%s4840 + $0x78] sm:$0xff]
        %v4857 = vld [vmem:[%s4840 + $0x80] sm:$0xff]
        %v4858 = vld [vmem:[%s4840 + $0x88] sm:$0xff]
        %v4859 = vld [vmem:[%s4840 + $0x90] sm:$0xff]
        %v4860 = vld [vmem:[%s4840 + $0x98] sm:$0xff]
        %v4861 = vld [vmem:[%s4840 + $0xa0] sm:$0xff]
        %v4862 = vld [vmem:[%s4840 + $0xa8] sm:$0xff]
        %v4863 = vld [vmem:[%s4840 + $0xb0] sm:$0xff]
        %v4864 = vld [vmem:[%s4840 + $0xb8] sm:$0xff]
        %v4865 = vld [vmem:[%s4840 + $0xc0] sm:$0xff]
        %v4866 = vld [vmem:[%s4840 + $0xc8] sm:$0xff]
        %v4867 = vld [vmem:[%s4840 + $0xd0] sm:$0xff]
        %v4868 = vld [vmem:[%s4840 + $0xd8] sm:$0xff]
        %v4869 = vld [vmem:[%s4840 + $0xe0] sm:$0xff]
        %v4870 = vld [vmem:[%s4840 + $0xe8] sm:$0xff]
        %v4871 = vld [vmem:[%s4840 + $0xf0] sm:$0xff]
        %v4872 = vld [vmem:[%s4840 + $0xf8] sm:$0xff]
        %v4873 = vld [vmem:[%s4840 + $0x100] sm:$0xff]
        %v4874 = vld [vmem:[%s4840 + $0x108] sm:$0xff]
        %v4875 = vld [vmem:[%s4840 + $0x110] sm:$0xff]
        %v4876 = vld [vmem:[%s4840 + $0x118] sm:$0xff]
        %v4877 = vld [vmem:[%s4840 + $0x120] sm:$0xff]
        %v4878 = vld [vmem:[%s4840 + $0x128] sm:$0xff]
        %v4879 = vld [vmem:[%s4840 + $0x130] sm:$0xff]
        %v4880 = vld [vmem:[%s4840 + $0x138] sm:$0xff]
        %v4881 = vld [vmem:[%s4840 + $0x140] sm:$0xff]
        %v4882 = vld [vmem:[%s4840 + $0x148] sm:$0xff]
        %v4883 = vld [vmem:[%s4840 + $0x150] sm:$0xff]
        %v4884 = vld [vmem:[%s4840 + $0x158] sm:$0xff]
        %v4885 = vld [vmem:[%s4840 + $0x160] sm:$0xff]
        %v4886 = vld [vmem:[%s4840 + $0x168] sm:$0xff]
        %v4887 = vld [vmem:[%s4840 + $0x170] sm:$0xff]
        %v4888 = vld [vmem:[%s4840 + $0x178] sm:$0xff]
        %v4889 = vld [vmem:[%s4840 + $0x180] sm:$0xff]
        %v4890 = vld [vmem:[%s4840 + $0x188] sm:$0xff]
        %v4891 = vld [vmem:[%s4840 + $0x190] sm:$0xff]
        %v4892 = vld [vmem:[%s4840 + $0x198] sm:$0xff]
        %v4893 = vld [vmem:[%s4840 + $0x1a0] sm:$0xff]
        %v4894 = vld [vmem:[%s4840 + $0x1a8] sm:$0xff]
        %v4895 = vld [vmem:[%s4840 + $0x1b0] sm:$0xff]
        %v4896 = vld [vmem:[%s4840 + $0x1b8] sm:$0xff]
        %v4897 = vld [vmem:[%s4840 + $0x1c0] sm:$0xff]
        %v4898 = vld [vmem:[%s4840 + $0x1c8] sm:$0xff]
        %v4899 = vld [vmem:[%s4840 + $0x1d0] sm:$0xff]
        %v4900 = vld [vmem:[%s4840 + $0x1d8] sm:$0xff]
        %v4901 = vld [vmem:[%s4840 + $0x1e0] sm:$0xff]
        %v4902 = vld [vmem:[%s4840 + $0x1e8] sm:$0xff]
        %v4903 = vld [vmem:[%s4840 + $0x1f0] sm:$0xff]
        %v4904 = vld [vmem:[%s4840 + $0x1f8] sm:$0xff]
        %4905 = vmatprep.subr.mxu0 %v4842
        %4906 = vmatpush1.msra.mxu0 %v4841
        %4907 = vmatprep.subr.mxu0 %v4844
        %4908 = vmatpush1.msra.mxu0 %v4843
        %4909 = vmatprep.subr.mxu0 %v4846
        %4910 = vmatpush1.msra.mxu0 %v4845
        %4911 = vmatprep.subr.mxu0 %v4848
        %4912 = vmatpush1.msra.mxu0 %v4847
        %4913 = vmatprep.subr.mxu0 %v4850
        %4914 = vmatpush1.msra.mxu0 %v4849
        %4915 = vmatprep.subr.mxu0 %v4852
        %4916 = vmatpush1.msra.mxu0 %v4851
        %4917 = vmatprep.subr.mxu0 %v4854
        %4918 = vmatpush1.msra.mxu0 %v4853
        %4919 = vmatprep.subr.mxu0 %v4856
        %4920 = vmatpush1.msra.mxu0 %v4855
        %4921 = vmatprep.subr.mxu0 %v4858
        %4922 = vmatpush1.msra.mxu0 %v4857
        %4923 = vmatprep.subr.mxu0 %v4860
        %4924 = vmatpush1.msra.mxu0 %v4859
        %4925 = vmatprep.subr.mxu0 %v4862
        %4926 = vmatpush1.msra.mxu0 %v4861
        %4927 = vmatprep.subr.mxu0 %v4864
        %4928 = vmatpush1.msra.mxu0 %v4863
        %4929 = vmatprep.subr.mxu0 %v4866
        %4930 = vmatpush1.msra.mxu0 %v4865
        %4931 = vmatprep.subr.mxu0 %v4868
        %4932 = vmatpush1.msra.mxu0 %v4867
        %4933 = vmatprep.subr.mxu0 %v4870
        %4934 = vmatpush1.msra.mxu0 %v4869
        %4935 = vmatprep.subr.mxu0 %v4872
        %4936 = vmatpush1.msra.mxu0 %v4871
        %4937 = vmatprep.subr.mxu0 %v4874
        %4938 = vmatpush1.msra.mxu0 %v4873
        %4939 = vmatprep.subr.mxu0 %v4876
        %4940 = vmatpush1.msra.mxu0 %v4875
        %4941 = vmatprep.subr.mxu0 %v4878
        %4942 = vmatpush1.msra.mxu0 %v4877
        %4943 = vmatprep.subr.mxu0 %v4880
        %4944 = vmatpush1.msra.mxu0 %v4879
        %4945 = vmatprep.subr.mxu0 %v4882
        %4946 = vmatpush1.msra.mxu0 %v4881
        %4947 = vmatprep.subr.mxu0 %v4884
        %4948 = vmatpush1.msra.mxu0 %v4883
        %4949 = vmatprep.subr.mxu0 %v4886
        %4950 = vmatpush1.msra.mxu0 %v4885
        %4951 = vmatprep.subr.mxu0 %v4888
        %4952 = vmatpush1.msra.mxu0 %v4887
        %4953 = vmatprep.subr.mxu0 %v4890
        %4954 = vmatpush1.msra.mxu0 %v4889
        %4955 = vmatprep.subr.mxu0 %v4892
        %4956 = vmatpush1.msra.mxu0 %v4891
        %4957 = vmatprep.subr.mxu0 %v4894
        %4958 = vmatpush1.msra.mxu0 %v4893
        %4959 = vmatprep.subr.mxu0 %v4896
        %4960 = vmatpush1.msra.mxu0 %v4895
        %4961 = vmatprep.subr.mxu0 %v4898
        %4962 = vmatpush1.msra.mxu0 %v4897
        %4963 = vmatprep.subr.mxu0 %v4900
        %4964 = vmatpush1.msra.mxu0 %v4899
        %4965 = vmatprep.subr.mxu0 %v4902
        %4966 = vmatpush1.msra.mxu0 %v4901
        %4967 = vmatprep.subr.mxu0 %v4904
        %4968 = vmatpush1.msra.mxu0 %v4903
        %4969 = vmatprep.mubr.f32.mxu0 %v4813
        %4970 = vmatmul.mubr.f32.gmra.mrb[0].mxu0 %v4810
        %v4971 = vpop.f32.mrb[0].mxu0
        %v4972 = vadd.f32 0.0, %v4971
        %v4973 = vpop.f32.mrb[0].mxu0
        %v4974 = vadd.f32 0.0, %v4973
        %4975 = vmatprep.mubr.f32.mxu0 %v4819
        %4976 = vmatmul.mubr.f32.gmra.mrb[0].mxu0 %v4816
        %v4977 = vpop.f32.mrb[0].mxu0
        %v4978 = vadd.f32 0.0, %v4977
        %v4979 = vpop.f32.mrb[0].mxu0
        %v4980 = vadd.f32 0.0, %v4979
        %4981 = vmatprep.mubr.f32.mxu0 %v4825
        %4982 = vmatmul.mubr.f32.gmra.mrb[0].mxu0 %v4822
        %v4983 = vpop.f32.mrb[0].mxu0
        %v4984 = vadd.f32 0.0, %v4983
        %v4985 = vpop.f32.mrb[0].mxu0
        %v4986 = vadd.f32 0.0, %v4985
        %4987 = vmatprep.mubr.f32.mxu0 %v4831
        %4988 = vmatmul.mubr.f32.gmra.mrb[0].mxu0 %v4828
        %v4989 = vpop.f32.mrb[0].mxu0
        %v4990 = vadd.f32 0.0, %v4989
        %v4991 = vpop.f32.mrb[0].mxu0
        %v4992 = vadd.f32 0.0, %v4991
        %4993 = vdwg.mxu0
        %v4994 = vadd.f32 %v4768, %v4972
        %v4995 = vadd.f32 %v4769, %v4974
        %v4996 = vadd.f32 %v4770, %v4978
        %v4997 = vadd.f32 %v4771, %v4980
        %v4998 = vadd.f32 %v4772, %v4984
        %v4999 = vadd.f32 %v4773, %v4986
        %v5000 = vadd.f32 %v4774, %v4990
        %v5001 = vadd.f32 %v4775, %v4992
        %v5002 = vld [vmem:[%s2275] sm:$0xfc]
        %v5003 = vld [vmem:[%s2275 + $0x8] sm:$0xfc]
        %v5004 = vld [vmem:[%s2275 + $0x10] sm:$0x3]
        %v5005 = vld [vmem:[%s2275 + $0x18] sm:$0x3]
        %v5006 = vld [vmem:[%s2275 + $0x20] sm:$0xfc]
        %v5007 = vld [vmem:[%s2275 + $0x28] sm:$0xfc]
        %v5008 = vld [vmem:[%s2275 + $0x30] sm:$0x3]
        %v5009 = vld [vmem:[%s2275 + $0x38] sm:$0x3]
        %v5010 = vld [vmem:[%s2275 + $0x40] sm:$0xfc]
        %v5011 = vld [vmem:[%s2275 + $0x48] sm:$0xfc]
        %v5012 = vld [vmem:[%s2275 + $0x50] sm:$0x3]
        %v5013 = vld [vmem:[%s2275 + $0x58] sm:$0x3]
        %v5014 = vld [vmem:[%s2275 + $0x60] sm:$0xfc]
        %v5015 = vld [vmem:[%s2275 + $0x68] sm:$0xfc]
        %v5016 = vld [vmem:[%s2275 + $0x70] sm:$0x3]
        %v5017 = vld [vmem:[%s2275 + $0x78] sm:$0x3]
        %v5034 = vrot.slane %v5002, 2
        %v5035 = vrot.slane %v5004, 2
        %v5036 = vsel %vm1458, %v5034, %v5035
        %v5037 = vrot.slane %v5003, 2
        %v5038 = vrot.slane %v5005, 2
        %v5039 = vsel %vm1458, %v5037, %v5038
        %v5040 = vrot.slane %v5006, 2
        %v5041 = vrot.slane %v5008, 2
        %v5042 = vsel %vm1458, %v5040, %v5041
        %v5043 = vrot.slane %v5007, 2
        %v5044 = vrot.slane %v5009, 2
        %v5045 = vsel %vm1458, %v5043, %v5044
        %v5046 = vrot.slane %v5010, 2
        %v5047 = vrot.slane %v5012, 2
        %v5048 = vsel %vm1458, %v5046, %v5047
        %v5049 = vrot.slane %v5011, 2
        %v5050 = vrot.slane %v5013, 2
        %v5051 = vsel %vm1458, %v5049, %v5050
        %v5052 = vrot.slane %v5014, 2
        %v5053 = vrot.slane %v5016, 2
        %v5054 = vsel %vm1458, %v5052, %v5053
        %v5055 = vrot.slane %v5015, 2
        %v5056 = vrot.slane %v5017, 2
        %v5057 = vsel %vm1458, %v5055, %v5056
        %s5066 = scalar_lea.vmem [#allocation17], 4096
        %v5067 = vld [vmem:[%s5066] sm:$0xff]
        %v5068 = vld [vmem:[%s5066 + $0x8] sm:$0xff]
        %v5069 = vld [vmem:[%s5066 + $0x10] sm:$0xff]
        %v5070 = vld [vmem:[%s5066 + $0x18] sm:$0xff]
        %v5071 = vld [vmem:[%s5066 + $0x20] sm:$0xff]
        %v5072 = vld [vmem:[%s5066 + $0x28] sm:$0xff]
        %v5073 = vld [vmem:[%s5066 + $0x30] sm:$0xff]
        %v5074 = vld [vmem:[%s5066 + $0x38] sm:$0xff]
        %v5075 = vld [vmem:[%s5066 + $0x40] sm:$0xff]
        %v5076 = vld [vmem:[%s5066 + $0x48] sm:$0xff]
        %v5077 = vld [vmem:[%s5066 + $0x50] sm:$0xff]
        %v5078 = vld [vmem:[%s5066 + $0x58] sm:$0xff]
        %v5079 = vld [vmem:[%s5066 + $0x60] sm:$0xff]
        %v5080 = vld [vmem:[%s5066 + $0x68] sm:$0xff]
        %v5081 = vld [vmem:[%s5066 + $0x70] sm:$0xff]
        %v5082 = vld [vmem:[%s5066 + $0x78] sm:$0xff]
        %v5083 = vld [vmem:[%s5066 + $0x80] sm:$0xff]
        %v5084 = vld [vmem:[%s5066 + $0x88] sm:$0xff]
        %v5085 = vld [vmem:[%s5066 + $0x90] sm:$0xff]
        %v5086 = vld [vmem:[%s5066 + $0x98] sm:$0xff]
        %v5087 = vld [vmem:[%s5066 + $0xa0] sm:$0xff]
        %v5088 = vld [vmem:[%s5066 + $0xa8] sm:$0xff]
        %v5089 = vld [vmem:[%s5066 + $0xb0] sm:$0xff]
        %v5090 = vld [vmem:[%s5066 + $0xb8] sm:$0xff]
        %v5091 = vld [vmem:[%s5066 + $0xc0] sm:$0xff]
        %v5092 = vld [vmem:[%s5066 + $0xc8] sm:$0xff]
        %v5093 = vld [vmem:[%s5066 + $0xd0] sm:$0xff]
        %v5094 = vld [vmem:[%s5066 + $0xd8] sm:$0xff]
        %v5095 = vld [vmem:[%s5066 + $0xe0] sm:$0xff]
        %v5096 = vld [vmem:[%s5066 + $0xe8] sm:$0xff]
        %v5097 = vld [vmem:[%s5066 + $0xf0] sm:$0xff]
        %v5098 = vld [vmem:[%s5066 + $0xf8] sm:$0xff]
        %v5099 = vld [vmem:[%s5066 + $0x100] sm:$0xff]
        %v5100 = vld [vmem:[%s5066 + $0x108] sm:$0xff]
        %v5101 = vld [vmem:[%s5066 + $0x110] sm:$0xff]
        %v5102 = vld [vmem:[%s5066 + $0x118] sm:$0xff]
        %v5103 = vld [vmem:[%s5066 + $0x120] sm:$0xff]
        %v5104 = vld [vmem:[%s5066 + $0x128] sm:$0xff]
        %v5105 = vld [vmem:[%s5066 + $0x130] sm:$0xff]
        %v5106 = vld [vmem:[%s5066 + $0x138] sm:$0xff]
        %v5107 = vld [vmem:[%s5066 + $0x140] sm:$0xff]
        %v5108 = vld [vmem:[%s5066 + $0x148] sm:$0xff]
        %v5109 = vld [vmem:[%s5066 + $0x150] sm:$0xff]
        %v5110 = vld [vmem:[%s5066 + $0x158] sm:$0xff]
        %v5111 = vld [vmem:[%s5066 + $0x160] sm:$0xff]
        %v5112 = vld [vmem:[%s5066 + $0x168] sm:$0xff]
        %v5113 = vld [vmem:[%s5066 + $0x170] sm:$0xff]
        %v5114 = vld [vmem:[%s5066 + $0x178] sm:$0xff]
        %v5115 = vld [vmem:[%s5066 + $0x180] sm:$0xff]
        %v5116 = vld [vmem:[%s5066 + $0x188] sm:$0xff]
        %v5117 = vld [vmem:[%s5066 + $0x190] sm:$0xff]
        %v5118 = vld [vmem:[%s5066 + $0x198] sm:$0xff]
        %v5119 = vld [vmem:[%s5066 + $0x1a0] sm:$0xff]
        %v5120 = vld [vmem:[%s5066 + $0x1a8] sm:$0xff]
        %v5121 = vld [vmem:[%s5066 + $0x1b0] sm:$0xff]
        %v5122 = vld [vmem:[%s5066 + $0x1b8] sm:$0xff]
        %v5123 = vld [vmem:[%s5066 + $0x1c0] sm:$0xff]
        %v5124 = vld [vmem:[%s5066 + $0x1c8] sm:$0xff]
        %v5125 = vld [vmem:[%s5066 + $0x1d0] sm:$0xff]
        %v5126 = vld [vmem:[%s5066 + $0x1d8] sm:$0xff]
        %v5127 = vld [vmem:[%s5066 + $0x1e0] sm:$0xff]
        %v5128 = vld [vmem:[%s5066 + $0x1e8] sm:$0xff]
        %v5129 = vld [vmem:[%s5066 + $0x1f0] sm:$0xff]
        %v5130 = vld [vmem:[%s5066 + $0x1f8] sm:$0xff]
        %5131 = vmatprep.subr.mxu0 %v5068
        %5132 = vmatpush1.msra.mxu0 %v5067
        %5133 = vmatprep.subr.mxu0 %v5070
        %5134 = vmatpush1.msra.mxu0 %v5069
        %5135 = vmatprep.subr.mxu0 %v5072
        %5136 = vmatpush1.msra.mxu0 %v5071
        %5137 = vmatprep.subr.mxu0 %v5074
        %5138 = vmatpush1.msra.mxu0 %v5073
        %5139 = vmatprep.subr.mxu0 %v5076
        %5140 = vmatpush1.msra.mxu0 %v5075
        %5141 = vmatprep.subr.mxu0 %v5078
        %5142 = vmatpush1.msra.mxu0 %v5077
        %5143 = vmatprep.subr.mxu0 %v5080
        %5144 = vmatpush1.msra.mxu0 %v5079
        %5145 = vmatprep.subr.mxu0 %v5082
        %5146 = vmatpush1.msra.mxu0 %v5081
        %5147 = vmatprep.subr.mxu0 %v5084
        %5148 = vmatpush1.msra.mxu0 %v5083
        %5149 = vmatprep.subr.mxu0 %v5086
        %5150 = vmatpush1.msra.mxu0 %v5085
        %5151 = vmatprep.subr.mxu0 %v5088
        %5152 = vmatpush1.msra.mxu0 %v5087
        %5153 = vmatprep.subr.mxu0 %v5090
        %5154 = vmatpush1.msra.mxu0 %v5089
        %5155 = vmatprep.subr.mxu0 %v5092
        %5156 = vmatpush1.msra.mxu0 %v5091
        %5157 = vmatprep.subr.mxu0 %v5094
        %5158 = vmatpush1.msra.mxu0 %v5093
        %5159 = vmatprep.subr.mxu0 %v5096
        %5160 = vmatpush1.msra.mxu0 %v5095
        %5161 = vmatprep.subr.mxu0 %v5098
        %5162 = vmatpush1.msra.mxu0 %v5097
        %5163 = vmatprep.subr.mxu0 %v5100
        %5164 = vmatpush1.msra.mxu0 %v5099
        %5165 = vmatprep.subr.mxu0 %v5102
        %5166 = vmatpush1.msra.mxu0 %v5101
        %5167 = vmatprep.subr.mxu0 %v5104
        %5168 = vmatpush1.msra.mxu0 %v5103
        %5169 = vmatprep.subr.mxu0 %v5106
        %5170 = vmatpush1.msra.mxu0 %v5105
        %5171 = vmatprep.subr.mxu0 %v5108
        %5172 = vmatpush1.msra.mxu0 %v5107
        %5173 = vmatprep.subr.mxu0 %v5110
        %5174 = vmatpush1.msra.mxu0 %v5109
        %5175 = vmatprep.subr.mxu0 %v5112
        %5176 = vmatpush1.msra.mxu0 %v5111
        %5177 = vmatprep.subr.mxu0 %v5114
        %5178 = vmatpush1.msra.mxu0 %v5113
        %5179 = vmatprep.subr.mxu0 %v5116
        %5180 = vmatpush1.msra.mxu0 %v5115
        %5181 = vmatprep.subr.mxu0 %v5118
        %5182 = vmatpush1.msra.mxu0 %v5117
        %5183 = vmatprep.subr.mxu0 %v5120
        %5184 = vmatpush1.msra.mxu0 %v5119
        %5185 = vmatprep.subr.mxu0 %v5122
        %5186 = vmatpush1.msra.mxu0 %v5121
        %5187 = vmatprep.subr.mxu0 %v5124
        %5188 = vmatpush1.msra.mxu0 %v5123
        %5189 = vmatprep.subr.mxu0 %v5126
        %5190 = vmatpush1.msra.mxu0 %v5125
        %5191 = vmatprep.subr.mxu0 %v5128
        %5192 = vmatpush1.msra.mxu0 %v5127
        %5193 = vmatprep.subr.mxu0 %v5130
        %5194 = vmatpush1.msra.mxu0 %v5129
        %5195 = vmatprep.mubr.f32.mxu0 %v5039
        %5196 = vmatmul.mubr.f32.gmra.mrb[0].mxu0 %v5036
        %v5197 = vpop.f32.mrb[0].mxu0
        %v5198 = vadd.f32 0.0, %v5197
        %v5199 = vpop.f32.mrb[0].mxu0
        %v5200 = vadd.f32 0.0, %v5199
        %5201 = vmatprep.mubr.f32.mxu0 %v5045
        %5202 = vmatmul.mubr.f32.gmra.mrb[0].mxu0 %v5042
        %v5203 = vpop.f32.mrb[0].mxu0
        %v5204 = vadd.f32 0.0, %v5203
        %v5205 = vpop.f32.mrb[0].mxu0
        %v5206 = vadd.f32 0.0, %v5205
        %5207 = vmatprep.mubr.f32.mxu0 %v5051
        %5208 = vmatmul.mubr.f32.gmra.mrb[0].mxu0 %v5048
        %v5209 = vpop.f32.mrb[0].mxu0
        %v5210 = vadd.f32 0.0, %v5209
        %v5211 = vpop.f32.mrb[0].mxu0
        %v5212 = vadd.f32 0.0, %v5211
        %5213 = vmatprep.mubr.f32.mxu0 %v5057
        %5214 = vmatmul.mubr.f32.gmra.mrb[0].mxu0 %v5054
        %v5215 = vpop.f32.mrb[0].mxu0
        %v5216 = vadd.f32 0.0, %v5215
        %v5217 = vpop.f32.mrb[0].mxu0
        %v5218 = vadd.f32 0.0, %v5217
        %5219 = vdwg.mxu0
        %v5220 = vadd.f32 %v4994, %v5198
        %v5221 = vadd.f32 %v4995, %v5200
        %v5222 = vadd.f32 %v4996, %v5204
        %v5223 = vadd.f32 %v4997, %v5206
        %v5224 = vadd.f32 %v4998, %v5210
        %v5225 = vadd.f32 %v4999, %v5212
        %v5226 = vadd.f32 %v5000, %v5216
        %v5227 = vadd.f32 %v5001, %v5218
        %v5229 = vlaneseq
        %v5230 = vshrl.u32 %v5229, 7
        %v5231 = vsub.s32 0, %v5230
        %v5232 = vrot.slane %v3170, %v5231
        %v5233 = vlaneseq
        %v5234 = vshrl.u32 %v5233, 7
        %v5235 = vsub.s32 1, %v5234
        %v5236 = vrot.slane %v3170, %v5235
        %v5239 = vadd.f32 %v5220, %v5232
        %v5240 = vadd.f32 %v5221, %v5236
        %v5241 = vadd.f32 %v5222, %v5232
        %v5242 = vadd.f32 %v5223, %v5236
        %v5243 = vadd.f32 %v5224, %v5232
        %v5244 = vadd.f32 %v5225, %v5236
        %v5245 = vadd.f32 %v5226, %v5232
        %v5246 = vadd.f32 %v5227, %v5236
        %v5247 = vadd.f32 %v561, %v5239
        %v5248 = vadd.f32 %v562, %v5240
        %v5249 = vadd.f32 %v563, %v5241
        %v5250 = vadd.f32 %v564, %v5242
        %v5251 = vadd.f32 %v565, %v5243
        %v5252 = vadd.f32 %v566, %v5244
        %v5253 = vadd.f32 %v567, %v5245
        %v5254 = vadd.f32 %v568, %v5246
        %5255 = vst [vmem:[%s496] sm:$0xff] %v5247
        %5256 = vst [vmem:[%s496 + $0x8] sm:$0xff] %v5248
        %5257 = vst [vmem:[%s496 + $0x10] sm:$0xff] %v5249
        %5258 = vst [vmem:[%s496 + $0x18] sm:$0xff] %v5250
        %5259 = vst [vmem:[%s496 + $0x20] sm:$0xff] %v5251
        %5260 = vst [vmem:[%s496 + $0x28] sm:$0xff] %v5252
        %5261 = vst [vmem:[%s496 + $0x30] sm:$0xff] %v5253
        %5262 = vst [vmem:[%s496 + $0x38] sm:$0xff] %v5254
        %s5263 = sand.u32 %s255, 1
        %s5264 = scalar_lea.sflag [#allocation5], %s5263
        %s5265 = sand.u32 %s255, 1
        %s5266 = smul.addr %s5265, 64
        %s5267 = scalar_lea.vmem [#allocation20], %s5266
        // Predicated region
        $region101: #{tpu_custom_call.1} parent=59 // pred_check
          %p5268 = pneg %p265
        $region102: #{tpu_custom_call.1} parent=59 // pred_check_branch
          %5270 = sbr.rel (%p5268) target = $region104
        $region103: #{tpu_custom_call.1} parent=59 // pred_region
          %s5272 = ssub.s32 1024, 1024
          %5273 = vsyncadd %s5264, %s5272
          %s5274 = smul.addr %s32, 8
          %s5275 = smul.addr %s5274, 128
          %s5276 = scalar_lea.hbm %s10, %s5275
          %s5277 = sshll.u32 %s5267, 4
          %s5278 = int_to_ptr.vmem [resolvable:$true] %s5277
          %5283 = dma.vmem_to_hbm [thread:$0]  %s5278, 1024, %s5276, %s5264, 256, 256, 16
        $region104: #{tpu_custom_call.1} parent=59 // pred_fallthru
          _
      $region60: #{tpu_custom_call.1} parent=5 // pred_fallthru
        _
      %p5284 = scmp.le.s32.totalorder 2, %s27
      // Predicated region
      $region105: #{tpu_custom_call.1} parent=5 // pred_check
        %p5285 = pneg %p5284
      $region106: #{tpu_custom_call.1} parent=5 // pred_check_branch
        %5287 = sbr.rel (%p5285) target = $region108
      $region107: #{tpu_custom_call.1} parent=5 // pred_region
        %s5288 = ssub.s32 %s27, 2
        // Predicated region
        $region109: #{tpu_custom_call.1} parent=107 // pred_check
          %p5289 = pneg %p271
        $region110: #{tpu_custom_call.1} parent=107 // pred_check_branch
          %5291 = sbr.rel (%p5289) target = $region112
        $region111: #{tpu_custom_call.1} parent=107 // pred_region
          %s5292 = sand.u32 %s256, 1
          %s5293 = scalar_lea.sflag [#allocation5], %s5292
          %s5294 = sand.u32 %s256, 1
          %s5295 = smul.addr %s5294, 64
          %s5296 = scalar_lea.vmem [#allocation20], %s5295
          %5297 = dma.done %s5293, 1024
        $region112: #{tpu_custom_call.1} parent=107 // pred_fallthru
          _
      $region108: #{tpu_custom_call.1} parent=5 // pred_fallthru
        _
    $region6: #{tpu_custom_call.1} parent=1 // loop_footer
      %s31 = sadd.s32 1, %s27
    $region7: #{tpu_custom_call.1} parent=1 // loop_footer_branch
      %26 = sbr.rel target = $region3
    $region8: #{tpu_custom_call.1} parent=1 // loop_exit
      _
    %5298 = vsyncpa [#allocation4], 1
    %s5299 = scalar_lea.sflag [#allocation4], 1
    %5300 = vsyncpa %s5299, 1
    %5301 = vsyncpa [#allocation7], 1
    %5302 = vsyncpa [#allocation10], 1
    %5303 = vsyncpa [#allocation13], 1
    %5304 = vsyncpa [#allocation16], 1
    %5305 = vsyncpa [#allocation19], 1
    %5306 = vsyncpa [#allocation5], 1
    %s5307 = scalar_lea.sflag [#allocation5], 1
    %5308 = vsyncpa %s5307, 1

</llo_original>
